<compile_context>
chip_gen: v7x
topology: tpu7x:2x2x1
jax: 0.10.0
libtpu: 0.0.40
codegen_flags: <defaults>
</compile_context>

<pallas_src>
import functools

import jax
import jax.numpy as jnp
from jax.experimental import pallas as pl
from jax.experimental.pallas import tpu as pltpu

_INV_SQRT2 = 0.7071067811865475


def _round_up(x, m):
    return (x + m - 1) // m * m


def _gelu(y):
    # exact (erf-based) GELU, matching torch.nn.GELU default used by timm ViT
    return 0.5 * y * (1.0 + jax.lax.erf(y * _INV_SQRT2))


def _layernorm(x, g, b, eps):
    mean = jnp.mean(x, axis=-1, keepdims=True)
    xc = x - mean
    var = jnp.mean(xc * xc, axis=-1, keepdims=True)
    return xc * jax.lax.rsqrt(var + eps) * g + b


# ----------------------------- fused ViT kernel -----------------------------

def _vit_fused_kernel(
        patches_ref, pw_ref, pb_ref, pos_ref,
        ln1g_ref, ln1b_ref, qkvw_ref, qkvb_ref, projw_ref, projb_ref,
        ln2g_ref, ln2b_ref, fc1w_ref, fc1b_ref, fc2w_ref, fc2b_ref,
        lnfg_ref, lnfb_ref, headw_ref, headb_ref,
        logits_ref, tok_ref,
        *, B, N, NP, D, H, dh, scale, eps):
    """One grid step == one transformer block; token stream carried in VMEM.

    grid = (depth,).  Block-i weights arrive via depth-indexed BlockSpecs
    (double-buffered by the pipeline), everything else is resident (constant
    block index => no re-DMA).  Embedding runs at i==0, head at i==depth-1.
    """
    i = pl.program_id(0)

    # ---- patch embed + cls token + positional embed (first step only) ----
    @pl.when(i == 0)
    def _embed():
        pe = jnp.dot(patches_ref[...], pw_ref[...],
                     preferred_element_type=jnp.float32) + pb_ref[...]   # (B*NP, D)
        pos = pos_ref[...]                                               # (N, D); row 0 = cls + pos[0]
        rows = []
        for b in range(B):                       # static, B is small
            rows.append(pos[0:1])
            rows.append(pe[b * NP:(b + 1) * NP] + pos[1:])
        tok_ref[...] = jnp.concatenate(rows, axis=0)                     # (B*N, D)

    # ---- transformer block i ----
    x = tok_ref[...]                                                     # (B*N, D) f32 residual stream

    # LN1 fused into the QKV matmul (bf16 MXU operands, f32 accumulation)
    h1 = _layernorm(x, ln1g_ref[...], ln1b_ref[...], eps)
    qkv = jnp.dot(h1.astype(jnp.bfloat16), qkvw_ref[...],
                  preferred_element_type=jnp.float32) + qkvb_ref[...]    # (B*N, 3D)

    # Multi-head self-attention: all values stay in vregs/VMEM; per-head
    # outputs are assembled by lane-dense concatenation (no masked stores).
    # TODO(synk): at ViT-B scale (12 heads, dh=64, N=197) restructure to a
    # head-batched layout / (B, H) grid instead of static per-head lane slices.
    a_rows = []
    for b in range(B):                            # static unroll; B, H small here
        qkv_b = qkv[b * N:(b + 1) * N]                                   # (N, 3D)
        head_outs = []
        for h in range(H):
            q = qkv_b[:, h * dh:(h + 1) * dh].astype(jnp.bfloat16)
            k = qkv_b[:, D + h * dh:D + (h + 1) * dh].astype(jnp.bfloat16)
            v = qkv_b[:, 2 * D + h * dh:2 * D + (h + 1) * dh].astype(jnp.bfloat16)
            # q @ k^T without materializing a transpose
            s = jax.lax.dot_general(q, k, (((1,), (1,)), ((), ())),
                                    preferred_element_type=jnp.float32) * scale
            s = s - jnp.max(s, axis=-1, keepdims=True)
            p = jnp.exp(s)
            p = p * pl.reciprocal(jnp.sum(p, axis=-1, keepdims=True), approx=True)
            head_outs.append(jnp.dot(p.astype(jnp.bfloat16), v,
                                     preferred_element_type=jnp.float32))
        a_rows.append(jnp.concatenate(head_outs, axis=-1))               # (N, D) lane-dense
    a = jnp.concatenate(a_rows, axis=0)                                  # (B*N, D)

    # attention projection with the residual add fused
    x = x + jnp.dot(a.astype(jnp.bfloat16), projw_ref[...],
                    preferred_element_type=jnp.float32) + projb_ref[...]

    # MLP: LN2 fused into FC1 (+exact GELU), residual fused after FC2
    h2 = _layernorm(x, ln2g_ref[...], ln2b_ref[...], eps)
    m = _gelu(jnp.dot(h2.astype(jnp.bfloat16), fc1w_ref[...],
                      preferred_element_type=jnp.float32) + fc1b_ref[...])
    x = x + jnp.dot(m.astype(jnp.bfloat16), fc2w_ref[...],
                    preferred_element_type=jnp.float32) + fc2b_ref[...]

    tok_ref[...] = x                                                     # carry to next block

    # ---- final LN + linear head on the cls token (last step only) ----
    # Final LN is per-row, so applying it to the cls rows only is exactly
    # timm's norm-then-pool('token').  Head output is lane-padded to 128.
    @pl.when(i == pl.num_programs(0) - 1)
    def _head():
        cls_rows = jnp.concatenate([x[b * N:b * N + 1] for b in range(B)], axis=0)
        hc = _layernorm(cls_rows, lnfg_ref[...], lnfb_ref[...], eps)
        logits_ref[...] = (jnp.dot(hc.astype(jnp.bfloat16), headw_ref[...],
                                   preferred_element_type=jnp.float32)
                           + headb_ref[...])


# ----------------------------- forward wrapper -----------------------------

def vit_forward(params, x, cfg):
    B = x.shape[0]
    C, P, D, H = cfg["chans"], cfg["patch"], cfg["dim"], cfg["heads"]
    dh = D // H
    depth = cfg["depth"]
    gh, gw = x.shape[2] // P, x.shape[3] // P
    NP = gh * gw
    N = NP + 1
    NCP = params["head_w"].shape[1]                 # lane-padded #classes
    scale = dh ** -0.5

    # Patch extraction is pure layout (conv with kernel==stride==patch); done
    # once as XLA glue, cast to bf16 so the kernel needs no per-step cast and
    # the only activation DMA into the kernel is half-width.
    xp = x.reshape(B, C, gh, P, gw, P).transpose(0, 2, 4, 1, 3, 5)
    patches = xp.reshape(B * NP, C * P * P).astype(jnp.bfloat16)

    # Fold the cls token into row 0 of the positional table: tok[b,0]=cls+pos[0].
    pos_cls = params["pos_embed"][0].at[0].add(params["cls_token"][0, 0])

    kernel = functools.partial(_vit_fused_kernel, B=B, N=N, NP=NP, D=D, H=H,
                               dh=dh, scale=scale, eps=1e-6)

    def const2(a):      # resident across all depth steps (constant block index)
        return pl.BlockSpec(a.shape, lambda i: (0, 0))

    def perblk(a):      # depth-indexed, leading dim squeezed; auto-prefetched
        return pl.BlockSpec((None,) + a.shape[1:], lambda i: (i, 0, 0))

    args = (patches, params["patch_w"], params["patch_b"], pos_cls,
            params["ln1_g"], params["ln1_b"], params["qkv_w"], params["qkv_b"],
            params["proj_w"], params["proj_b"],
            params["ln2_g"], params["ln2_b"], params["fc1_w"], params["fc1_b"],
            params["fc2_w"], params["fc2_b"],
            params["lnf_g"], params["lnf_b"], params["head_w"], params["head_b"])

    in_specs = (
        [const2(patches), const2(params["patch_w"]), const2(params["patch_b"]),
         const2(pos_cls)]
        + [perblk(params[k]) for k in
           ("ln1_g", "ln1_b", "qkv_w", "qkv_b", "proj_w", "proj_b",
            "ln2_g", "ln2_b", "fc1_w", "fc1_b", "fc2_w", "fc2_b")]
        + [const2(params[k]) for k in ("lnf_g", "lnf_b", "head_w", "head_b")]
    )

    logits = pl.pallas_call(
        kernel,
        grid=(depth,),
        out_shape=jax.ShapeDtypeStruct((B, NCP), jnp.float32),
        in_specs=in_specs,
        out_specs=pl.BlockSpec((B, NCP), lambda i: (0, 0)),
        scratch_shapes=[pltpu.VMEM((B * N, D), jnp.float32)],   # token carry
        compiler_params=pltpu.CompilerParams(
            # depth is a sequential carry (token stream lives in scratch)
            dimension_semantics=("arbitrary",),
            # explicit, fits every generation (working set here is <1 MiB;
            # re-derive before growing tiles on v7x's 64 MiB physical VMEM)
            vmem_limit_bytes=32 * 1024 * 1024),
    )(*args)

    return logits[:, :cfg["classes"]]               # drop lane padding


# ----------------------------- param init -----------------------------

def init_params(key, cfg):
    # TODO(synk): pretrained ImageNet weights are not loadable here; parameters
    # are synthetic (deterministic normal init), architecture/semantics only.
    D, C, P = cfg["dim"], cfg["chans"], cfg["patch"]
    hidden, depth = cfg["mlp_hidden"], cfg["depth"]
    n_tok = (cfg["img"] // P) ** 2 + 1
    n_cls = cfg["classes"]
    n_cls_pad = _round_up(n_cls, 128)     # lane-dense head output, sliced outside

    def nrm(k, shape, std=0.02, dtype=jnp.bfloat16):
        # matmul weights stored bf16 (halves weight DMA, native MXU dtype)
        return (std * jax.random.normal(k, shape, dtype=jnp.float32)).astype(dtype)

    keys = iter(jax.random.split(key, 16))
    head_w = nrm(next(keys), (D, n_cls))
    return {
        "patch_w": nrm(next(keys), (C * P * P, D)),
        "patch_b": jnp.zeros((1, D), jnp.float32),
        "cls_token": nrm(next(keys), (1, 1, D), dtype=jnp.float32),
        "pos_embed": nrm(next(keys), (1, n_tok, D), dtype=jnp.float32),
        # per-block weights stacked on a leading depth axis (streamed by BlockSpec)
        "ln1_g": jnp.ones((depth, 1, D), jnp.float32),
        "ln1_b": jnp.zeros((depth, 1, D), jnp.float32),
        "qkv_w": nrm(next(keys), (depth, D, 3 * D)),
        "qkv_b": jnp.zeros((depth, 1, 3 * D), jnp.float32),
        "proj_w": nrm(next(keys), (depth, D, D)),
        "proj_b": jnp.zeros((depth, 1, D), jnp.float32),
        "ln2_g": jnp.ones((depth, 1, D), jnp.float32),
        "ln2_b": jnp.zeros((depth, 1, D), jnp.float32),
        "fc1_w": nrm(next(keys), (depth, D, hidden)),
        "fc1_b": jnp.zeros((depth, 1, hidden), jnp.float32),
        "fc2_w": nrm(next(keys), (depth, hidden, D)),
        "fc2_b": jnp.zeros((depth, 1, D), jnp.float32),
        "lnf_g": jnp.ones((1, D), jnp.float32),
        "lnf_b": jnp.zeros((1, D), jnp.float32),
        "head_w": jnp.pad(head_w, ((0, 0), (0, n_cls_pad - n_cls))),
        "head_b": jnp.zeros((1, n_cls_pad), jnp.float32),
    }


# ----------------------------- main -----------------------------

if __name__ == "__main__":
    cfg = dict(
        img=32,        # small image (32x32) instead of 224x224
        patch=16,      # same patch size as vit_base_patch16_224
        chans=3,
        dim=64,        # scaled-down embed dim (768 in ViT-B)
        heads=4,
        depth=2,       # scaled-down depth (12 in ViT-B)
        mlp_hidden=256,
        classes=10,    # the fresh nn.Linear head
    )

    root = jax.random.PRNGKey(0)
    k_param, k_x = jax.random.split(root)
    params = init_params(k_param, cfg)

    # NCHW input, like the PyTorch module
    x = jax.random.normal(k_x, (2, cfg["chans"], cfg["img"], cfg["img"]),
                          dtype=jnp.float32)

    fwd = jax.jit(functools.partial(vit_forward, cfg=cfg))
    logits = fwd(params, x)
    logits = jax.block_until_ready(logits)
    assert logits.shape == (2, cfg["classes"])
    assert logits.dtype == jnp.float32
    print("KERNEL_OK")
</pallas_src>

<mosaic_0001>
module attributes {stable_mosaic.version = 11 : i64} {
  func.func @_vit_fused_kernel(%arg0: i32, %arg1: memref<8x768xbf16, #tpu.memory_space<vmem>>, %arg2: memref<768x64xbf16, #tpu.memory_space<vmem>>, %arg3: memref<1x64xf32, #tpu.memory_space<vmem>>, %arg4: memref<5x64xf32, #tpu.memory_space<vmem>>, %arg5: memref<1x1x64xf32, #tpu.memory_space<vmem>>, %arg6: memref<1x1x64xf32, #tpu.memory_space<vmem>>, %arg7: memref<1x64x192xbf16, #tpu.memory_space<vmem>>, %arg8: memref<1x1x192xf32, #tpu.memory_space<vmem>>, %arg9: memref<1x64x64xbf16, #tpu.memory_space<vmem>>, %arg10: memref<1x1x64xf32, #tpu.memory_space<vmem>>, %arg11: memref<1x1x64xf32, #tpu.memory_space<vmem>>, %arg12: memref<1x1x64xf32, #tpu.memory_space<vmem>>, %arg13: memref<1x64x256xbf16, #tpu.memory_space<vmem>>, %arg14: memref<1x1x256xf32, #tpu.memory_space<vmem>>, %arg15: memref<1x256x64xbf16, #tpu.memory_space<vmem>>, %arg16: memref<1x1x64xf32, #tpu.memory_space<vmem>>, %arg17: memref<1x64xf32, #tpu.memory_space<vmem>>, %arg18: memref<1x64xf32, #tpu.memory_space<vmem>>, %arg19: memref<64x128xbf16, #tpu.memory_space<vmem>>, %arg20: memref<1x128xf32, #tpu.memory_space<vmem>>, %arg21: memref<2x128xf32, #tpu.memory_space<vmem>>, %arg22: memref<10x64xf32, #tpu.memory_space<vmem>>) attributes {dimension_semantics = [#tpu.dimension_semantics<arbitrary>], iteration_bounds = array<i64: 2>, scalar_prefetch = 0 : i64, scratch_operands = 1 : i64, tpu.core_type = #tpu.core_type<tc>, window_params = [{pipeline_mode = #tpu.pipeline_mode<synchronous>, transform_indices = @transform_0, window_bounds = array<i64: 8, 768>}, {pipeline_mode = #tpu.pipeline_mode<synchronous>, transform_indices = @transform_1, window_bounds = array<i64: 768, 64>}, {pipeline_mode = #tpu.pipeline_mode<synchronous>, transform_indices = @transform_2, window_bounds = array<i64: 1, 64>}, {pipeline_mode = #tpu.pipeline_mode<synchronous>, transform_indices = @transform_3, window_bounds = array<i64: 5, 64>}, {transform_indices = @transform_4, window_bounds = array<i64: 1, 1, 64>}, {transform_indices = @transform_5, window_bounds = array<i64: 1, 1, 64>}, {transform_indices = @transform_6, window_bounds = array<i64: 1, 64, 192>}, {transform_indices = @transform_7, window_bounds = array<i64: 1, 1, 192>}, {transform_indices = @transform_8, window_bounds = array<i64: 1, 64, 64>}, {transform_indices = @transform_9, window_bounds = array<i64: 1, 1, 64>}, {transform_indices = @transform_10, window_bounds = array<i64: 1, 1, 64>}, {transform_indices = @transform_11, window_bounds = array<i64: 1, 1, 64>}, {transform_indices = @transform_12, window_bounds = array<i64: 1, 64, 256>}, {transform_indices = @transform_13, window_bounds = array<i64: 1, 1, 256>}, {transform_indices = @transform_14, window_bounds = array<i64: 1, 256, 64>}, {transform_indices = @transform_15, window_bounds = array<i64: 1, 1, 64>}, {pipeline_mode = #tpu.pipeline_mode<synchronous>, transform_indices = @transform_16, window_bounds = array<i64: 1, 64>}, {pipeline_mode = #tpu.pipeline_mode<synchronous>, transform_indices = @transform_17, window_bounds = array<i64: 1, 64>}, {pipeline_mode = #tpu.pipeline_mode<synchronous>, transform_indices = @transform_18, window_bounds = array<i64: 64, 128>}, {pipeline_mode = #tpu.pipeline_mode<synchronous>, transform_indices = @transform_19, window_bounds = array<i64: 1, 128>}, {pipeline_mode = #tpu.pipeline_mode<synchronous>, transform_indices = @transform_20, window_bounds = array<i64: 2, 128>}]} {
    %c0_i32 = arith.constant 0 : i32
    %0 = arith.cmpi eq, %arg0, %c0_i32 : i32
    %1 = arith.extui %0 : i1 to i32
    %c0_i32_0 = arith.constant 0 : i32
    %2 = arith.cmpi ne, %1, %c0_i32_0 : i32
    scf.if %2 {
      %c0_97 = arith.constant 0 : index
      %c0_98 = arith.constant 0 : index
      %271 = vector.load %arg1[%c0_97, %c0_98] : memref<8x768xbf16, #tpu.memory_space<vmem>>, vector<8x768xbf16>
      %c0_99 = arith.constant 0 : index
      %c0_100 = arith.constant 0 : index
      %272 = vector.load %arg2[%c0_99, %c0_100] : memref<768x64xbf16, #tpu.memory_space<vmem>>, vector<768x64xbf16>
      %cst_101 = arith.constant dense<0.000000e+00> : vector<8x64xf32>
      %273 = tpu.matmul %271, %272, %cst_101 {dimension_numbers = #tpu.dot_dimension_numbers<[1], [0], [0], [1], [0, 0, 1, 1], [], []>} : vector<8x768xbf16>, vector<768x64xbf16>, vector<8x64xf32> -> vector<8x64xf32>
      %c0_102 = arith.constant 0 : index
      %c0_103 = arith.constant 0 : index
      %274 = vector.load %arg3[%c0_102, %c0_103] : memref<1x64xf32, #tpu.memory_space<vmem>>, vector<1x64xf32>
      %275 = vector.broadcast %274 : vector<1x64xf32> to vector<8x64xf32>
      %276 = arith.addf %273, %275 : vector<8x64xf32>
      %c0_104 = arith.constant 0 : index
      %c0_105 = arith.constant 0 : index
      %277 = vector.load %arg4[%c0_104, %c0_105] : memref<5x64xf32, #tpu.memory_space<vmem>>, vector<5x64xf32>
      %278 = vector.extract_strided_slice %277 {offsets = [0, 0], sizes = [1, 64], strides = [1, 1]} : vector<5x64xf32> to vector<1x64xf32>
      %279 = vector.extract_strided_slice %276 {offsets = [0, 0], sizes = [4, 64], strides = [1, 1]} : vector<8x64xf32> to vector<4x64xf32>
      %280 = vector.extract_strided_slice %277 {offsets = [1, 0], sizes = [4, 64], strides = [1, 1]} : vector<5x64xf32> to vector<4x64xf32>
      %281 = arith.addf %279, %280 : vector<4x64xf32>
      %282 = vector.extract_strided_slice %277 {offsets = [0, 0], sizes = [1, 64], strides = [1, 1]} : vector<5x64xf32> to vector<1x64xf32>
      %283 = vector.extract_strided_slice %276 {offsets = [4, 0], sizes = [4, 64], strides = [1, 1]} : vector<8x64xf32> to vector<4x64xf32>
      %284 = vector.extract_strided_slice %277 {offsets = [1, 0], sizes = [4, 64], strides = [1, 1]} : vector<5x64xf32> to vector<4x64xf32>
      %285 = arith.addf %283, %284 : vector<4x64xf32>
      %286 = tpu.concatenate %278, %281, %282, %285 in 0 : vector<1x64xf32>, vector<4x64xf32>, vector<1x64xf32>, vector<4x64xf32> -> vector<10x64xf32>
      %c0_106 = arith.constant 0 : index
      %c0_107 = arith.constant 0 : index
      %287 = vector.load %arg22[%c0_106, %c0_107] : memref<10x64xf32, #tpu.memory_space<vmem>>, vector<10x64xf32>
      tpu.vector_store %arg22[%c0_106, %c0_107], %286 {strides = array<i32>} : memref<10x64xf32, #tpu.memory_space<vmem>>, vector<10x64xf32>,
    } else {
    }
    %c0 = arith.constant 0 : index
    %c0_1 = arith.constant 0 : index
    %3 = vector.load %arg22[%c0, %c0_1] : memref<10x64xf32, #tpu.memory_space<vmem>>, vector<10x64xf32>
    %c0_2 = arith.constant 0 : index
    %c0_3 = arith.constant 0 : index
    %c0_4 = arith.constant 0 : index
    %4 = vector.load %arg5[%c0_2, %c0_3, %c0_4] : memref<1x1x64xf32, #tpu.memory_space<vmem>>, vector<1x1x64xf32>
    %5 = vector.shape_cast %4 : vector<1x1x64xf32> to vector<1x64xf32>
    %c0_5 = arith.constant 0 : index
    %c0_6 = arith.constant 0 : index
    %c0_7 = arith.constant 0 : index
    %6 = vector.load %arg6[%c0_5, %c0_6, %c0_7] : memref<1x1x64xf32, #tpu.memory_space<vmem>>, vector<1x1x64xf32>
    %7 = vector.shape_cast %6 : vector<1x1x64xf32> to vector<1x64xf32>
    %cst = arith.constant dense<0.000000e+00> : vector<10xf32>
    %8 = vector.multi_reduction <add>, %3, %cst [1] : vector<10x64xf32> to vector<10xf32>
    %9 = vector.shape_cast %8 : vector<10xf32> to vector<10x1xf32>
    %cst_8 = arith.constant 6.400000e+01 : f32
    %10 = vector.broadcast %cst_8 : f32 to vector<10x1xf32>
    %11 = arith.divf %9, %10 : vector<10x1xf32>
    %12 = vector.broadcast %11 : vector<10x1xf32> to vector<10x64xf32>
    %13 = arith.subf %3, %12 : vector<10x64xf32>
    %14 = arith.mulf %13, %13 : vector<10x64xf32>
    %cst_9 = arith.constant dense<0.000000e+00> : vector<10xf32>
    %15 = vector.multi_reduction <add>, %14, %cst_9 [1] : vector<10x64xf32> to vector<10xf32>
    %16 = vector.shape_cast %15 : vector<10xf32> to vector<10x1xf32>
    %cst_10 = arith.constant 6.400000e+01 : f32
    %17 = vector.broadcast %cst_10 : f32 to vector<10x1xf32>
    %18 = arith.divf %16, %17 : vector<10x1xf32>
    %cst_11 = arith.constant 9.99999997E-7 : f32
    %19 = vector.broadcast %cst_11 : f32 to vector<10x1xf32>
    %20 = arith.addf %18, %19 : vector<10x1xf32>
    %21 = math.rsqrt %20 : vector<10x1xf32>
    %22 = vector.broadcast %21 : vector<10x1xf32> to vector<10x64xf32>
    %23 = arith.mulf %13, %22 : vector<10x64xf32>
    %24 = vector.broadcast %5 : vector<1x64xf32> to vector<10x64xf32>
    %25 = arith.mulf %23, %24 : vector<10x64xf32>
    %26 = vector.broadcast %7 : vector<1x64xf32> to vector<10x64xf32>
    %27 = arith.addf %25, %26 : vector<10x64xf32>
    %28 = arith.truncf %27 : vector<10x64xf32> to vector<10x64xbf16>
    %c0_12 = arith.constant 0 : index
    %c0_13 = arith.constant 0 : index
    %c0_14 = arith.constant 0 : index
    %29 = vector.load %arg7[%c0_12, %c0_13, %c0_14] : memref<1x64x192xbf16, #tpu.memory_space<vmem>>, vector<1x64x192xbf16>
    %30 = vector.shape_cast %29 : vector<1x64x192xbf16> to vector<64x192xbf16>
    %cst_15 = arith.constant dense<0.000000e+00> : vector<10x192xf32>
    %31 = tpu.matmul %28, %30, %cst_15 {dimension_numbers = #tpu.dot_dimension_numbers<[1], [0], [0], [1], [0, 0, 1, 1], [], []>} : vector<10x64xbf16>, vector<64x192xbf16>, vector<10x192xf32> -> vector<10x192xf32>
    %c0_16 = arith.constant 0 : index
    %c0_17 = arith.constant 0 : index
    %c0_18 = arith.constant 0 : index
    %32 = vector.load %arg8[%c0_16, %c0_17, %c0_18] : memref<1x1x192xf32, #tpu.memory_space<vmem>>, vector<1x1x192xf32>
    %33 = vector.shape_cast %32 : vector<1x1x192xf32> to vector<1x192xf32>
    %34 = vector.broadcast %33 : vector<1x192xf32> to vector<10x192xf32>
    %35 = arith.addf %31, %34 : vector<10x192xf32>
    %36 = vector.extract_strided_slice %35 {offsets = [0, 0], sizes = [5, 192], strides = [1, 1]} : vector<10x192xf32> to vector<5x192xf32>
    %37 = vector.extract_strided_slice %36 {offsets = [0, 0], sizes = [5, 16], strides = [1, 1]} : vector<5x192xf32> to vector<5x16xf32>
    %38 = arith.truncf %37 : vector<5x16xf32> to vector<5x16xbf16>
    %39 = vector.extract_strided_slice %36 {offsets = [0, 64], sizes = [5, 16], strides = [1, 1]} : vector<5x192xf32> to vector<5x16xf32>
    %40 = arith.truncf %39 : vector<5x16xf32> to vector<5x16xbf16>
    %41 = vector.extract_strided_slice %36 {offsets = [0, 128], sizes = [5, 16], strides = [1, 1]} : vector<5x192xf32> to vector<5x16xf32>
    %42 = arith.truncf %41 : vector<5x16xf32> to vector<5x16xbf16>
    %cst_19 = arith.constant dense<0.000000e+00> : vector<5x5xf32>
    %43 = tpu.matmul %38, %40, %cst_19 {dimension_numbers = #tpu.dot_dimension_numbers<[1], [1], [0], [0], [0, 0, 1, 0], [], []>} : vector<5x16xbf16>, vector<5x16xbf16>, vector<5x5xf32> -> vector<5x5xf32>
    %cst_20 = arith.constant 2.500000e-01 : f32
    %44 = vector.broadcast %cst_20 : f32 to vector<5x5xf32>
    %45 = arith.mulf %43, %44 : vector<5x5xf32>
    %cst_21 = arith.constant dense<0xFF800000> : vector<5xf32>
    %46 = vector.multi_reduction <maximumf>, %45, %cst_21 [1] : vector<5x5xf32> to vector<5xf32>
    %47 = vector.shape_cast %46 : vector<5xf32> to vector<5x1xf32>
    %48 = vector.broadcast %47 : vector<5x1xf32> to vector<5x5xf32>
    %49 = arith.subf %45, %48 : vector<5x5xf32>
    %50 = math.exp %49 : vector<5x5xf32>
    %cst_22 = arith.constant dense<0.000000e+00> : vector<5xf32>
    %51 = vector.multi_reduction <add>, %50, %cst_22 [1] : vector<5x5xf32> to vector<5xf32>
    %52 = vector.shape_cast %51 : vector<5xf32> to vector<5x1xf32>
    %53 = tpu.reciprocal %52 {approx = true} : vector<5x1xf32> -> vector<5x1xf32>
    %54 = vector.broadcast %53 : vector<5x1xf32> to vector<5x5xf32>
    %55 = arith.mulf %50, %54 : vector<5x5xf32>
    %56 = arith.truncf %55 : vector<5x5xf32> to vector<5x5xbf16>
    %cst_23 = arith.constant dense<0.000000e+00> : vector<5x16xf32>
    %57 = tpu.matmul %56, %42, %cst_23 {dimension_numbers = #tpu.dot_dimension_numbers<[1], [0], [0], [1], [0, 0, 1, 1], [], []>} : vector<5x5xbf16>, vector<5x16xbf16>, vector<5x16xf32> -> vector<5x16xf32>
    %58 = vector.extract_strided_slice %36 {offsets = [0, 16], sizes = [5, 16], strides = [1, 1]} : vector<5x192xf32> to vector<5x16xf32>
    %59 = arith.truncf %58 : vector<5x16xf32> to vector<5x16xbf16>
    %60 = vector.extract_strided_slice %36 {offsets = [0, 80], sizes = [5, 16], strides = [1, 1]} : vector<5x192xf32> to vector<5x16xf32>
    %61 = arith.truncf %60 : vector<5x16xf32> to vector<5x16xbf16>
    %62 = vector.extract_strided_slice %36 {offsets = [0, 144], sizes = [5, 16], strides = [1, 1]} : vector<5x192xf32> to vector<5x16xf32>
    %63 = arith.truncf %62 : vector<5x16xf32> to vector<5x16xbf16>
    %cst_24 = arith.constant dense<0.000000e+00> : vector<5x5xf32>
    %64 = tpu.matmul %59, %61, %cst_24 {dimension_numbers = #tpu.dot_dimension_numbers<[1], [1], [0], [0], [0, 0, 1, 0], [], []>} : vector<5x16xbf16>, vector<5x16xbf16>, vector<5x5xf32> -> vector<5x5xf32>
    %cst_25 = arith.constant 2.500000e-01 : f32
    %65 = vector.broadcast %cst_25 : f32 to vector<5x5xf32>
    %66 = arith.mulf %64, %65 : vector<5x5xf32>
    %cst_26 = arith.constant dense<0xFF800000> : vector<5xf32>
    %67 = vector.multi_reduction <maximumf>, %66, %cst_26 [1] : vector<5x5xf32> to vector<5xf32>
    %68 = vector.shape_cast %67 : vector<5xf32> to vector<5x1xf32>
    %69 = vector.broadcast %68 : vector<5x1xf32> to vector<5x5xf32>
    %70 = arith.subf %66, %69 : vector<5x5xf32>
    %71 = math.exp %70 : vector<5x5xf32>
    %cst_27 = arith.constant dense<0.000000e+00> : vector<5xf32>
    %72 = vector.multi_reduction <add>, %71, %cst_27 [1] : vector<5x5xf32> to vector<5xf32>
    %73 = vector.shape_cast %72 : vector<5xf32> to vector<5x1xf32>
    %74 = tpu.reciprocal %73 {approx = true} : vector<5x1xf32> -> vector<5x1xf32>
    %75 = vector.broadcast %74 : vector<5x1xf32> to vector<5x5xf32>
    %76 = arith.mulf %71, %75 : vector<5x5xf32>
    %77 = arith.truncf %76 : vector<5x5xf32> to vector<5x5xbf16>
    %cst_28 = arith.constant dense<0.000000e+00> : vector<5x16xf32>
    %78 = tpu.matmul %77, %63, %cst_28 {dimension_numbers = #tpu.dot_dimension_numbers<[1], [0], [0], [1], [0, 0, 1, 1], [], []>} : vector<5x5xbf16>, vector<5x16xbf16>, vector<5x16xf32> -> vector<5x16xf32>
    %79 = vector.extract_strided_slice %36 {offsets = [0, 32], sizes = [5, 16], strides = [1, 1]} : vector<5x192xf32> to vector<5x16xf32>
    %80 = arith.truncf %79 : vector<5x16xf32> to vector<5x16xbf16>
    %81 = vector.extract_strided_slice %36 {offsets = [0, 96], sizes = [5, 16], strides = [1, 1]} : vector<5x192xf32> to vector<5x16xf32>
    %82 = arith.truncf %81 : vector<5x16xf32> to vector<5x16xbf16>
    %83 = vector.extract_strided_slice %36 {offsets = [0, 160], sizes = [5, 16], strides = [1, 1]} : vector<5x192xf32> to vector<5x16xf32>
    %84 = arith.truncf %83 : vector<5x16xf32> to vector<5x16xbf16>
    %cst_29 = arith.constant dense<0.000000e+00> : vector<5x5xf32>
    %85 = tpu.matmul %80, %82, %cst_29 {dimension_numbers = #tpu.dot_dimension_numbers<[1], [1], [0], [0], [0, 0, 1, 0], [], []>} : vector<5x16xbf16>, vector<5x16xbf16>, vector<5x5xf32> -> vector<5x5xf32>
    %cst_30 = arith.constant 2.500000e-01 : f32
    %86 = vector.broadcast %cst_30 : f32 to vector<5x5xf32>
    %87 = arith.mulf %85, %86 : vector<5x5xf32>
    %cst_31 = arith.constant dense<0xFF800000> : vector<5xf32>
    %88 = vector.multi_reduction <maximumf>, %87, %cst_31 [1] : vector<5x5xf32> to vector<5xf32>
    %89 = vector.shape_cast %88 : vector<5xf32> to vector<5x1xf32>
    %90 = vector.broadcast %89 : vector<5x1xf32> to vector<5x5xf32>
    %91 = arith.subf %87, %90 : vector<5x5xf32>
    %92 = math.exp %91 : vector<5x5xf32>
    %cst_32 = arith.constant dense<0.000000e+00> : vector<5xf32>
    %93 = vector.multi_reduction <add>, %92, %cst_32 [1] : vector<5x5xf32> to vector<5xf32>
    %94 = vector.shape_cast %93 : vector<5xf32> to vector<5x1xf32>
    %95 = tpu.reciprocal %94 {approx = true} : vector<5x1xf32> -> vector<5x1xf32>
    %96 = vector.broadcast %95 : vector<5x1xf32> to vector<5x5xf32>
    %97 = arith.mulf %92, %96 : vector<5x5xf32>
    %98 = arith.truncf %97 : vector<5x5xf32> to vector<5x5xbf16>
    %cst_33 = arith.constant dense<0.000000e+00> : vector<5x16xf32>
    %99 = tpu.matmul %98, %84, %cst_33 {dimension_numbers = #tpu.dot_dimension_numbers<[1], [0], [0], [1], [0, 0, 1, 1], [], []>} : vector<5x5xbf16>, vector<5x16xbf16>, vector<5x16xf32> -> vector<5x16xf32>
    %100 = vector.extract_strided_slice %36 {offsets = [0, 48], sizes = [5, 16], strides = [1, 1]} : vector<5x192xf32> to vector<5x16xf32>
    %101 = arith.truncf %100 : vector<5x16xf32> to vector<5x16xbf16>
    %102 = vector.extract_strided_slice %36 {offsets = [0, 112], sizes = [5, 16], strides = [1, 1]} : vector<5x192xf32> to vector<5x16xf32>
    %103 = arith.truncf %102 : vector<5x16xf32> to vector<5x16xbf16>
    %104 = vector.extract_strided_slice %36 {offsets = [0, 176], sizes = [5, 16], strides = [1, 1]} : vector<5x192xf32> to vector<5x16xf32>
    %105 = arith.truncf %104 : vector<5x16xf32> to vector<5x16xbf16>
    %cst_34 = arith.constant dense<0.000000e+00> : vector<5x5xf32>
    %106 = tpu.matmul %101, %103, %cst_34 {dimension_numbers = #tpu.dot_dimension_numbers<[1], [1], [0], [0], [0, 0, 1, 0], [], []>} : vector<5x16xbf16>, vector<5x16xbf16>, vector<5x5xf32> -> vector<5x5xf32>
    %cst_35 = arith.constant 2.500000e-01 : f32
    %107 = vector.broadcast %cst_35 : f32 to vector<5x5xf32>
    %108 = arith.mulf %106, %107 : vector<5x5xf32>
    %cst_36 = arith.constant dense<0xFF800000> : vector<5xf32>
    %109 = vector.multi_reduction <maximumf>, %108, %cst_36 [1] : vector<5x5xf32> to vector<5xf32>
    %110 = vector.shape_cast %109 : vector<5xf32> to vector<5x1xf32>
    %111 = vector.broadcast %110 : vector<5x1xf32> to vector<5x5xf32>
    %112 = arith.subf %108, %111 : vector<5x5xf32>
    %113 = math.exp %112 : vector<5x5xf32>
    %cst_37 = arith.constant dense<0.000000e+00> : vector<5xf32>
    %114 = vector.multi_reduction <add>, %113, %cst_37 [1] : vector<5x5xf32> to vector<5xf32>
    %115 = vector.shape_cast %114 : vector<5xf32> to vector<5x1xf32>
    %116 = tpu.reciprocal %115 {approx = true} : vector<5x1xf32> -> vector<5x1xf32>
    %117 = vector.broadcast %116 : vector<5x1xf32> to vector<5x5xf32>
    %118 = arith.mulf %113, %117 : vector<5x5xf32>
    %119 = arith.truncf %118 : vector<5x5xf32> to vector<5x5xbf16>
    %cst_38 = arith.constant dense<0.000000e+00> : vector<5x16xf32>
    %120 = tpu.matmul %119, %105, %cst_38 {dimension_numbers = #tpu.dot_dimension_numbers<[1], [0], [0], [1], [0, 0, 1, 1], [], []>} : vector<5x5xbf16>, vector<5x16xbf16>, vector<5x16xf32> -> vector<5x16xf32>
    %121 = tpu.concatenate %57, %78, %99, %120 in 1 : vector<5x16xf32>, vector<5x16xf32>, vector<5x16xf32>, vector<5x16xf32> -> vector<5x64xf32>
    %122 = vector.extract_strided_slice %35 {offsets = [5, 0], sizes = [5, 192], strides = [1, 1]} : vector<10x192xf32> to vector<5x192xf32>
    %123 = vector.extract_strided_slice %122 {offsets = [0, 0], sizes = [5, 16], strides = [1, 1]} : vector<5x192xf32> to vector<5x16xf32>
    %124 = arith.truncf %123 : vector<5x16xf32> to vector<5x16xbf16>
    %125 = vector.extract_strided_slice %122 {offsets = [0, 64], sizes = [5, 16], strides = [1, 1]} : vector<5x192xf32> to vector<5x16xf32>
    %126 = arith.truncf %125 : vector<5x16xf32> to vector<5x16xbf16>
    %127 = vector.extract_strided_slice %122 {offsets = [0, 128], sizes = [5, 16], strides = [1, 1]} : vector<5x192xf32> to vector<5x16xf32>
    %128 = arith.truncf %127 : vector<5x16xf32> to vector<5x16xbf16>
    %cst_39 = arith.constant dense<0.000000e+00> : vector<5x5xf32>
    %129 = tpu.matmul %124, %126, %cst_39 {dimension_numbers = #tpu.dot_dimension_numbers<[1], [1], [0], [0], [0, 0, 1, 0], [], []>} : vector<5x16xbf16>, vector<5x16xbf16>, vector<5x5xf32> -> vector<5x5xf32>
    %cst_40 = arith.constant 2.500000e-01 : f32
    %130 = vector.broadcast %cst_40 : f32 to vector<5x5xf32>
    %131 = arith.mulf %129, %130 : vector<5x5xf32>
    %cst_41 = arith.constant dense<0xFF800000> : vector<5xf32>
    %132 = vector.multi_reduction <maximumf>, %131, %cst_41 [1] : vector<5x5xf32> to vector<5xf32>
    %133 = vector.shape_cast %132 : vector<5xf32> to vector<5x1xf32>
    %134 = vector.broadcast %133 : vector<5x1xf32> to vector<5x5xf32>
    %135 = arith.subf %131, %134 : vector<5x5xf32>
    %136 = math.exp %135 : vector<5x5xf32>
    %cst_42 = arith.constant dense<0.000000e+00> : vector<5xf32>
    %137 = vector.multi_reduction <add>, %136, %cst_42 [1] : vector<5x5xf32> to vector<5xf32>
    %138 = vector.shape_cast %137 : vector<5xf32> to vector<5x1xf32>
    %139 = tpu.reciprocal %138 {approx = true} : vector<5x1xf32> -> vector<5x1xf32>
    %140 = vector.broadcast %139 : vector<5x1xf32> to vector<5x5xf32>
    %141 = arith.mulf %136, %140 : vector<5x5xf32>
    %142 = arith.truncf %141 : vector<5x5xf32> to vector<5x5xbf16>
    %cst_43 = arith.constant dense<0.000000e+00> : vector<5x16xf32>
    %143 = tpu.matmul %142, %128, %cst_43 {dimension_numbers = #tpu.dot_dimension_numbers<[1], [0], [0], [1], [0, 0, 1, 1], [], []>} : vector<5x5xbf16>, vector<5x16xbf16>, vector<5x16xf32> -> vector<5x16xf32>
    %144 = vector.extract_strided_slice %122 {offsets = [0, 16], sizes = [5, 16], strides = [1, 1]} : vector<5x192xf32> to vector<5x16xf32>
    %145 = arith.truncf %144 : vector<5x16xf32> to vector<5x16xbf16>
    %146 = vector.extract_strided_slice %122 {offsets = [0, 80], sizes = [5, 16], strides = [1, 1]} : vector<5x192xf32> to vector<5x16xf32>
    %147 = arith.truncf %146 : vector<5x16xf32> to vector<5x16xbf16>
    %148 = vector.extract_strided_slice %122 {offsets = [0, 144], sizes = [5, 16], strides = [1, 1]} : vector<5x192xf32> to vector<5x16xf32>
    %149 = arith.truncf %148 : vector<5x16xf32> to vector<5x16xbf16>
    %cst_44 = arith.constant dense<0.000000e+00> : vector<5x5xf32>
    %150 = tpu.matmul %145, %147, %cst_44 {dimension_numbers = #tpu.dot_dimension_numbers<[1], [1], [0], [0], [0, 0, 1, 0], [], []>} : vector<5x16xbf16>, vector<5x16xbf16>, vector<5x5xf32> -> vector<5x5xf32>
    %cst_45 = arith.constant 2.500000e-01 : f32
    %151 = vector.broadcast %cst_45 : f32 to vector<5x5xf32>
    %152 = arith.mulf %150, %151 : vector<5x5xf32>
    %cst_46 = arith.constant dense<0xFF800000> : vector<5xf32>
    %153 = vector.multi_reduction <maximumf>, %152, %cst_46 [1] : vector<5x5xf32> to vector<5xf32>
    %154 = vector.shape_cast %153 : vector<5xf32> to vector<5x1xf32>
    %155 = vector.broadcast %154 : vector<5x1xf32> to vector<5x5xf32>
    %156 = arith.subf %152, %155 : vector<5x5xf32>
    %157 = math.exp %156 : vector<5x5xf32>
    %cst_47 = arith.constant dense<0.000000e+00> : vector<5xf32>
    %158 = vector.multi_reduction <add>, %157, %cst_47 [1] : vector<5x5xf32> to vector<5xf32>
    %159 = vector.shape_cast %158 : vector<5xf32> to vector<5x1xf32>
    %160 = tpu.reciprocal %159 {approx = true} : vector<5x1xf32> -> vector<5x1xf32>
    %161 = vector.broadcast %160 : vector<5x1xf32> to vector<5x5xf32>
    %162 = arith.mulf %157, %161 : vector<5x5xf32>
    %163 = arith.truncf %162 : vector<5x5xf32> to vector<5x5xbf16>
    %cst_48 = arith.constant dense<0.000000e+00> : vector<5x16xf32>
    %164 = tpu.matmul %163, %149, %cst_48 {dimension_numbers = #tpu.dot_dimension_numbers<[1], [0], [0], [1], [0, 0, 1, 1], [], []>} : vector<5x5xbf16>, vector<5x16xbf16>, vector<5x16xf32> -> vector<5x16xf32>
    %165 = vector.extract_strided_slice %122 {offsets = [0, 32], sizes = [5, 16], strides = [1, 1]} : vector<5x192xf32> to vector<5x16xf32>
    %166 = arith.truncf %165 : vector<5x16xf32> to vector<5x16xbf16>
    %167 = vector.extract_strided_slice %122 {offsets = [0, 96], sizes = [5, 16], strides = [1, 1]} : vector<5x192xf32> to vector<5x16xf32>
    %168 = arith.truncf %167 : vector<5x16xf32> to vector<5x16xbf16>
    %169 = vector.extract_strided_slice %122 {offsets = [0, 160], sizes = [5, 16], strides = [1, 1]} : vector<5x192xf32> to vector<5x16xf32>
    %170 = arith.truncf %169 : vector<5x16xf32> to vector<5x16xbf16>
    %cst_49 = arith.constant dense<0.000000e+00> : vector<5x5xf32>
    %171 = tpu.matmul %166, %168, %cst_49 {dimension_numbers = #tpu.dot_dimension_numbers<[1], [1], [0], [0], [0, 0, 1, 0], [], []>} : vector<5x16xbf16>, vector<5x16xbf16>, vector<5x5xf32> -> vector<5x5xf32>
    %cst_50 = arith.constant 2.500000e-01 : f32
    %172 = vector.broadcast %cst_50 : f32 to vector<5x5xf32>
    %173 = arith.mulf %171, %172 : vector<5x5xf32>
    %cst_51 = arith.constant dense<0xFF800000> : vector<5xf32>
    %174 = vector.multi_reduction <maximumf>, %173, %cst_51 [1] : vector<5x5xf32> to vector<5xf32>
    %175 = vector.shape_cast %174 : vector<5xf32> to vector<5x1xf32>
    %176 = vector.broadcast %175 : vector<5x1xf32> to vector<5x5xf32>
    %177 = arith.subf %173, %176 : vector<5x5xf32>
    %178 = math.exp %177 : vector<5x5xf32>
    %cst_52 = arith.constant dense<0.000000e+00> : vector<5xf32>
    %179 = vector.multi_reduction <add>, %178, %cst_52 [1] : vector<5x5xf32> to vector<5xf32>
    %180 = vector.shape_cast %179 : vector<5xf32> to vector<5x1xf32>
    %181 = tpu.reciprocal %180 {approx = true} : vector<5x1xf32> -> vector<5x1xf32>
    %182 = vector.broadcast %181 : vector<5x1xf32> to vector<5x5xf32>
    %183 = arith.mulf %178, %182 : vector<5x5xf32>
    %184 = arith.truncf %183 : vector<5x5xf32> to vector<5x5xbf16>
    %cst_53 = arith.constant dense<0.000000e+00> : vector<5x16xf32>
    %185 = tpu.matmul %184, %170, %cst_53 {dimension_numbers = #tpu.dot_dimension_numbers<[1], [0], [0], [1], [0, 0, 1, 1], [], []>} : vector<5x5xbf16>, vector<5x16xbf16>, vector<5x16xf32> -> vector<5x16xf32>
    %186 = vector.extract_strided_slice %122 {offsets = [0, 48], sizes = [5, 16], strides = [1, 1]} : vector<5x192xf32> to vector<5x16xf32>
    %187 = arith.truncf %186 : vector<5x16xf32> to vector<5x16xbf16>
    %188 = vector.extract_strided_slice %122 {offsets = [0, 112], sizes = [5, 16], strides = [1, 1]} : vector<5x192xf32> to vector<5x16xf32>
    %189 = arith.truncf %188 : vector<5x16xf32> to vector<5x16xbf16>
    %190 = vector.extract_strided_slice %122 {offsets = [0, 176], sizes = [5, 16], strides = [1, 1]} : vector<5x192xf32> to vector<5x16xf32>
    %191 = arith.truncf %190 : vector<5x16xf32> to vector<5x16xbf16>
    %cst_54 = arith.constant dense<0.000000e+00> : vector<5x5xf32>
    %192 = tpu.matmul %187, %189, %cst_54 {dimension_numbers = #tpu.dot_dimension_numbers<[1], [1], [0], [0], [0, 0, 1, 0], [], []>} : vector<5x16xbf16>, vector<5x16xbf16>, vector<5x5xf32> -> vector<5x5xf32>
    %cst_55 = arith.constant 2.500000e-01 : f32
    %193 = vector.broadcast %cst_55 : f32 to vector<5x5xf32>
    %194 = arith.mulf %192, %193 : vector<5x5xf32>
    %cst_56 = arith.constant dense<0xFF800000> : vector<5xf32>
    %195 = vector.multi_reduction <maximumf>, %194, %cst_56 [1] : vector<5x5xf32> to vector<5xf32>
    %196 = vector.shape_cast %195 : vector<5xf32> to vector<5x1xf32>
    %197 = vector.broadcast %196 : vector<5x1xf32> to vector<5x5xf32>
    %198 = arith.subf %194, %197 : vector<5x5xf32>
    %199 = math.exp %198 : vector<5x5xf32>
    %cst_57 = arith.constant dense<0.000000e+00> : vector<5xf32>
    %200 = vector.multi_reduction <add>, %199, %cst_57 [1] : vector<5x5xf32> to vector<5xf32>
    %201 = vector.shape_cast %200 : vector<5xf32> to vector<5x1xf32>
    %202 = tpu.reciprocal %201 {approx = true} : vector<5x1xf32> -> vector<5x1xf32>
    %203 = vector.broadcast %202 : vector<5x1xf32> to vector<5x5xf32>
    %204 = arith.mulf %199, %203 : vector<5x5xf32>
    %205 = arith.truncf %204 : vector<5x5xf32> to vector<5x5xbf16>
    %cst_58 = arith.constant dense<0.000000e+00> : vector<5x16xf32>
    %206 = tpu.matmul %205, %191, %cst_58 {dimension_numbers = #tpu.dot_dimension_numbers<[1], [0], [0], [1], [0, 0, 1, 1], [], []>} : vector<5x5xbf16>, vector<5x16xbf16>, vector<5x16xf32> -> vector<5x16xf32>
    %207 = tpu.concatenate %143, %164, %185, %206 in 1 : vector<5x16xf32>, vector<5x16xf32>, vector<5x16xf32>, vector<5x16xf32> -> vector<5x64xf32>
    %208 = tpu.concatenate %121, %207 in 0 : vector<5x64xf32>, vector<5x64xf32> -> vector<10x64xf32>
    %209 = arith.truncf %208 : vector<10x64xf32> to vector<10x64xbf16>
    %c0_59 = arith.constant 0 : index
    %c0_60 = arith.constant 0 : index
    %c0_61 = arith.constant 0 : index
    %210 = vector.load %arg9[%c0_59, %c0_60, %c0_61] : memref<1x64x64xbf16, #tpu.memory_space<vmem>>, vector<1x64x64xbf16>
    %211 = vector.shape_cast %210 : vector<1x64x64xbf16> to vector<64x64xbf16>
    %cst_62 = arith.constant dense<0.000000e+00> : vector<10x64xf32>
    %212 = tpu.matmul %209, %211, %cst_62 {dimension_numbers = #tpu.dot_dimension_numbers<[1], [0], [0], [1], [0, 0, 1, 1], [], []>} : vector<10x64xbf16>, vector<64x64xbf16>, vector<10x64xf32> -> vector<10x64xf32>
    %213 = arith.addf %3, %212 : vector<10x64xf32>
    %c0_63 = arith.constant 0 : index
    %c0_64 = arith.constant 0 : index
    %c0_65 = arith.constant 0 : index
    %214 = vector.load %arg10[%c0_63, %c0_64, %c0_65] : memref<1x1x64xf32, #tpu.memory_space<vmem>>, vector<1x1x64xf32>
    %215 = vector.shape_cast %214 : vector<1x1x64xf32> to vector<1x64xf32>
    %216 = vector.broadcast %215 : vector<1x64xf32> to vector<10x64xf32>
    %217 = arith.addf %213, %216 : vector<10x64xf32>
    %c0_66 = arith.constant 0 : index
    %c0_67 = arith.constant 0 : index
    %c0_68 = arith.constant 0 : index
    %218 = vector.load %arg11[%c0_66, %c0_67, %c0_68] : memref<1x1x64xf32, #tpu.memory_space<vmem>>, vector<1x1x64xf32>
    %219 = vector.shape_cast %218 : vector<1x1x64xf32> to vector<1x64xf32>
    %c0_69 = arith.constant 0 : index
    %c0_70 = arith.constant 0 : index
    %c0_71 = arith.constant 0 : index
    %220 = vector.load %arg12[%c0_69, %c0_70, %c0_71] : memref<1x1x64xf32, #tpu.memory_space<vmem>>, vector<1x1x64xf32>
    %221 = vector.shape_cast %220 : vector<1x1x64xf32> to vector<1x64xf32>
    %cst_72 = arith.constant dense<0.000000e+00> : vector<10xf32>
    %222 = vector.multi_reduction <add>, %217, %cst_72 [1] : vector<10x64xf32> to vector<10xf32>
    %223 = vector.shape_cast %222 : vector<10xf32> to vector<10x1xf32>
    %cst_73 = arith.constant 6.400000e+01 : f32
    %224 = vector.broadcast %cst_73 : f32 to vector<10x1xf32>
    %225 = arith.divf %223, %224 : vector<10x1xf32>
    %226 = vector.broadcast %225 : vector<10x1xf32> to vector<10x64xf32>
    %227 = arith.subf %217, %226 : vector<10x64xf32>
    %228 = arith.mulf %227, %227 : vector<10x64xf32>
    %cst_74 = arith.constant dense<0.000000e+00> : vector<10xf32>
    %229 = vector.multi_reduction <add>, %228, %cst_74 [1] : vector<10x64xf32> to vector<10xf32>
    %230 = vector.shape_cast %229 : vector<10xf32> to vector<10x1xf32>
    %cst_75 = arith.constant 6.400000e+01 : f32
    %231 = vector.broadcast %cst_75 : f32 to vector<10x1xf32>
    %232 = arith.divf %230, %231 : vector<10x1xf32>
    %cst_76 = arith.constant 9.99999997E-7 : f32
    %233 = vector.broadcast %cst_76 : f32 to vector<10x1xf32>
    %234 = arith.addf %232, %233 : vector<10x1xf32>
    %235 = math.rsqrt %234 : vector<10x1xf32>
    %236 = vector.broadcast %235 : vector<10x1xf32> to vector<10x64xf32>
    %237 = arith.mulf %227, %236 : vector<10x64xf32>
    %238 = vector.broadcast %219 : vector<1x64xf32> to vector<10x64xf32>
    %239 = arith.mulf %237, %238 : vector<10x64xf32>
    %240 = vector.broadcast %221 : vector<1x64xf32> to vector<10x64xf32>
    %241 = arith.addf %239, %240 : vector<10x64xf32>
    %242 = arith.truncf %241 : vector<10x64xf32> to vector<10x64xbf16>
    %c0_77 = arith.constant 0 : index
    %c0_78 = arith.constant 0 : index
    %c0_79 = arith.constant 0 : index
    %243 = vector.load %arg13[%c0_77, %c0_78, %c0_79] : memref<1x64x256xbf16, #tpu.memory_space<vmem>>, vector<1x64x256xbf16>
    %244 = vector.shape_cast %243 : vector<1x64x256xbf16> to vector<64x256xbf16>
    %cst_80 = arith.constant dense<0.000000e+00> : vector<10x256xf32>
    %245 = tpu.matmul %242, %244, %cst_80 {dimension_numbers = #tpu.dot_dimension_numbers<[1], [0], [0], [1], [0, 0, 1, 1], [], []>} : vector<10x64xbf16>, vector<64x256xbf16>, vector<10x256xf32> -> vector<10x256xf32>
    %c0_81 = arith.constant 0 : index
    %c0_82 = arith.constant 0 : index
    %c0_83 = arith.constant 0 : index
    %246 = vector.load %arg14[%c0_81, %c0_82, %c0_83] : memref<1x1x256xf32, #tpu.memory_space<vmem>>, vector<1x1x256xf32>
    %247 = vector.shape_cast %246 : vector<1x1x256xf32> to vector<1x256xf32>
    %248 = vector.broadcast %247 : vector<1x256xf32> to vector<10x256xf32>
    %249 = arith.addf %245, %248 : vector<10x256xf32>
    %cst_84 = arith.constant 5.000000e-01 : f32
    %250 = vector.broadcast %cst_84 : f32 to vector<10x256xf32>
    %251 = arith.mulf %250, %249 : vector<10x256xf32>
    %cst_85 = arith.constant 0.707106769 : f32
    %252 = vector.broadcast %cst_85 : f32 to vector<10x256xf32>
    %253 = arith.mulf %249, %252 : vector<10x256xf32>
    %254 = math.erf %253 : vector<10x256xf32>
    %cst_86 = arith.constant 1.000000e+00 : f32
    %255 = vector.broadcast %cst_86 : f32 to vector<10x256xf32>
    %256 = arith.addf %255, %254 : vector<10x256xf32>
    %257 = arith.mulf %251, %256 : vector<10x256xf32>
    %258 = arith.truncf %257 : vector<10x256xf32> to vector<10x256xbf16>
    %c0_87 = arith.constant 0 : index
    %c0_88 = arith.constant 0 : index
    %c0_89 = arith.constant 0 : index
    %259 = vector.load %arg15[%c0_87, %c0_88, %c0_89] : memref<1x256x64xbf16, #tpu.memory_space<vmem>>, vector<1x256x64xbf16>
    %260 = vector.shape_cast %259 : vector<1x256x64xbf16> to vector<256x64xbf16>
    %cst_90 = arith.constant dense<0.000000e+00> : vector<10x64xf32>
    %261 = tpu.matmul %258, %260, %cst_90 {dimension_numbers = #tpu.dot_dimension_numbers<[1], [0], [0], [1], [0, 0, 1, 1], [], []>} : vector<10x256xbf16>, vector<256x64xbf16>, vector<10x64xf32> -> vector<10x64xf32>
    %262 = arith.addf %217, %261 : vector<10x64xf32>
    %c0_91 = arith.constant 0 : index
    %c0_92 = arith.constant 0 : index
    %c0_93 = arith.constant 0 : index
    %263 = vector.load %arg16[%c0_91, %c0_92, %c0_93] : memref<1x1x64xf32, #tpu.memory_space<vmem>>, vector<1x1x64xf32>
    %264 = vector.shape_cast %263 : vector<1x1x64xf32> to vector<1x64xf32>
    %265 = vector.broadcast %264 : vector<1x64xf32> to vector<10x64xf32>
    %266 = arith.addf %262, %265 : vector<10x64xf32>
    %c0_94 = arith.constant 0 : index
    %c0_95 = arith.constant 0 : index
    %267 = vector.load %arg22[%c0_94, %c0_95] : memref<10x64xf32, #tpu.memory_space<vmem>>, vector<10x64xf32>
    tpu.vector_store %arg22[%c0_94, %c0_95], %266 {strides = array<i32>} : memref<10x64xf32, #tpu.memory_space<vmem>>, vector<10x64xf32>,
    %c1_i32 = arith.constant 1 : i32
    %268 = arith.cmpi eq, %arg0, %c1_i32 : i32
    %269 = arith.extui %268 : i1 to i32
    %c0_i32_96 = arith.constant 0 : i32
    %270 = arith.cmpi ne, %269, %c0_i32_96 : i32
    scf.if %270 {
      %271 = vector.extract_strided_slice %266 {offsets = [0, 0], sizes = [1, 64], strides = [1, 1]} : vector<10x64xf32> to vector<1x64xf32>
      %272 = vector.extract_strided_slice %266 {offsets = [5, 0], sizes = [1, 64], strides = [1, 1]} : vector<10x64xf32> to vector<1x64xf32>
      %273 = tpu.concatenate %271, %272 in 0 : vector<1x64xf32>, vector<1x64xf32> -> vector<2x64xf32>
      %c0_97 = arith.constant 0 : index
      %c0_98 = arith.constant 0 : index
      %274 = vector.load %arg17[%c0_97, %c0_98] : memref<1x64xf32, #tpu.memory_space<vmem>>, vector<1x64xf32>
      %c0_99 = arith.constant 0 : index
      %c0_100 = arith.constant 0 : index
      %275 = vector.load %arg18[%c0_99, %c0_100] : memref<1x64xf32, #tpu.memory_space<vmem>>, vector<1x64xf32>
      %cst_101 = arith.constant dense<0.000000e+00> : vector<2xf32>
      %276 = vector.multi_reduction <add>, %273, %cst_101 [1] : vector<2x64xf32> to vector<2xf32>
      %277 = vector.shape_cast %276 : vector<2xf32> to vector<2x1xf32>
      %cst_102 = arith.constant 6.400000e+01 : f32
      %278 = vector.broadcast %cst_102 : f32 to vector<2x1xf32>
      %279 = arith.divf %277, %278 : vector<2x1xf32>
      %280 = vector.broadcast %279 : vector<2x1xf32> to vector<2x64xf32>
      %281 = arith.subf %273, %280 : vector<2x64xf32>
      %282 = arith.mulf %281, %281 : vector<2x64xf32>
      %cst_103 = arith.constant dense<0.000000e+00> : vector<2xf32>
      %283 = vector.multi_reduction <add>, %282, %cst_103 [1] : vector<2x64xf32> to vector<2xf32>
      %284 = vector.shape_cast %283 : vector<2xf32> to vector<2x1xf32>
      %cst_104 = arith.constant 6.400000e+01 : f32
      %285 = vector.broadcast %cst_104 : f32 to vector<2x1xf32>
      %286 = arith.divf %284, %285 : vector<2x1xf32>
      %cst_105 = arith.constant 9.99999997E-7 : f32
      %287 = vector.broadcast %cst_105 : f32 to vector<2x1xf32>
      %288 = arith.addf %286, %287 : vector<2x1xf32>
      %289 = math.rsqrt %288 : vector<2x1xf32>
      %290 = vector.broadcast %289 : vector<2x1xf32> to vector<2x64xf32>
      %291 = arith.mulf %281, %290 : vector<2x64xf32>
      %292 = vector.broadcast %274 : vector<1x64xf32> to vector<2x64xf32>
      %293 = arith.mulf %291, %292 : vector<2x64xf32>
      %294 = vector.broadcast %275 : vector<1x64xf32> to vector<2x64xf32>
      %295 = arith.addf %293, %294 : vector<2x64xf32>
      %296 = arith.truncf %295 : vector<2x64xf32> to vector<2x64xbf16>
      %c0_106 = arith.constant 0 : index
      %c0_107 = arith.constant 0 : index
      %297 = vector.load %arg19[%c0_106, %c0_107] : memref<64x128xbf16, #tpu.memory_space<vmem>>, vector<64x128xbf16>
      %cst_108 = arith.constant dense<0.000000e+00> : vector<2x128xf32>
      %298 = tpu.matmul %296, %297, %cst_108 {dimension_numbers = #tpu.dot_dimension_numbers<[1], [0], [0], [1], [0, 0, 1, 1], [], []>} : vector<2x64xbf16>, vector<64x128xbf16>, vector<2x128xf32> -> vector<2x128xf32>
      %c0_109 = arith.constant 0 : index
      %c0_110 = arith.constant 0 : index
      %299 = vector.load %arg20[%c0_109, %c0_110] : memref<1x128xf32, #tpu.memory_space<vmem>>, vector<1x128xf32>
      %300 = vector.broadcast %299 : vector<1x128xf32> to vector<2x128xf32>
      %301 = arith.addf %298, %300 : vector<2x128xf32>
      %c0_111 = arith.constant 0 : index
      %c0_112 = arith.constant 0 : index
      %302 = vector.load %arg21[%c0_111, %c0_112] : memref<2x128xf32, #tpu.memory_space<vmem>>, vector<2x128xf32>
      tpu.vector_store %arg21[%c0_111, %c0_112], %301 {strides = array<i32>} : memref<2x128xf32, #tpu.memory_space<vmem>>, vector<2x128xf32>,
    } else {
    }
    return
  }
  func.func @transform_0(%arg0: i32) -> (i32, i32) {
    %c0_i32 = arith.constant 0 : i32
    %c0_i32_0 = arith.constant 0 : i32
    %c0_i32_1 = arith.constant 0 : i32
    return %c0_i32, %c0_i32_0 : i32, i32
  }
  func.func @transform_1(%arg0: i32) -> (i32, i32) {
    %c0_i32 = arith.constant 0 : i32
    %c0_i32_0 = arith.constant 0 : i32
    %c0_i32_1 = arith.constant 0 : i32
    return %c0_i32, %c0_i32_0 : i32, i32
  }
  func.func @transform_2(%arg0: i32) -> (i32, i32) {
    %c0_i32 = arith.constant 0 : i32
    %c0_i32_0 = arith.constant 0 : i32
    %c0_i32_1 = arith.constant 0 : i32
    return %c0_i32, %c0_i32_0 : i32, i32
  }
  func.func @transform_3(%arg0: i32) -> (i32, i32) {
    %c0_i32 = arith.constant 0 : i32
    %c0_i32_0 = arith.constant 0 : i32
    %c0_i32_1 = arith.constant 0 : i32
    return %c0_i32, %c0_i32_0 : i32, i32
  }
  func.func @transform_4(%arg0: i32) -> (i32, i32, i32) {
    %c0_i32 = arith.constant 0 : i32
    %c0_i32_0 = arith.constant 0 : i32
    %c0_i32_1 = arith.constant 0 : i32
    return %arg0, %c0_i32, %c0_i32_0 : i32, i32, i32
  }
  func.func @transform_5(%arg0: i32) -> (i32, i32, i32) {
    %c0_i32 = arith.constant 0 : i32
    %c0_i32_0 = arith.constant 0 : i32
    %c0_i32_1 = arith.constant 0 : i32
    return %arg0, %c0_i32, %c0_i32_0 : i32, i32, i32
  }
  func.func @transform_6(%arg0: i32) -> (i32, i32, i32) {
    %c0_i32 = arith.constant 0 : i32
    %c0_i32_0 = arith.constant 0 : i32
    %c0_i32_1 = arith.constant 0 : i32
    return %arg0, %c0_i32, %c0_i32_0 : i32, i32, i32
  }
  func.func @transform_7(%arg0: i32) -> (i32, i32, i32) {
    %c0_i32 = arith.constant 0 : i32
    %c0_i32_0 = arith.constant 0 : i32
    %c0_i32_1 = arith.constant 0 : i32
    return %arg0, %c0_i32, %c0_i32_0 : i32, i32, i32
  }
  func.func @transform_8(%arg0: i32) -> (i32, i32, i32) {
    %c0_i32 = arith.constant 0 : i32
    %c0_i32_0 = arith.constant 0 : i32
    %c0_i32_1 = arith.constant 0 : i32
    return %arg0, %c0_i32, %c0_i32_0 : i32, i32, i32
  }
  func.func @transform_9(%arg0: i32) -> (i32, i32, i32) {
    %c0_i32 = arith.constant 0 : i32
    %c0_i32_0 = arith.constant 0 : i32
    %c0_i32_1 = arith.constant 0 : i32
    return %arg0, %c0_i32, %c0_i32_0 : i32, i32, i32
  }
  func.func @transform_10(%arg0: i32) -> (i32, i32, i32) {
    %c0_i32 = arith.constant 0 : i32
    %c0_i32_0 = arith.constant 0 : i32
    %c0_i32_1 = arith.constant 0 : i32
    return %arg0, %c0_i32, %c0_i32_0 : i32, i32, i32
  }
  func.func @transform_11(%arg0: i32) -> (i32, i32, i32) {
    %c0_i32 = arith.constant 0 : i32
    %c0_i32_0 = arith.constant 0 : i32
    %c0_i32_1 = arith.constant 0 : i32
    return %arg0, %c0_i32, %c0_i32_0 : i32, i32, i32
  }
  func.func @transform_12(%arg0: i32) -> (i32, i32, i32) {
    %c0_i32 = arith.constant 0 : i32
    %c0_i32_0 = arith.constant 0 : i32
    %c0_i32_1 = arith.constant 0 : i32
    return %arg0, %c0_i32, %c0_i32_0 : i32, i32, i32
  }
  func.func @transform_13(%arg0: i32) -> (i32, i32, i32) {
    %c0_i32 = arith.constant 0 : i32
    %c0_i32_0 = arith.constant 0 : i32
    %c0_i32_1 = arith.constant 0 : i32
    return %arg0, %c0_i32, %c0_i32_0 : i32, i32, i32
  }
  func.func @transform_14(%arg0: i32) -> (i32, i32, i32) {
    %c0_i32 = arith.constant 0 : i32
    %c0_i32_0 = arith.constant 0 : i32
    %c0_i32_1 = arith.constant 0 : i32
    return %arg0, %c0_i32, %c0_i32_0 : i32, i32, i32
  }
  func.func @transform_15(%arg0: i32) -> (i32, i32, i32) {
    %c0_i32 = arith.constant 0 : i32
    %c0_i32_0 = arith.constant 0 : i32
    %c0_i32_1 = arith.constant 0 : i32
    return %arg0, %c0_i32, %c0_i32_0 : i32, i32, i32
  }
  func.func @transform_16(%arg0: i32) -> (i32, i32) {
    %c0_i32 = arith.constant 0 : i32
    %c0_i32_0 = arith.constant 0 : i32
    %c0_i32_1 = arith.constant 0 : i32
    return %c0_i32, %c0_i32_0 : i32, i32
  }
  func.func @transform_17(%arg0: i32) -> (i32, i32) {
    %c0_i32 = arith.constant 0 : i32
    %c0_i32_0 = arith.constant 0 : i32
    %c0_i32_1 = arith.constant 0 : i32
    return %c0_i32, %c0_i32_0 : i32, i32
  }
  func.func @transform_18(%arg0: i32) -> (i32, i32) {
    %c0_i32 = arith.constant 0 : i32
    %c0_i32_0 = arith.constant 0 : i32
    %c0_i32_1 = arith.constant 0 : i32
    return %c0_i32, %c0_i32_0 : i32, i32
  }
  func.func @transform_19(%arg0: i32) -> (i32, i32) {
    %c0_i32 = arith.constant 0 : i32
    %c0_i32_0 = arith.constant 0 : i32
    %c0_i32_1 = arith.constant 0 : i32
    return %c0_i32, %c0_i32_0 : i32, i32
  }
  func.func @transform_20(%arg0: i32) -> (i32, i32) {
    %c0_i32 = arith.constant 0 : i32
    %c0_i32_0 = arith.constant 0 : i32
    %c0_i32_1 = arith.constant 0 : i32
    return %c0_i32, %c0_i32_0 : i32, i32
  }
}

</mosaic_0001>

<llo_original>
// kernel: vit_forward.1
$region0: #{vit_forward.1}
  #allocation0 [shape = 'u32[]', space=smem, size = 0x4, offset = 0x4, fixed_abs, tag = 'smem constant byte address 0x4 - core index']
  #allocation1 [shape = 'u32[144,128]{1,0:T(1,128)}', space=vmem, size = 0x12000, scoped, tag = 'internal scratch']
  #allocation2 [shape = 'f32[10,64]{1,0:T(8,128)}', space=vmem, size = 0x2000, scoped, tag = 'scratch operand']
  %s0 = inlined_call_operand.vmem [shape: bf16[8,768], index: 0, kind: input, shape index: {}]
  %s1 = inlined_call_operand.vmem [shape: bf16[768,64], index: 1, kind: input, shape index: {}]
  %s2 = inlined_call_operand.vmem [shape: f32[1,64], index: 2, kind: input, shape index: {}]
  %s3 = inlined_call_operand.vmem [shape: f32[5,64], index: 3, kind: input, shape index: {}]
  %s4 = inlined_call_operand.vmem [shape: f32[2,1,64], index: 4, kind: input, shape index: {}]
  %s5 = inlined_call_operand.vmem [shape: f32[2,1,64], index: 5, kind: input, shape index: {}]
  %s6 = inlined_call_operand.vmem [shape: bf16[2,64,192], index: 6, kind: input, shape index: {}]
  %s7 = inlined_call_operand.vmem [shape: f32[2,1,192], index: 7, kind: input, shape index: {}]
  %s8 = inlined_call_operand.vmem [shape: bf16[2,64,64], index: 8, kind: input, shape index: {}]
  %s9 = inlined_call_operand.vmem [shape: f32[2,1,64], index: 9, kind: input, shape index: {}]
  %s10 = inlined_call_operand.vmem [shape: f32[2,1,64], index: 10, kind: input, shape index: {}]
  %s11 = inlined_call_operand.vmem [shape: f32[2,1,64], index: 11, kind: input, shape index: {}]
  %s12 = inlined_call_operand.vmem [shape: bf16[2,64,256], index: 12, kind: input, shape index: {}]
  %s13 = inlined_call_operand.vmem [shape: f32[2,1,256], index: 13, kind: input, shape index: {}]
  %s14 = inlined_call_operand.vmem [shape: bf16[2,256,64], index: 14, kind: input, shape index: {}]
  %s15 = inlined_call_operand.vmem [shape: f32[2,1,64], index: 15, kind: input, shape index: {}]
  %s16 = inlined_call_operand.vmem [shape: f32[1,64], index: 16, kind: input, shape index: {}]
  %s17 = inlined_call_operand.vmem [shape: f32[1,64], index: 17, kind: input, shape index: {}]
  %s18 = inlined_call_operand.vmem [shape: bf16[64,128], index: 18, kind: input, shape index: {}]
  %s19 = inlined_call_operand.vmem [shape: f32[1,128], index: 19, kind: input, shape index: {}]
  %s20 = inlined_call_operand.hbm [shape: f32[2,128], index: 20, kind: output, shape index: {}]
  %s21 = sld [smem:[#allocation0]]
  $region121: #{vit_forward.1} parent=0
    _
  %s23 = ssub.s32 1, %s21
  %s24 = scalar_select 0, %s23, %s21
  $region1: #{vit_forward.1} parent=0
    #allocation3 [shape = 'u8[1024]{0}', space=vmem, size = 0x400, scoped, tag = 'output window, operand 0, single buffered']
    #allocation4 [shape = 's32[2]{0}', space=sflag, size = 0x8, scoped, tag = 'scoped memory for vit_forward.1']
    %25 = vsyncpa [#allocation4], 0
    loop: start=0, step=1, limit=4
    $region2: #{vit_forward.1} parent=1 // loop_pre_header
      _
    $region3: #{vit_forward.1} parent=1 // loop_header
      %s27 = sphi 0, %s31
      %p28 = scmp.ge.s32.totalorder %s27, 4
      %s35 = sphi 0, %s35
      %s37 = sphi 0, %s35
      %s38 = sphi 0, %s37
      %s52 = sphi 0, %s38
      %s56 = sphi 0, %s56
      %s58 = sphi 0, %s56
      %s59 = sphi 0, %s58
      %s73 = sphi 0, %s59
      %s77 = sphi 0, %s77
      %s79 = sphi 0, %s77
      %s80 = sphi 0, %s79
      %s94 = sphi 0, %s80
      %s98 = sphi 0, %s98
      %s100 = sphi 0, %s98
      %s101 = sphi 0, %s100
      %s115 = sphi 0, %s101
      %s121 = sphi 0, %s123
      %s124 = sphi 0, %s121
      %s125 = sphi 0, %s124
      %s141 = sphi 0, %s125
      %s147 = sphi 0, %s149
      %s150 = sphi 0, %s147
      %s151 = sphi 0, %s150
      %s167 = sphi 0, %s151
      %s173 = sphi 0, %s175
      %s176 = sphi 0, %s173
      %s177 = sphi 0, %s176
      %s193 = sphi 0, %s177
      %s199 = sphi 0, %s201
      %s202 = sphi 0, %s199
      %s203 = sphi 0, %s202
      %s219 = sphi 0, %s203
      %s225 = sphi 0, %s227
      %s228 = sphi 0, %s225
      %s229 = sphi 0, %s228
      %s245 = sphi 0, %s229
      %s251 = sphi 0, %s253
      %s254 = sphi 0, %s251
      %s255 = sphi 0, %s254
      %s271 = sphi 0, %s255
      %s277 = sphi 0, %s279
      %s280 = sphi 0, %s277
      %s281 = sphi 0, %s280
      %s297 = sphi 0, %s281
      %s303 = sphi 0, %s305
      %s306 = sphi 0, %s303
      %s307 = sphi 0, %s306
      %s323 = sphi 0, %s307
      %s329 = sphi 0, %s331
      %s332 = sphi 0, %s329
      %s333 = sphi 0, %s332
      %s349 = sphi 0, %s333
      %s355 = sphi 0, %s357
      %s358 = sphi 0, %s355
      %s359 = sphi 0, %s358
      %s375 = sphi 0, %s359
      %s381 = sphi 0, %s383
      %s384 = sphi 0, %s381
      %s385 = sphi 0, %s384
      %s401 = sphi 0, %s385
      %s407 = sphi 0, %s409
      %s410 = sphi 0, %s407
      %s411 = sphi 0, %s410
      %s427 = sphi 0, %s411
      %s431 = sphi 0, %s431
      %s433 = sphi 0, %s431
      %s434 = sphi 0, %s433
      %s448 = sphi 0, %s434
      %s452 = sphi 0, %s452
      %s454 = sphi 0, %s452
      %s455 = sphi 0, %s454
      %s469 = sphi 0, %s455
      %s473 = sphi 0, %s473
      %s475 = sphi 0, %s473
      %s476 = sphi 0, %s475
      %s490 = sphi 0, %s476
      %s494 = sphi 0, %s494
      %s496 = sphi 0, %s494
      %s497 = sphi 0, %s496
      %s511 = sphi 0, %s497
      %s515 = sphi 0, %s515
      %s517 = sphi 0, %s515
      %s518 = sphi 0, %s517
      %s532 = sphi 0, %s518
    $region4: #{vit_forward.1} parent=1 // loop_header_branch
      %30 = sbr.rel (%p28) target = $region8
    $region5: #{vit_forward.1} parent=1 // loop_body
      %s32 = ssub.s32 %s27, 1
      %s33 = ssub.s32 %s27, 2
      %s34 = sadd.s32 %s27, 1
      %s36 = sadd.s32 %s35, 1
      %p39 = scmp.eq.s32.totalorder %s27, 1
      %p40 = scmp.ne.s32.totalorder %s35, %s37
      %p41 = scmp.eq.s32.totalorder %s27, 0
      %p42 = por %p40, %p41
      %p43 = scmp.ne.s32.totalorder %s35, %s37
      %p44 = scmp.eq.s32.totalorder %s32, 1
      %p45 = por %p43, %p44
      %p46 = scmp.ne.s32.totalorder %s37, %s38
      %p47 = scmp.eq.s32.totalorder %s32, 0
      %p48 = por %p46, %p47
      %p49 = scmp.ne.s32.totalorder %s37, %s38
      %p50 = scmp.eq.s32.totalorder %s33, 1
      %p51 = por %p49, %p50
      %p53 = scmp.ne.s32.totalorder %s38, %s52
      %p54 = scmp.eq.s32.totalorder %s33, 0
      %p55 = por %p53, %p54
      %s57 = sadd.s32 %s56, 1
      %p60 = scmp.eq.s32.totalorder %s27, 1
      %p61 = scmp.ne.s32.totalorder %s56, %s58
      %p62 = scmp.eq.s32.totalorder %s27, 0
      %p63 = por %p61, %p62
      %p64 = scmp.ne.s32.totalorder %s56, %s58
      %p65 = scmp.eq.s32.totalorder %s32, 1
      %p66 = por %p64, %p65
      %p67 = scmp.ne.s32.totalorder %s58, %s59
      %p68 = scmp.eq.s32.totalorder %s32, 0
      %p69 = por %p67, %p68
      %p70 = scmp.ne.s32.totalorder %s58, %s59
      %p71 = scmp.eq.s32.totalorder %s33, 1
      %p72 = por %p70, %p71
      %p74 = scmp.ne.s32.totalorder %s59, %s73
      %p75 = scmp.eq.s32.totalorder %s33, 0
      %p76 = por %p74, %p75
      %s78 = sadd.s32 %s77, 1
      %p81 = scmp.eq.s32.totalorder %s27, 1
      %p82 = scmp.ne.s32.totalorder %s77, %s79
      %p83 = scmp.eq.s32.totalorder %s27, 0
      %p84 = por %p82, %p83
      %p85 = scmp.ne.s32.totalorder %s77, %s79
      %p86 = scmp.eq.s32.totalorder %s32, 1
      %p87 = por %p85, %p86
      %p88 = scmp.ne.s32.totalorder %s79, %s80
      %p89 = scmp.eq.s32.totalorder %s32, 0
      %p90 = por %p88, %p89
      %p91 = scmp.ne.s32.totalorder %s79, %s80
      %p92 = scmp.eq.s32.totalorder %s33, 1
      %p93 = por %p91, %p92
      %p95 = scmp.ne.s32.totalorder %s80, %s94
      %p96 = scmp.eq.s32.totalorder %s33, 0
      %p97 = por %p95, %p96
      %s99 = sadd.s32 %s98, 1
      %p102 = scmp.eq.s32.totalorder %s27, 1
      %p103 = scmp.ne.s32.totalorder %s98, %s100
      %p104 = scmp.eq.s32.totalorder %s27, 0
      %p105 = por %p103, %p104
      %p106 = scmp.ne.s32.totalorder %s98, %s100
      %p107 = scmp.eq.s32.totalorder %s32, 1
      %p108 = por %p106, %p107
      %p109 = scmp.ne.s32.totalorder %s100, %s101
      %p110 = scmp.eq.s32.totalorder %s32, 0
      %p111 = por %p109, %p110
      %p112 = scmp.ne.s32.totalorder %s100, %s101
      %p113 = scmp.eq.s32.totalorder %s33, 1
      %p114 = por %p112, %p113
      %p116 = scmp.ne.s32.totalorder %s101, %s115
      %p117 = scmp.eq.s32.totalorder %s33, 0
      %p118 = por %p116, %p117
      %s119 = ssub.s32 %s27, %s34
      %p120 = scmp.eq.s32.totalorder %s119, 0
      %s122 = sadd.s32 %s121, 1
      %s123 = scalar_select %p120, %s121, %s122
      %p126 = pneg %p120
      %p127 = scmp.eq.s32.totalorder %s27, 1
      %p128 = por %p126, %p127
      %p129 = scmp.ne.s32.totalorder %s121, %s124
      %p130 = scmp.eq.s32.totalorder %s27, 0
      %p131 = por %p129, %p130
      %p132 = scmp.ne.s32.totalorder %s121, %s124
      %p133 = scmp.eq.s32.totalorder %s32, 1
      %p134 = por %p132, %p133
      %p135 = scmp.ne.s32.totalorder %s124, %s125
      %p136 = scmp.eq.s32.totalorder %s32, 0
      %p137 = por %p135, %p136
      %p138 = scmp.ne.s32.totalorder %s124, %s125
      %p139 = scmp.eq.s32.totalorder %s33, 1
      %p140 = por %p138, %p139
      %p142 = scmp.ne.s32.totalorder %s125, %s141
      %p143 = scmp.eq.s32.totalorder %s33, 0
      %p144 = por %p142, %p143
      %s145 = ssub.s32 %s27, %s34
      %p146 = scmp.eq.s32.totalorder %s145, 0
      %s148 = sadd.s32 %s147, 1
      %s149 = scalar_select %p146, %s147, %s148
      %p152 = pneg %p146
      %p153 = scmp.eq.s32.totalorder %s27, 1
      %p154 = por %p152, %p153
      %p155 = scmp.ne.s32.totalorder %s147, %s150
      %p156 = scmp.eq.s32.totalorder %s27, 0
      %p157 = por %p155, %p156
      %p158 = scmp.ne.s32.totalorder %s147, %s150
      %p159 = scmp.eq.s32.totalorder %s32, 1
      %p160 = por %p158, %p159
      %p161 = scmp.ne.s32.totalorder %s150, %s151
      %p162 = scmp.eq.s32.totalorder %s32, 0
      %p163 = por %p161, %p162
      %p164 = scmp.ne.s32.totalorder %s150, %s151
      %p165 = scmp.eq.s32.totalorder %s33, 1
      %p166 = por %p164, %p165
      %p168 = scmp.ne.s32.totalorder %s151, %s167
      %p169 = scmp.eq.s32.totalorder %s33, 0
      %p170 = por %p168, %p169
      %s171 = ssub.s32 %s27, %s34
      %p172 = scmp.eq.s32.totalorder %s171, 0
      %s174 = sadd.s32 %s173, 1
      %s175 = scalar_select %p172, %s173, %s174
      %p178 = pneg %p172
      %p179 = scmp.eq.s32.totalorder %s27, 1
      %p180 = por %p178, %p179
      %p181 = scmp.ne.s32.totalorder %s173, %s176
      %p182 = scmp.eq.s32.totalorder %s27, 0
      %p183 = por %p181, %p182
      %p184 = scmp.ne.s32.totalorder %s173, %s176
      %p185 = scmp.eq.s32.totalorder %s32, 1
      %p186 = por %p184, %p185
      %p187 = scmp.ne.s32.totalorder %s176, %s177
      %p188 = scmp.eq.s32.totalorder %s32, 0
      %p189 = por %p187, %p188
      %p190 = scmp.ne.s32.totalorder %s176, %s177
      %p191 = scmp.eq.s32.totalorder %s33, 1
      %p192 = por %p190, %p191
      %p194 = scmp.ne.s32.totalorder %s177, %s193
      %p195 = scmp.eq.s32.totalorder %s33, 0
      %p196 = por %p194, %p195
      %s197 = ssub.s32 %s27, %s34
      %p198 = scmp.eq.s32.totalorder %s197, 0
      %s200 = sadd.s32 %s199, 1
      %s201 = scalar_select %p198, %s199, %s200
      %p204 = pneg %p198
      %p205 = scmp.eq.s32.totalorder %s27, 1
      %p206 = por %p204, %p205
      %p207 = scmp.ne.s32.totalorder %s199, %s202
      %p208 = scmp.eq.s32.totalorder %s27, 0
      %p209 = por %p207, %p208
      %p210 = scmp.ne.s32.totalorder %s199, %s202
      %p211 = scmp.eq.s32.totalorder %s32, 1
      %p212 = por %p210, %p211
      %p213 = scmp.ne.s32.totalorder %s202, %s203
      %p214 = scmp.eq.s32.totalorder %s32, 0
      %p215 = por %p213, %p214
      %p216 = scmp.ne.s32.totalorder %s202, %s203
      %p217 = scmp.eq.s32.totalorder %s33, 1
      %p218 = por %p216, %p217
      %p220 = scmp.ne.s32.totalorder %s203, %s219
      %p221 = scmp.eq.s32.totalorder %s33, 0
      %p222 = por %p220, %p221
      %s223 = ssub.s32 %s27, %s34
      %p224 = scmp.eq.s32.totalorder %s223, 0
      %s226 = sadd.s32 %s225, 1
      %s227 = scalar_select %p224, %s225, %s226
      %p230 = pneg %p224
      %p231 = scmp.eq.s32.totalorder %s27, 1
      %p232 = por %p230, %p231
      %p233 = scmp.ne.s32.totalorder %s225, %s228
      %p234 = scmp.eq.s32.totalorder %s27, 0
      %p235 = por %p233, %p234
      %p236 = scmp.ne.s32.totalorder %s225, %s228
      %p237 = scmp.eq.s32.totalorder %s32, 1
      %p238 = por %p236, %p237
      %p239 = scmp.ne.s32.totalorder %s228, %s229
      %p240 = scmp.eq.s32.totalorder %s32, 0
      %p241 = por %p239, %p240
      %p242 = scmp.ne.s32.totalorder %s228, %s229
      %p243 = scmp.eq.s32.totalorder %s33, 1
      %p244 = por %p242, %p243
      %p246 = scmp.ne.s32.totalorder %s229, %s245
      %p247 = scmp.eq.s32.totalorder %s33, 0
      %p248 = por %p246, %p247
      %s249 = ssub.s32 %s27, %s34
      %p250 = scmp.eq.s32.totalorder %s249, 0
      %s252 = sadd.s32 %s251, 1
      %s253 = scalar_select %p250, %s251, %s252
      %p256 = pneg %p250
      %p257 = scmp.eq.s32.totalorder %s27, 1
      %p258 = por %p256, %p257
      %p259 = scmp.ne.s32.totalorder %s251, %s254
      %p260 = scmp.eq.s32.totalorder %s27, 0
      %p261 = por %p259, %p260
      %p262 = scmp.ne.s32.totalorder %s251, %s254
      %p263 = scmp.eq.s32.totalorder %s32, 1
      %p264 = por %p262, %p263
      %p265 = scmp.ne.s32.totalorder %s254, %s255
      %p266 = scmp.eq.s32.totalorder %s32, 0
      %p267 = por %p265, %p266
      %p268 = scmp.ne.s32.totalorder %s254, %s255
      %p269 = scmp.eq.s32.totalorder %s33, 1
      %p270 = por %p268, %p269
      %p272 = scmp.ne.s32.totalorder %s255, %s271
      %p273 = scmp.eq.s32.totalorder %s33, 0
      %p274 = por %p272, %p273
      %s275 = ssub.s32 %s27, %s34
      %p276 = scmp.eq.s32.totalorder %s275, 0
      %s278 = sadd.s32 %s277, 1
      %s279 = scalar_select %p276, %s277, %s278
      %p282 = pneg %p276
      %p283 = scmp.eq.s32.totalorder %s27, 1
      %p284 = por %p282, %p283
      %p285 = scmp.ne.s32.totalorder %s277, %s280
      %p286 = scmp.eq.s32.totalorder %s27, 0
      %p287 = por %p285, %p286
      %p288 = scmp.ne.s32.totalorder %s277, %s280
      %p289 = scmp.eq.s32.totalorder %s32, 1
      %p290 = por %p288, %p289
      %p291 = scmp.ne.s32.totalorder %s280, %s281
      %p292 = scmp.eq.s32.totalorder %s32, 0
      %p293 = por %p291, %p292
      %p294 = scmp.ne.s32.totalorder %s280, %s281
      %p295 = scmp.eq.s32.totalorder %s33, 1
      %p296 = por %p294, %p295
      %p298 = scmp.ne.s32.totalorder %s281, %s297
      %p299 = scmp.eq.s32.totalorder %s33, 0
      %p300 = por %p298, %p299
      %s301 = ssub.s32 %s27, %s34
      %p302 = scmp.eq.s32.totalorder %s301, 0
      %s304 = sadd.s32 %s303, 1
      %s305 = scalar_select %p302, %s303, %s304
      %p308 = pneg %p302
      %p309 = scmp.eq.s32.totalorder %s27, 1
      %p310 = por %p308, %p309
      %p311 = scmp.ne.s32.totalorder %s303, %s306
      %p312 = scmp.eq.s32.totalorder %s27, 0
      %p313 = por %p311, %p312
      %p314 = scmp.ne.s32.totalorder %s303, %s306
      %p315 = scmp.eq.s32.totalorder %s32, 1
      %p316 = por %p314, %p315
      %p317 = scmp.ne.s32.totalorder %s306, %s307
      %p318 = scmp.eq.s32.totalorder %s32, 0
      %p319 = por %p317, %p318
      %p320 = scmp.ne.s32.totalorder %s306, %s307
      %p321 = scmp.eq.s32.totalorder %s33, 1
      %p322 = por %p320, %p321
      %p324 = scmp.ne.s32.totalorder %s307, %s323
      %p325 = scmp.eq.s32.totalorder %s33, 0
      %p326 = por %p324, %p325
      %s327 = ssub.s32 %s27, %s34
      %p328 = scmp.eq.s32.totalorder %s327, 0
      %s330 = sadd.s32 %s329, 1
      %s331 = scalar_select %p328, %s329, %s330
      %p334 = pneg %p328
      %p335 = scmp.eq.s32.totalorder %s27, 1
      %p336 = por %p334, %p335
      %p337 = scmp.ne.s32.totalorder %s329, %s332
      %p338 = scmp.eq.s32.totalorder %s27, 0
      %p339 = por %p337, %p338
      %p340 = scmp.ne.s32.totalorder %s329, %s332
      %p341 = scmp.eq.s32.totalorder %s32, 1
      %p342 = por %p340, %p341
      %p343 = scmp.ne.s32.totalorder %s332, %s333
      %p344 = scmp.eq.s32.totalorder %s32, 0
      %p345 = por %p343, %p344
      %p346 = scmp.ne.s32.totalorder %s332, %s333
      %p347 = scmp.eq.s32.totalorder %s33, 1
      %p348 = por %p346, %p347
      %p350 = scmp.ne.s32.totalorder %s333, %s349
      %p351 = scmp.eq.s32.totalorder %s33, 0
      %p352 = por %p350, %p351
      %s353 = ssub.s32 %s27, %s34
      %p354 = scmp.eq.s32.totalorder %s353, 0
      %s356 = sadd.s32 %s355, 1
      %s357 = scalar_select %p354, %s355, %s356
      %p360 = pneg %p354
      %p361 = scmp.eq.s32.totalorder %s27, 1
      %p362 = por %p360, %p361
      %p363 = scmp.ne.s32.totalorder %s355, %s358
      %p364 = scmp.eq.s32.totalorder %s27, 0
      %p365 = por %p363, %p364
      %p366 = scmp.ne.s32.totalorder %s355, %s358
      %p367 = scmp.eq.s32.totalorder %s32, 1
      %p368 = por %p366, %p367
      %p369 = scmp.ne.s32.totalorder %s358, %s359
      %p370 = scmp.eq.s32.totalorder %s32, 0
      %p371 = por %p369, %p370
      %p372 = scmp.ne.s32.totalorder %s358, %s359
      %p373 = scmp.eq.s32.totalorder %s33, 1
      %p374 = por %p372, %p373
      %p376 = scmp.ne.s32.totalorder %s359, %s375
      %p377 = scmp.eq.s32.totalorder %s33, 0
      %p378 = por %p376, %p377
      %s379 = ssub.s32 %s27, %s34
      %p380 = scmp.eq.s32.totalorder %s379, 0
      %s382 = sadd.s32 %s381, 1
      %s383 = scalar_select %p380, %s381, %s382
      %p386 = pneg %p380
      %p387 = scmp.eq.s32.totalorder %s27, 1
      %p388 = por %p386, %p387
      %p389 = scmp.ne.s32.totalorder %s381, %s384
      %p390 = scmp.eq.s32.totalorder %s27, 0
      %p391 = por %p389, %p390
      %p392 = scmp.ne.s32.totalorder %s381, %s384
      %p393 = scmp.eq.s32.totalorder %s32, 1
      %p394 = por %p392, %p393
      %p395 = scmp.ne.s32.totalorder %s384, %s385
      %p396 = scmp.eq.s32.totalorder %s32, 0
      %p397 = por %p395, %p396
      %p398 = scmp.ne.s32.totalorder %s384, %s385
      %p399 = scmp.eq.s32.totalorder %s33, 1
      %p400 = por %p398, %p399
      %p402 = scmp.ne.s32.totalorder %s385, %s401
      %p403 = scmp.eq.s32.totalorder %s33, 0
      %p404 = por %p402, %p403
      %s405 = ssub.s32 %s27, %s34
      %p406 = scmp.eq.s32.totalorder %s405, 0
      %s408 = sadd.s32 %s407, 1
      %s409 = scalar_select %p406, %s407, %s408
      %p412 = pneg %p406
      %p413 = scmp.eq.s32.totalorder %s27, 1
      %p414 = por %p412, %p413
      %p415 = scmp.ne.s32.totalorder %s407, %s410
      %p416 = scmp.eq.s32.totalorder %s27, 0
      %p417 = por %p415, %p416
      %p418 = scmp.ne.s32.totalorder %s407, %s410
      %p419 = scmp.eq.s32.totalorder %s32, 1
      %p420 = por %p418, %p419
      %p421 = scmp.ne.s32.totalorder %s410, %s411
      %p422 = scmp.eq.s32.totalorder %s32, 0
      %p423 = por %p421, %p422
      %p424 = scmp.ne.s32.totalorder %s410, %s411
      %p425 = scmp.eq.s32.totalorder %s33, 1
      %p426 = por %p424, %p425
      %p428 = scmp.ne.s32.totalorder %s411, %s427
      %p429 = scmp.eq.s32.totalorder %s33, 0
      %p430 = por %p428, %p429
      %s432 = sadd.s32 %s431, 1
      %p435 = scmp.eq.s32.totalorder %s27, 1
      %p436 = scmp.ne.s32.totalorder %s431, %s433
      %p437 = scmp.eq.s32.totalorder %s27, 0
      %p438 = por %p436, %p437
      %p439 = scmp.ne.s32.totalorder %s431, %s433
      %p440 = scmp.eq.s32.totalorder %s32, 1
      %p441 = por %p439, %p440
      %p442 = scmp.ne.s32.totalorder %s433, %s434
      %p443 = scmp.eq.s32.totalorder %s32, 0
      %p444 = por %p442, %p443
      %p445 = scmp.ne.s32.totalorder %s433, %s434
      %p446 = scmp.eq.s32.totalorder %s33, 1
      %p447 = por %p445, %p446
      %p449 = scmp.ne.s32.totalorder %s434, %s448
      %p450 = scmp.eq.s32.totalorder %s33, 0
      %p451 = por %p449, %p450
      %s453 = sadd.s32 %s452, 1
      %p456 = scmp.eq.s32.totalorder %s27, 1
      %p457 = scmp.ne.s32.totalorder %s452, %s454
      %p458 = scmp.eq.s32.totalorder %s27, 0
      %p459 = por %p457, %p458
      %p460 = scmp.ne.s32.totalorder %s452, %s454
      %p461 = scmp.eq.s32.totalorder %s32, 1
      %p462 = por %p460, %p461
      %p463 = scmp.ne.s32.totalorder %s454, %s455
      %p464 = scmp.eq.s32.totalorder %s32, 0
      %p465 = por %p463, %p464
      %p466 = scmp.ne.s32.totalorder %s454, %s455
      %p467 = scmp.eq.s32.totalorder %s33, 1
      %p468 = por %p466, %p467
      %p470 = scmp.ne.s32.totalorder %s455, %s469
      %p471 = scmp.eq.s32.totalorder %s33, 0
      %p472 = por %p470, %p471
      %s474 = sadd.s32 %s473, 1
      %p477 = scmp.eq.s32.totalorder %s27, 1
      %p478 = scmp.ne.s32.totalorder %s473, %s475
      %p479 = scmp.eq.s32.totalorder %s27, 0
      %p480 = por %p478, %p479
      %p481 = scmp.ne.s32.totalorder %s473, %s475
      %p482 = scmp.eq.s32.totalorder %s32, 1
      %p483 = por %p481, %p482
      %p484 = scmp.ne.s32.totalorder %s475, %s476
      %p485 = scmp.eq.s32.totalorder %s32, 0
      %p486 = por %p484, %p485
      %p487 = scmp.ne.s32.totalorder %s475, %s476
      %p488 = scmp.eq.s32.totalorder %s33, 1
      %p489 = por %p487, %p488
      %p491 = scmp.ne.s32.totalorder %s476, %s490
      %p492 = scmp.eq.s32.totalorder %s33, 0
      %p493 = por %p491, %p492
      %s495 = sadd.s32 %s494, 1
      %p498 = scmp.eq.s32.totalorder %s27, 1
      %p499 = scmp.ne.s32.totalorder %s494, %s496
      %p500 = scmp.eq.s32.totalorder %s27, 0
      %p501 = por %p499, %p500
      %p502 = scmp.ne.s32.totalorder %s494, %s496
      %p503 = scmp.eq.s32.totalorder %s32, 1
      %p504 = por %p502, %p503
      %p505 = scmp.ne.s32.totalorder %s496, %s497
      %p506 = scmp.eq.s32.totalorder %s32, 0
      %p507 = por %p505, %p506
      %p508 = scmp.ne.s32.totalorder %s496, %s497
      %p509 = scmp.eq.s32.totalorder %s33, 1
      %p510 = por %p508, %p509
      %p512 = scmp.ne.s32.totalorder %s497, %s511
      %p513 = scmp.eq.s32.totalorder %s33, 0
      %p514 = por %p512, %p513
      %s516 = sadd.s32 %s515, 1
      %p519 = scmp.eq.s32.totalorder %s27, 1
      %p520 = scmp.ne.s32.totalorder %s515, %s517
      %p521 = scmp.eq.s32.totalorder %s27, 0
      %p522 = por %p520, %p521
      %p523 = scmp.ne.s32.totalorder %s515, %s517
      %p524 = scmp.eq.s32.totalorder %s32, 1
      %p525 = por %p523, %p524
      %p526 = scmp.ne.s32.totalorder %s517, %s518
      %p527 = scmp.eq.s32.totalorder %s32, 0
      %p528 = por %p526, %p527
      %p529 = scmp.ne.s32.totalorder %s517, %s518
      %p530 = scmp.eq.s32.totalorder %s33, 1
      %p531 = por %p529, %p530
      %p533 = scmp.ne.s32.totalorder %s518, %s532
      %p534 = scmp.eq.s32.totalorder %s33, 0
      %p535 = por %p533, %p534
      %p536 = scmp.le.s32.totalorder 1, %s27
      %p537 = scmp.lt.s32.totalorder %s27, 3
      %p538 = pnand %p536, %p537
      %p539 = pneg %p538
      // Predicated region
      $region9: #{vit_forward.1} parent=5 // pred_check
        _
      $region10: #{vit_forward.1} parent=5 // pred_check_branch
        %541 = sbr.rel (%p538) target = $region12
      $region11: #{vit_forward.1} parent=5 // pred_region
        %s542 = ssub.s32 %s27, 1
        // Predicated region
        $region13: #{vit_forward.1} parent=11 // pred_check
          %p543 = pneg %p48
        $region14: #{vit_forward.1} parent=11 // pred_check_branch
          %545 = sbr.rel (%p543) target = $region16
        $region15: #{vit_forward.1} parent=11 // pred_region
          _
        $region16: #{vit_forward.1} parent=11 // pred_fallthru
          _
        // Predicated region
        $region17: #{vit_forward.1} parent=11 // pred_check
          %p546 = pneg %p69
        $region18: #{vit_forward.1} parent=11 // pred_check_branch
          %548 = sbr.rel (%p546) target = $region20
        $region19: #{vit_forward.1} parent=11 // pred_region
          _
        $region20: #{vit_forward.1} parent=11 // pred_fallthru
          _
        // Predicated region
        $region21: #{vit_forward.1} parent=11 // pred_check
          %p549 = pneg %p90
        $region22: #{vit_forward.1} parent=11 // pred_check_branch
          %551 = sbr.rel (%p549) target = $region24
        $region23: #{vit_forward.1} parent=11 // pred_region
          _
        $region24: #{vit_forward.1} parent=11 // pred_fallthru
          _
        // Predicated region
        $region25: #{vit_forward.1} parent=11 // pred_check
          %p552 = pneg %p111
        $region26: #{vit_forward.1} parent=11 // pred_check_branch
          %554 = sbr.rel (%p552) target = $region28
        $region27: #{vit_forward.1} parent=11 // pred_region
          _
        $region28: #{vit_forward.1} parent=11 // pred_fallthru
          _
        // Predicated region
        $region29: #{vit_forward.1} parent=11 // pred_check
          %p555 = pneg %p444
        $region30: #{vit_forward.1} parent=11 // pred_check_branch
          %557 = sbr.rel (%p555) target = $region32
        $region31: #{vit_forward.1} parent=11 // pred_region
          _
        $region32: #{vit_forward.1} parent=11 // pred_fallthru
          _
        // Predicated region
        $region33: #{vit_forward.1} parent=11 // pred_check
          %p558 = pneg %p465
        $region34: #{vit_forward.1} parent=11 // pred_check_branch
          %560 = sbr.rel (%p558) target = $region36
        $region35: #{vit_forward.1} parent=11 // pred_region
          _
        $region36: #{vit_forward.1} parent=11 // pred_fallthru
          _
        // Predicated region
        $region37: #{vit_forward.1} parent=11 // pred_check
          %p561 = pneg %p486
        $region38: #{vit_forward.1} parent=11 // pred_check_branch
          %563 = sbr.rel (%p561) target = $region40
        $region39: #{vit_forward.1} parent=11 // pred_region
          _
        $region40: #{vit_forward.1} parent=11 // pred_fallthru
          _
        // Predicated region
        $region41: #{vit_forward.1} parent=11 // pred_check
          %p564 = pneg %p507
        $region42: #{vit_forward.1} parent=11 // pred_check_branch
          %566 = sbr.rel (%p564) target = $region44
        $region43: #{vit_forward.1} parent=11 // pred_region
          _
        $region44: #{vit_forward.1} parent=11 // pred_fallthru
          _
      $region12: #{vit_forward.1} parent=5 // pred_fallthru
        _
      %p567 = scmp.lt.s32.totalorder %s27, 2
      // Predicated region
      $region45: #{vit_forward.1} parent=5 // pred_check
        %p568 = pneg %p567
      $region46: #{vit_forward.1} parent=5 // pred_check_branch
        %570 = sbr.rel (%p568) target = $region48
      $region47: #{vit_forward.1} parent=5 // pred_region
        // Predicated region
        $region49: #{vit_forward.1} parent=47 // pred_check
          %p571 = pneg %p131
        $region50: #{vit_forward.1} parent=47 // pred_check_branch
          %573 = sbr.rel (%p571) target = $region52
        $region51: #{vit_forward.1} parent=47 // pred_region
          %p574 = scmp.lt.s32.totalorder %s27, 1
          %s575 = scalar_select %p574, %s27, 1
          %s576 = scalar_lea.vmem %s4, %s575
        $region52: #{vit_forward.1} parent=47 // pred_fallthru
          _
        // Predicated region
        $region53: #{vit_forward.1} parent=47 // pred_check
          %p577 = pneg %p157
        $region54: #{vit_forward.1} parent=47 // pred_check_branch
          %579 = sbr.rel (%p577) target = $region56
        $region55: #{vit_forward.1} parent=47 // pred_region
          %p580 = scmp.lt.s32.totalorder %s27, 1
          %s581 = scalar_select %p580, %s27, 1
          %s582 = scalar_lea.vmem %s5, %s581
        $region56: #{vit_forward.1} parent=47 // pred_fallthru
          _
        // Predicated region
        $region57: #{vit_forward.1} parent=47 // pred_check
          %p583 = pneg %p183
        $region58: #{vit_forward.1} parent=47 // pred_check_branch
          %585 = sbr.rel (%p583) target = $region60
        $region59: #{vit_forward.1} parent=47 // pred_region
          %p586 = scmp.lt.s32.totalorder %s27, 1
          %s587 = scalar_select %p586, %s27, 1
          %s588 = smul.addr %s587, 16
          %s589 = smul.addr %s588, 4
          %s590 = scalar_lea.vmem %s6, %s589
        $region60: #{vit_forward.1} parent=47 // pred_fallthru
          _
        // Predicated region
        $region61: #{vit_forward.1} parent=47 // pred_check
          %p591 = pneg %p209
        $region62: #{vit_forward.1} parent=47 // pred_check_branch
          %593 = sbr.rel (%p591) target = $region64
        $region63: #{vit_forward.1} parent=47 // pred_region
          %p594 = scmp.lt.s32.totalorder %s27, 1
          %s595 = scalar_select %p594, %s27, 1
          %s596 = smul.addr %s595, 2
          %s597 = scalar_lea.vmem %s7, %s596
        $region64: #{vit_forward.1} parent=47 // pred_fallthru
          _
        // Predicated region
        $region65: #{vit_forward.1} parent=47 // pred_check
          %p598 = pneg %p235
        $region66: #{vit_forward.1} parent=47 // pred_check_branch
          %600 = sbr.rel (%p598) target = $region68
        $region67: #{vit_forward.1} parent=47 // pred_region
          %p601 = scmp.lt.s32.totalorder %s27, 1
          %s602 = scalar_select %p601, %s27, 1
          %s603 = smul.addr %s602, 8
          %s604 = smul.addr %s603, 4
          %s605 = scalar_lea.vmem %s8, %s604
        $region68: #{vit_forward.1} parent=47 // pred_fallthru
          _
        // Predicated region
        $region69: #{vit_forward.1} parent=47 // pred_check
          %p606 = pneg %p261
        $region70: #{vit_forward.1} parent=47 // pred_check_branch
          %608 = sbr.rel (%p606) target = $region72
        $region71: #{vit_forward.1} parent=47 // pred_region
          %p609 = scmp.lt.s32.totalorder %s27, 1
          %s610 = scalar_select %p609, %s27, 1
          %s611 = scalar_lea.vmem %s9, %s610
        $region72: #{vit_forward.1} parent=47 // pred_fallthru
          _
        // Predicated region
        $region73: #{vit_forward.1} parent=47 // pred_check
          %p612 = pneg %p287
        $region74: #{vit_forward.1} parent=47 // pred_check_branch
          %614 = sbr.rel (%p612) target = $region76
        $region75: #{vit_forward.1} parent=47 // pred_region
          %p615 = scmp.lt.s32.totalorder %s27, 1
          %s616 = scalar_select %p615, %s27, 1
          %s617 = scalar_lea.vmem %s10, %s616
        $region76: #{vit_forward.1} parent=47 // pred_fallthru
          _
        // Predicated region
        $region77: #{vit_forward.1} parent=47 // pred_check
          %p618 = pneg %p313
        $region78: #{vit_forward.1} parent=47 // pred_check_branch
          %620 = sbr.rel (%p618) target = $region80
        $region79: #{vit_forward.1} parent=47 // pred_region
          %p621 = scmp.lt.s32.totalorder %s27, 1
          %s622 = scalar_select %p621, %s27, 1
          %s623 = scalar_lea.vmem %s11, %s622
        $region80: #{vit_forward.1} parent=47 // pred_fallthru
          _
        // Predicated region
        $region81: #{vit_forward.1} parent=47 // pred_check
          %p624 = pneg %p339
        $region82: #{vit_forward.1} parent=47 // pred_check_branch
          %626 = sbr.rel (%p624) target = $region84
        $region83: #{vit_forward.1} parent=47 // pred_region
          %p627 = scmp.lt.s32.totalorder %s27, 1
          %s628 = scalar_select %p627, %s27, 1
          %s629 = smul.addr %s628, 16
          %s630 = smul.addr %s629, 4
          %s631 = scalar_lea.vmem %s12, %s630
        $region84: #{vit_forward.1} parent=47 // pred_fallthru
          _
        // Predicated region
        $region85: #{vit_forward.1} parent=47 // pred_check
          %p632 = pneg %p365
        $region86: #{vit_forward.1} parent=47 // pred_check_branch
          %634 = sbr.rel (%p632) target = $region88
        $region87: #{vit_forward.1} parent=47 // pred_region
          %p635 = scmp.lt.s32.totalorder %s27, 1
          %s636 = scalar_select %p635, %s27, 1
          %s637 = smul.addr %s636, 2
          %s638 = scalar_lea.vmem %s13, %s637
        $region88: #{vit_forward.1} parent=47 // pred_fallthru
          _
        // Predicated region
        $region89: #{vit_forward.1} parent=47 // pred_check
          %p639 = pneg %p391
        $region90: #{vit_forward.1} parent=47 // pred_check_branch
          %641 = sbr.rel (%p639) target = $region92
        $region91: #{vit_forward.1} parent=47 // pred_region
          %p642 = scmp.lt.s32.totalorder %s27, 1
          %s643 = scalar_select %p642, %s27, 1
          %s644 = smul.addr %s643, 32
          %s645 = smul.addr %s644, 4
          %s646 = scalar_lea.vmem %s14, %s645
        $region92: #{vit_forward.1} parent=47 // pred_fallthru
          _
        // Predicated region
        $region93: #{vit_forward.1} parent=47 // pred_check
          %p647 = pneg %p417
        $region94: #{vit_forward.1} parent=47 // pred_check_branch
          %649 = sbr.rel (%p647) target = $region96
        $region95: #{vit_forward.1} parent=47 // pred_region
          %p650 = scmp.lt.s32.totalorder %s27, 1
          %s651 = scalar_select %p650, %s27, 1
          %s652 = scalar_lea.vmem %s15, %s651
        $region96: #{vit_forward.1} parent=47 // pred_fallthru
          _
      $region48: #{vit_forward.1} parent=5 // pred_fallthru
        _
      %p653 = scmp.le.s32.totalorder 1, %s27
      %p654 = scmp.lt.s32.totalorder %s27, 3
      %p655 = pnand %p653, %p654
      %p656 = pneg %p655
      // Predicated region
      $region97: #{vit_forward.1} parent=5 // pred_check
        _
      $region98: #{vit_forward.1} parent=5 // pred_check_branch
        %658 = sbr.rel (%p655) target = $region100
      $region99: #{vit_forward.1} parent=5 // pred_region
        %s659 = ssub.s32 %s27, 1
        %p660 = pneg %p48
        %p661 = pneg %p45
        %p662 = pneg %p69
        %p663 = pneg %p66
        %p664 = pneg %p90
        %p665 = pneg %p87
        %p666 = pneg %p111
        %p667 = pneg %p108
        %p668 = scmp.lt.s32.totalorder %s32, 1
        %s669 = scalar_select %p668, %s32, 1
        %s670 = scalar_lea.vmem %s4, %s669
        %p671 = pneg %p137
        %p672 = pneg %p134
        %p673 = scmp.lt.s32.totalorder %s32, 1
        %s674 = scalar_select %p673, %s32, 1
        %s675 = scalar_lea.vmem %s5, %s674
        %p676 = pneg %p163
        %p677 = pneg %p160
        %p678 = scmp.lt.s32.totalorder %s32, 1
        %s679 = scalar_select %p678, %s32, 1
        %s680 = smul.addr %s679, 16
        %s681 = smul.addr %s680, 4
        %s682 = scalar_lea.vmem %s6, %s681
        %p683 = pneg %p189
        %p684 = pneg %p186
        %p685 = scmp.lt.s32.totalorder %s32, 1
        %s686 = scalar_select %p685, %s32, 1
        %s687 = smul.addr %s686, 2
        %s688 = scalar_lea.vmem %s7, %s687
        %p689 = pneg %p215
        %p690 = pneg %p212
        %p691 = scmp.lt.s32.totalorder %s32, 1
        %s692 = scalar_select %p691, %s32, 1
        %s693 = smul.addr %s692, 8
        %s694 = smul.addr %s693, 4
        %s695 = scalar_lea.vmem %s8, %s694
        %p696 = pneg %p241
        %p697 = pneg %p238
        %p698 = scmp.lt.s32.totalorder %s32, 1
        %s699 = scalar_select %p698, %s32, 1
        %s700 = scalar_lea.vmem %s9, %s699
        %p701 = pneg %p267
        %p702 = pneg %p264
        %p703 = scmp.lt.s32.totalorder %s32, 1
        %s704 = scalar_select %p703, %s32, 1
        %s705 = scalar_lea.vmem %s10, %s704
        %p706 = pneg %p293
        %p707 = pneg %p290
        %p708 = scmp.lt.s32.totalorder %s32, 1
        %s709 = scalar_select %p708, %s32, 1
        %s710 = scalar_lea.vmem %s11, %s709
        %p711 = pneg %p319
        %p712 = pneg %p316
        %p713 = scmp.lt.s32.totalorder %s32, 1
        %s714 = scalar_select %p713, %s32, 1
        %s715 = smul.addr %s714, 16
        %s716 = smul.addr %s715, 4
        %s717 = scalar_lea.vmem %s12, %s716
        %p718 = pneg %p345
        %p719 = pneg %p342
        %p720 = scmp.lt.s32.totalorder %s32, 1
        %s721 = scalar_select %p720, %s32, 1
        %s722 = smul.addr %s721, 2
        %s723 = scalar_lea.vmem %s13, %s722
        %p724 = pneg %p371
        %p725 = pneg %p368
        %p726 = scmp.lt.s32.totalorder %s32, 1
        %s727 = scalar_select %p726, %s32, 1
        %s728 = smul.addr %s727, 32
        %s729 = smul.addr %s728, 4
        %s730 = scalar_lea.vmem %s14, %s729
        %p731 = pneg %p397
        %p732 = pneg %p394
        %p733 = scmp.lt.s32.totalorder %s32, 1
        %s734 = scalar_select %p733, %s32, 1
        %s735 = scalar_lea.vmem %s15, %s734
        %p736 = pneg %p423
        %p737 = pneg %p420
        %p738 = pneg %p444
        %p739 = pneg %p441
        %p740 = pneg %p465
        %p741 = pneg %p462
        %p742 = pneg %p486
        %p743 = pneg %p483
        %p744 = pneg %p507
        %p745 = pneg %p504
        %p746 = pneg %p528
        %p747 = pneg %p525
        %p748 = scmp.lt.s32.totalorder %s32, 1
        %s749 = scalar_select %p748, %s32, 1
        %s750 = scalar_lea.vmem %s4, %s749
        %p751 = scmp.lt.s32.totalorder %s32, 1
        %s752 = scalar_select %p751, %s32, 1
        %s753 = scalar_lea.vmem %s5, %s752
        %p754 = scmp.lt.s32.totalorder %s32, 1
        %s755 = scalar_select %p754, %s32, 1
        %s756 = smul.addr %s755, 16
        %s757 = smul.addr %s756, 4
        %s758 = scalar_lea.vmem %s6, %s757
        %p759 = scmp.lt.s32.totalorder %s32, 1
        %s760 = scalar_select %p759, %s32, 1
        %s761 = smul.addr %s760, 2
        %s762 = scalar_lea.vmem %s7, %s761
        %p763 = scmp.lt.s32.totalorder %s32, 1
        %s764 = scalar_select %p763, %s32, 1
        %s765 = smul.addr %s764, 8
        %s766 = smul.addr %s765, 4
        %s767 = scalar_lea.vmem %s8, %s766
        %p768 = scmp.lt.s32.totalorder %s32, 1
        %s769 = scalar_select %p768, %s32, 1
        %s770 = scalar_lea.vmem %s9, %s769
        %p771 = scmp.lt.s32.totalorder %s32, 1
        %s772 = scalar_select %p771, %s32, 1
        %s773 = scalar_lea.vmem %s10, %s772
        %p774 = scmp.lt.s32.totalorder %s32, 1
        %s775 = scalar_select %p774, %s32, 1
        %s776 = scalar_lea.vmem %s11, %s775
        %p777 = scmp.lt.s32.totalorder %s32, 1
        %s778 = scalar_select %p777, %s32, 1
        %s779 = smul.addr %s778, 16
        %s780 = smul.addr %s779, 4
        %s781 = scalar_lea.vmem %s12, %s780
        %p782 = scmp.lt.s32.totalorder %s32, 1
        %s783 = scalar_select %p782, %s32, 1
        %s784 = smul.addr %s783, 2
        %s785 = scalar_lea.vmem %s13, %s784
        %p786 = scmp.lt.s32.totalorder %s32, 1
        %s787 = scalar_select %p786, %s32, 1
        %s788 = smul.addr %s787, 32
        %s789 = smul.addr %s788, 4
        %s790 = scalar_lea.vmem %s14, %s789
        %p791 = scmp.lt.s32.totalorder %s32, 1
        %s792 = scalar_select %p791, %s32, 1
        %s793 = scalar_lea.vmem %s15, %s792
        %p795 = scmp.eq.s32.totalorder %s32, 0
        // Predicated region
        $region101: #{vit_forward.1} parent=99 // pred_check
          %p796 = pneg %p795
        $region102: #{vit_forward.1} parent=99 // pred_check_branch
          %798 = sbr.rel (%p796) target = $region104
        $region103: #{vit_forward.1} parent=99 // pred_region
          %v799 = vld [vmem:[%s0] sm:$0xff]
          %v800 = vld [vmem:[%s0 + $0x8] sm:$0xff]
          %v801 = vld [vmem:[%s0 + $0x10] sm:$0xff]
          %v802 = vld [vmem:[%s1] sm:$0xf]
          %v803 = vld [vmem:[%s1 + $0x4] sm:$0xf]
          %v804 = vld [vmem:[%s1 + $0x8] sm:$0xf]
          %v805 = vld [vmem:[%s1 + $0xc] sm:$0xf]
          %v806 = vld [vmem:[%s1 + $0x10] sm:$0xf]
          %v807 = vld [vmem:[%s1 + $0x14] sm:$0xf]
          %v808 = vld [vmem:[%s1 + $0x18] sm:$0xf]
          %v809 = vld [vmem:[%s1 + $0x1c] sm:$0xf]
          %v810 = vld [vmem:[%s1 + $0x20] sm:$0xf]
          %v811 = vld [vmem:[%s1 + $0x24] sm:$0xf]
          %v812 = vld [vmem:[%s1 + $0x28] sm:$0xf]
          %v813 = vld [vmem:[%s1 + $0x2c] sm:$0xf]
          %v814 = vld [vmem:[%s1 + $0x30] sm:$0xf]
          %v815 = vld [vmem:[%s1 + $0x34] sm:$0xf]
          %v816 = vld [vmem:[%s1 + $0x38] sm:$0xf]
          %v817 = vld [vmem:[%s1 + $0x3c] sm:$0xf]
          %v818 = vld [vmem:[%s1 + $0x40] sm:$0xf]
          %v819 = vld [vmem:[%s1 + $0x44] sm:$0xf]
          %v820 = vld [vmem:[%s1 + $0x48] sm:$0xf]
          %v821 = vld [vmem:[%s1 + $0x4c] sm:$0xf]
          %v822 = vld [vmem:[%s1 + $0x50] sm:$0xf]
          %v823 = vld [vmem:[%s1 + $0x54] sm:$0xf]
          %v824 = vld [vmem:[%s1 + $0x58] sm:$0xf]
          %v825 = vld [vmem:[%s1 + $0x5c] sm:$0xf]
          %v826 = vld [vmem:[%s1 + $0x60] sm:$0xf]
          %v827 = vld [vmem:[%s1 + $0x64] sm:$0xf]
          %v828 = vld [vmem:[%s1 + $0x68] sm:$0xf]
          %v829 = vld [vmem:[%s1 + $0x6c] sm:$0xf]
          %v830 = vld [vmem:[%s1 + $0x70] sm:$0xf]
          %v831 = vld [vmem:[%s1 + $0x74] sm:$0xf]
          %v832 = vld [vmem:[%s1 + $0x78] sm:$0xf]
          %v833 = vld [vmem:[%s1 + $0x7c] sm:$0xf]
          %v834 = vld [vmem:[%s1 + $0x80] sm:$0xf]
          %v835 = vld [vmem:[%s1 + $0x84] sm:$0xf]
          %v836 = vld [vmem:[%s1 + $0x88] sm:$0xf]
          %v837 = vld [vmem:[%s1 + $0x8c] sm:$0xf]
          %v838 = vld [vmem:[%s1 + $0x90] sm:$0xf]
          %v839 = vld [vmem:[%s1 + $0x94] sm:$0xf]
          %v840 = vld [vmem:[%s1 + $0x98] sm:$0xf]
          %v841 = vld [vmem:[%s1 + $0x9c] sm:$0xf]
          %v842 = vld [vmem:[%s1 + $0xa0] sm:$0xf]
          %v843 = vld [vmem:[%s1 + $0xa4] sm:$0xf]
          %v844 = vld [vmem:[%s1 + $0xa8] sm:$0xf]
          %v845 = vld [vmem:[%s1 + $0xac] sm:$0xf]
          %v846 = vld [vmem:[%s1 + $0xb0] sm:$0xf]
          %v847 = vld [vmem:[%s1 + $0xb4] sm:$0xf]
          %v848 = vld [vmem:[%s1 + $0xb8] sm:$0xf]
          %v849 = vld [vmem:[%s1 + $0xbc] sm:$0xf]
          %v850 = vld [vmem:[%s1 + $0xc0] sm:$0xf]
          %v851 = vld [vmem:[%s1 + $0xc4] sm:$0xf]
          %v852 = vld [vmem:[%s1 + $0xc8] sm:$0xf]
          %v853 = vld [vmem:[%s1 + $0xcc] sm:$0xf]
          %v854 = vld [vmem:[%s1 + $0xd0] sm:$0xf]
          %v855 = vld [vmem:[%s1 + $0xd4] sm:$0xf]
          %v856 = vld [vmem:[%s1 + $0xd8] sm:$0xf]
          %v857 = vld [vmem:[%s1 + $0xdc] sm:$0xf]
          %v858 = vld [vmem:[%s1 + $0xe0] sm:$0xf]
          %v859 = vld [vmem:[%s1 + $0xe4] sm:$0xf]
          %v860 = vld [vmem:[%s1 + $0xe8] sm:$0xf]
          %v861 = vld [vmem:[%s1 + $0xec] sm:$0xf]
          %v862 = vld [vmem:[%s1 + $0xf0] sm:$0xf]
          %v863 = vld [vmem:[%s1 + $0xf4] sm:$0xf]
          %v864 = vld [vmem:[%s1 + $0xf8] sm:$0xf]
          %v865 = vld [vmem:[%s1 + $0xfc] sm:$0xf]
          %v866 = vld [vmem:[%s1 + $0x100] sm:$0xf]
          %v867 = vld [vmem:[%s1 + $0x104] sm:$0xf]
          %v868 = vld [vmem:[%s1 + $0x108] sm:$0xf]
          %v869 = vld [vmem:[%s1 + $0x10c] sm:$0xf]
          %v870 = vld [vmem:[%s1 + $0x110] sm:$0xf]
          %v871 = vld [vmem:[%s1 + $0x114] sm:$0xf]
          %v872 = vld [vmem:[%s1 + $0x118] sm:$0xf]
          %v873 = vld [vmem:[%s1 + $0x11c] sm:$0xf]
          %v874 = vld [vmem:[%s1 + $0x120] sm:$0xf]
          %v875 = vld [vmem:[%s1 + $0x124] sm:$0xf]
          %v876 = vld [vmem:[%s1 + $0x128] sm:$0xf]
          %v877 = vld [vmem:[%s1 + $0x12c] sm:$0xf]
          %v878 = vld [vmem:[%s1 + $0x130] sm:$0xf]
          %v879 = vld [vmem:[%s1 + $0x134] sm:$0xf]
          %v880 = vld [vmem:[%s1 + $0x138] sm:$0xf]
          %v881 = vld [vmem:[%s1 + $0x13c] sm:$0xf]
          %v882 = vld [vmem:[%s1 + $0x140] sm:$0xf]
          %v883 = vld [vmem:[%s1 + $0x144] sm:$0xf]
          %v884 = vld [vmem:[%s1 + $0x148] sm:$0xf]
          %v885 = vld [vmem:[%s1 + $0x14c] sm:$0xf]
          %v886 = vld [vmem:[%s1 + $0x150] sm:$0xf]
          %v887 = vld [vmem:[%s1 + $0x154] sm:$0xf]
          %v888 = vld [vmem:[%s1 + $0x158] sm:$0xf]
          %v889 = vld [vmem:[%s1 + $0x15c] sm:$0xf]
          %v890 = vld [vmem:[%s1 + $0x160] sm:$0xf]
          %v891 = vld [vmem:[%s1 + $0x164] sm:$0xf]
          %v892 = vld [vmem:[%s1 + $0x168] sm:$0xf]
          %v893 = vld [vmem:[%s1 + $0x16c] sm:$0xf]
          %v894 = vld [vmem:[%s1 + $0x170] sm:$0xf]
          %v895 = vld [vmem:[%s1 + $0x174] sm:$0xf]
          %v896 = vld [vmem:[%s1 + $0x178] sm:$0xf]
          %v897 = vld [vmem:[%s1 + $0x17c] sm:$0xf]
          %v898 = vld [vmem:[%s2] sm:$0x1]
          %v900 = vlaneseq
          %v901 = vshrl.u32 %v900, 7
          %v902 = vsub.s32 0, %v901
          %v903 = vrot.slane %v898, %v902
          %v908 = vunpack.c.l.b16 %v799
          %v909 = vunpack.c.h.b16 %v799
          %v910 = vunpack.c.l.b16 %v800
          %v911 = vunpack.c.h.b16 %v800
          %v912 = vunpack.c.l.b16 %v801
          %v913 = vunpack.c.h.b16 %v801
          %v914 = vpack.c.b16 %v908, %v908
          %v915 = vpack.c.b16 %v909, %v909
          %v916 = vpack.c.b16 %v910, %v910
          %v917 = vpack.c.b16 %v911, %v911
          %v918 = vpack.c.b16 %v912, %v912
          %v919 = vpack.c.b16 %v913, %v913
          %v1022 = vunpack.c.l.b16 %v802
          %v1023 = vunpack.c.l.b16 %v803
          %v1024 = vunpack.c.l.b16 %v804
          %v1025 = vunpack.c.l.b16 %v805
          %v1026 = vunpack.c.l.b16 %v806
          %v1027 = vunpack.c.l.b16 %v807
          %v1028 = vunpack.c.l.b16 %v808
          %v1029 = vunpack.c.l.b16 %v809
          %v1030 = vunpack.c.l.b16 %v810
          %v1031 = vunpack.c.l.b16 %v811
          %v1032 = vunpack.c.l.b16 %v812
          %v1033 = vunpack.c.l.b16 %v813
          %v1034 = vunpack.c.l.b16 %v814
          %v1035 = vunpack.c.l.b16 %v815
          %v1036 = vunpack.c.l.b16 %v816
          %v1037 = vunpack.c.l.b16 %v817
          %v1038 = vunpack.c.l.b16 %v818
          %v1039 = vunpack.c.l.b16 %v819
          %v1040 = vunpack.c.l.b16 %v820
          %v1041 = vunpack.c.l.b16 %v821
          %v1042 = vunpack.c.l.b16 %v822
          %v1043 = vunpack.c.l.b16 %v823
          %v1044 = vunpack.c.l.b16 %v824
          %v1045 = vunpack.c.l.b16 %v825
          %v1046 = vunpack.c.l.b16 %v826
          %v1047 = vunpack.c.l.b16 %v827
          %v1048 = vunpack.c.l.b16 %v828
          %v1049 = vunpack.c.l.b16 %v829
          %v1050 = vunpack.c.l.b16 %v830
          %v1051 = vunpack.c.l.b16 %v831
          %v1052 = vunpack.c.l.b16 %v832
          %v1053 = vunpack.c.l.b16 %v833
          %v1054 = vunpack.c.l.b16 %v834
          %v1055 = vunpack.c.l.b16 %v835
          %v1056 = vunpack.c.l.b16 %v836
          %v1057 = vunpack.c.l.b16 %v837
          %v1058 = vunpack.c.l.b16 %v838
          %v1059 = vunpack.c.l.b16 %v839
          %v1060 = vunpack.c.l.b16 %v840
          %v1061 = vunpack.c.l.b16 %v841
          %v1062 = vunpack.c.l.b16 %v842
          %v1063 = vunpack.c.l.b16 %v843
          %v1064 = vunpack.c.l.b16 %v844
          %v1065 = vunpack.c.l.b16 %v845
          %v1066 = vunpack.c.l.b16 %v846
          %v1067 = vunpack.c.l.b16 %v847
          %v1068 = vunpack.c.l.b16 %v848
          %v1069 = vunpack.c.l.b16 %v849
          %v1070 = vunpack.c.l.b16 %v850
          %v1071 = vunpack.c.l.b16 %v851
          %v1072 = vunpack.c.l.b16 %v852
          %v1073 = vunpack.c.l.b16 %v853
          %v1074 = vunpack.c.l.b16 %v854
          %v1075 = vunpack.c.l.b16 %v855
          %v1076 = vunpack.c.l.b16 %v856
          %v1077 = vunpack.c.l.b16 %v857
          %v1078 = vunpack.c.l.b16 %v858
          %v1079 = vunpack.c.l.b16 %v859
          %v1080 = vunpack.c.l.b16 %v860
          %v1081 = vunpack.c.l.b16 %v861
          %v1082 = vunpack.c.l.b16 %v862
          %v1083 = vunpack.c.l.b16 %v863
          %v1084 = vunpack.c.l.b16 %v864
          %v1085 = vunpack.c.l.b16 %v865
          %v1086 = vunpack.c.l.b16 %v866
          %v1087 = vunpack.c.l.b16 %v867
          %v1088 = vunpack.c.l.b16 %v868
          %v1089 = vunpack.c.l.b16 %v869
          %v1090 = vunpack.c.l.b16 %v870
          %v1091 = vunpack.c.l.b16 %v871
          %v1092 = vunpack.c.l.b16 %v872
          %v1093 = vunpack.c.l.b16 %v873
          %v1094 = vunpack.c.l.b16 %v874
          %v1095 = vunpack.c.l.b16 %v875
          %v1096 = vunpack.c.l.b16 %v876
          %v1097 = vunpack.c.l.b16 %v877
          %v1098 = vunpack.c.l.b16 %v878
          %v1099 = vunpack.c.l.b16 %v879
          %v1100 = vunpack.c.l.b16 %v880
          %v1101 = vunpack.c.l.b16 %v881
          %v1102 = vunpack.c.l.b16 %v882
          %v1103 = vunpack.c.l.b16 %v883
          %v1104 = vunpack.c.l.b16 %v884
          %v1105 = vunpack.c.l.b16 %v885
          %v1106 = vunpack.c.l.b16 %v886
          %v1107 = vunpack.c.l.b16 %v887
          %v1108 = vunpack.c.l.b16 %v888
          %v1109 = vunpack.c.l.b16 %v889
          %v1110 = vunpack.c.l.b16 %v890
          %v1111 = vunpack.c.l.b16 %v891
          %v1112 = vunpack.c.l.b16 %v892
          %v1113 = vunpack.c.l.b16 %v893
          %v1114 = vunpack.c.l.b16 %v894
          %v1115 = vunpack.c.l.b16 %v895
          %v1116 = vunpack.c.l.b16 %v896
          %v1117 = vunpack.c.l.b16 %v897
          %v1118 = vpack.c.b16 %v1023, %v1022
          %v1119 = vpack.c.b16 %v1025, %v1024
          %v1120 = vpack.c.b16 %v1027, %v1026
          %v1121 = vpack.c.b16 %v1029, %v1028
          %v1122 = vpack.c.b16 %v1031, %v1030
          %v1123 = vpack.c.b16 %v1033, %v1032
          %v1124 = vpack.c.b16 %v1035, %v1034
          %v1125 = vpack.c.b16 %v1037, %v1036
          %v1126 = vpack.c.b16 %v1039, %v1038
          %v1127 = vpack.c.b16 %v1041, %v1040
          %v1128 = vpack.c.b16 %v1043, %v1042
          %v1129 = vpack.c.b16 %v1045, %v1044
          %v1130 = vpack.c.b16 %v1047, %v1046
          %v1131 = vpack.c.b16 %v1049, %v1048
          %v1132 = vpack.c.b16 %v1051, %v1050
          %v1133 = vpack.c.b16 %v1053, %v1052
          %v1134 = vpack.c.b16 %v1055, %v1054
          %v1135 = vpack.c.b16 %v1057, %v1056
          %v1136 = vpack.c.b16 %v1059, %v1058
          %v1137 = vpack.c.b16 %v1061, %v1060
          %v1138 = vpack.c.b16 %v1063, %v1062
          %v1139 = vpack.c.b16 %v1065, %v1064
          %v1140 = vpack.c.b16 %v1067, %v1066
          %v1141 = vpack.c.b16 %v1069, %v1068
          %v1142 = vpack.c.b16 %v1071, %v1070
          %v1143 = vpack.c.b16 %v1073, %v1072
          %v1144 = vpack.c.b16 %v1075, %v1074
          %v1145 = vpack.c.b16 %v1077, %v1076
          %v1146 = vpack.c.b16 %v1079, %v1078
          %v1147 = vpack.c.b16 %v1081, %v1080
          %v1148 = vpack.c.b16 %v1083, %v1082
          %v1149 = vpack.c.b16 %v1085, %v1084
          %v1150 = vpack.c.b16 %v1087, %v1086
          %v1151 = vpack.c.b16 %v1089, %v1088
          %v1152 = vpack.c.b16 %v1091, %v1090
          %v1153 = vpack.c.b16 %v1093, %v1092
          %v1154 = vpack.c.b16 %v1095, %v1094
          %v1155 = vpack.c.b16 %v1097, %v1096
          %v1156 = vpack.c.b16 %v1099, %v1098
          %v1157 = vpack.c.b16 %v1101, %v1100
          %v1158 = vpack.c.b16 %v1103, %v1102
          %v1159 = vpack.c.b16 %v1105, %v1104
          %v1160 = vpack.c.b16 %v1107, %v1106
          %v1161 = vpack.c.b16 %v1109, %v1108
          %v1162 = vpack.c.b16 %v1111, %v1110
          %v1163 = vpack.c.b16 %v1113, %v1112
          %v1164 = vpack.c.b16 %v1115, %v1114
          %v1165 = vpack.c.b16 %v1117, %v1116
          %1214 = vmatprep.subr.bf16.mxu0 0
          %1215 = vmatpush1.bf16.msra.mxu0 %v1118
          %1216 = vmatprep.subr.bf16.mxu0 0
          %1217 = vmatpush1.bf16.msra.mxu0 %v1119
          %1218 = vmatprep.subr.bf16.mxu0 0
          %1219 = vmatpush1.bf16.msra.mxu0 %v1120
          %1220 = vmatprep.subr.bf16.mxu0 0
          %1221 = vmatpush1.bf16.msra.mxu0 %v1121
          %1222 = vmatprep.subr.bf16.mxu0 0
          %1223 = vmatpush1.bf16.msra.mxu0 %v1122
          %1224 = vmatprep.subr.bf16.mxu0 0
          %1225 = vmatpush1.bf16.msra.mxu0 %v1123
          %1226 = vmatprep.subr.bf16.mxu0 0
          %1227 = vmatpush1.bf16.msra.mxu0 %v1124
          %1228 = vmatprep.subr.bf16.mxu0 0
          %1229 = vmatpush1.bf16.msra.mxu0 %v1125
          %1230 = vmatprep.subr.bf16.mxu0 0
          %1231 = vmatpush1.bf16.msra.mxu0 %v1126
          %1232 = vmatprep.subr.bf16.mxu0 0
          %1233 = vmatpush1.bf16.msra.mxu0 %v1127
          %1234 = vmatprep.subr.bf16.mxu0 0
          %1235 = vmatpush1.bf16.msra.mxu0 %v1128
          %1236 = vmatprep.subr.bf16.mxu0 0
          %1237 = vmatpush1.bf16.msra.mxu0 %v1129
          %1238 = vmatprep.subr.bf16.mxu0 0
          %1239 = vmatpush1.bf16.msra.mxu0 %v1130
          %1240 = vmatprep.subr.bf16.mxu0 0
          %1241 = vmatpush1.bf16.msra.mxu0 %v1131
          %1242 = vmatprep.subr.bf16.mxu0 0
          %1243 = vmatpush1.bf16.msra.mxu0 %v1132
          %1244 = vmatprep.subr.bf16.mxu0 0
          %1245 = vmatpush1.bf16.msra.mxu0 %v1133
          %1246 = vmatprep.mubr.bf16.mxu0 %v915
          %1247 = vmatmul.mubr.bf16.gmra.mrb[0].mxu0 %v914
          %v1248 = vpop.f32.mrb[0].mxu0
          %v1249 = vadd.f32 %v903, %v1248
          %v1250 = vpop.f32.mrb[0].mxu0
          %v1251 = vpop.f32.mrb[0].mxu0
          %v1252 = vpop.f32.mrb[0].mxu0
          %1253 = vdwg.mxu0
          %1254 = vmatprep.subr.bf16.mxu0 0
          %1255 = vmatpush1.bf16.msra.mxu0 %v1134
          %1256 = vmatprep.subr.bf16.mxu0 0
          %1257 = vmatpush1.bf16.msra.mxu0 %v1135
          %1258 = vmatprep.subr.bf16.mxu0 0
          %1259 = vmatpush1.bf16.msra.mxu0 %v1136
          %1260 = vmatprep.subr.bf16.mxu0 0
          %1261 = vmatpush1.bf16.msra.mxu0 %v1137
          %1262 = vmatprep.subr.bf16.mxu0 0
          %1263 = vmatpush1.bf16.msra.mxu0 %v1138
          %1264 = vmatprep.subr.bf16.mxu0 0
          %1265 = vmatpush1.bf16.msra.mxu0 %v1139
          %1266 = vmatprep.subr.bf16.mxu0 0
          %1267 = vmatpush1.bf16.msra.mxu0 %v1140
          %1268 = vmatprep.subr.bf16.mxu0 0
          %1269 = vmatpush1.bf16.msra.mxu0 %v1141
          %1270 = vmatprep.subr.bf16.mxu0 0
          %1271 = vmatpush1.bf16.msra.mxu0 %v1142
          %1272 = vmatprep.subr.bf16.mxu0 0
          %1273 = vmatpush1.bf16.msra.mxu0 %v1143
          %1274 = vmatprep.subr.bf16.mxu0 0
          %1275 = vmatpush1.bf16.msra.mxu0 %v1144
          %1276 = vmatprep.subr.bf16.mxu0 0
          %1277 = vmatpush1.bf16.msra.mxu0 %v1145
          %1278 = vmatprep.subr.bf16.mxu0 0
          %1279 = vmatpush1.bf16.msra.mxu0 %v1146
          %1280 = vmatprep.subr.bf16.mxu0 0
          %1281 = vmatpush1.bf16.msra.mxu0 %v1147
          %1282 = vmatprep.subr.bf16.mxu0 0
          %1283 = vmatpush1.bf16.msra.mxu0 %v1148
          %1284 = vmatprep.subr.bf16.mxu0 0
          %1285 = vmatpush1.bf16.msra.mxu0 %v1149
          %1286 = vmatprep.mubr.bf16.mxu0 %v917
          %1287 = vmatmul.mubr.bf16.gmra.mrb[0].mxu0 %v916
          %v1288 = vpop.f32.mrb[0].mxu0
          %v1289 = vadd.f32 %v1249, %v1288
          %v1290 = vpop.f32.mrb[0].mxu0
          %v1291 = vpop.f32.mrb[0].mxu0
          %v1292 = vpop.f32.mrb[0].mxu0
          %1293 = vdwg.mxu0
          %1294 = vmatprep.subr.bf16.mxu0 0
          %1295 = vmatpush1.bf16.msra.mxu0 %v1150
          %1296 = vmatprep.subr.bf16.mxu0 0
          %1297 = vmatpush1.bf16.msra.mxu0 %v1151
          %1298 = vmatprep.subr.bf16.mxu0 0
          %1299 = vmatpush1.bf16.msra.mxu0 %v1152
          %1300 = vmatprep.subr.bf16.mxu0 0
          %1301 = vmatpush1.bf16.msra.mxu0 %v1153
          %1302 = vmatprep.subr.bf16.mxu0 0
          %1303 = vmatpush1.bf16.msra.mxu0 %v1154
          %1304 = vmatprep.subr.bf16.mxu0 0
          %1305 = vmatpush1.bf16.msra.mxu0 %v1155
          %1306 = vmatprep.subr.bf16.mxu0 0
          %1307 = vmatpush1.bf16.msra.mxu0 %v1156
          %1308 = vmatprep.subr.bf16.mxu0 0
          %1309 = vmatpush1.bf16.msra.mxu0 %v1157
          %1310 = vmatprep.subr.bf16.mxu0 0
          %1311 = vmatpush1.bf16.msra.mxu0 %v1158
          %1312 = vmatprep.subr.bf16.mxu0 0
          %1313 = vmatpush1.bf16.msra.mxu0 %v1159
          %1314 = vmatprep.subr.bf16.mxu0 0
          %1315 = vmatpush1.bf16.msra.mxu0 %v1160
          %1316 = vmatprep.subr.bf16.mxu0 0
          %1317 = vmatpush1.bf16.msra.mxu0 %v1161
          %1318 = vmatprep.subr.bf16.mxu0 0
          %1319 = vmatpush1.bf16.msra.mxu0 %v1162
          %1320 = vmatprep.subr.bf16.mxu0 0
          %1321 = vmatpush1.bf16.msra.mxu0 %v1163
          %1322 = vmatprep.subr.bf16.mxu0 0
          %1323 = vmatpush1.bf16.msra.mxu0 %v1164
          %1324 = vmatprep.subr.bf16.mxu0 0
          %1325 = vmatpush1.bf16.msra.mxu0 %v1165
          %1326 = vmatprep.mubr.bf16.mxu0 %v919
          %1327 = vmatmul.mubr.bf16.gmra.mrb[0].mxu0 %v918
          %v1328 = vpop.f32.mrb[0].mxu0
          %v1329 = vadd.f32 %v1289, %v1328
          %v1330 = vpop.f32.mrb[0].mxu0
          %v1331 = vpop.f32.mrb[0].mxu0
          %v1332 = vpop.f32.mrb[0].mxu0
          %1333 = vdwg.mxu0
          %v1334 = vld [vmem:[%s3] sm:$0x1f]
          %v1336 = vrot.slane %v1334, 1
          %v1338 = vadd.f32 %v1329, %v1336
          %v1339 = vrot.slane %v1334, 5
          %v1341 = vadd.f32 %v1329, %v1339
          %v1343 = vrot.slane %v1338, 7
          %v1345 = vrot.slane %v1334, 3
          %v1348 = vrot.slane %v1341, 6
          %vm1350 = vcmask 1040384
          %v1351 = vsel %vm1350, %v1334, %v1343
          %vm1352 = vcmask 1044480
          %v1353 = vsel %vm1352, %v1351, %v1345
          %vm1354 = vcmask 1045504
          %v1355 = vsel %vm1354, %v1353, %v1348
          %vm1356 = vcmask 523264
          %1357 = vst.msk [vmem:[#allocation2] sm:$0xff] %vm1356, %v1355
          %vm1358 = vcmask 517120
          %1359 = vst.msk [vmem:[#allocation2 + $0x8] sm:$0x3] %vm1358, %v1348
        $region104: #{vit_forward.1} parent=99 // pred_fallthru
          _
        %v1360 = vld [vmem:[#allocation2] sm:$0xff]
        %v1361 = vld [vmem:[#allocation2 + $0x8] sm:$0x3]
        %v1362 = vld [vmem:[%s750] sm:$0x1]
        %v1363 = vld [vmem:[%s753] sm:$0x1]
        %vm1364 = vcmask 523264
        %v1365 = vsel %vm1364, %v1360, 0.0
        %1366 = vadd.xlane.f32.xlu0 %v1365
        %v1367 = vpop.xlane.xlu0 %1366
        %vm1368 = vcmask 517120
        %v1369 = vsel %vm1368, %v1361, 0.0
        %1370 = vadd.xlane.f32.xlu0 %v1369
        %v1371 = vpop.xlane.xlu0 %1370
        %v1372 = vrcp.pop 64.0
        %v1373 = vmul.f32 %v1367, %v1372
        %v1374 = vmul.f32 %v1371, %v1372
        %v1375 = vsub.f32 %v1360, %v1373
        %v1376 = vsub.f32 %v1361, %v1374
        %v1377 = vmul.f32 %v1375, %v1375
        %v1378 = vmul.f32 %v1376, %v1376
        %v1379 = vsel %vm1364, %v1377, 0.0
        %1380 = vadd.xlane.f32.xlu0 %v1379
        %v1381 = vpop.xlane.xlu0 %1380
        %v1382 = vsel %vm1368, %v1378, 0.0
        %1383 = vadd.xlane.f32.xlu0 %v1382
        %v1384 = vpop.xlane.xlu0 %1383
        %v1385 = vmul.f32 %v1381, %v1372
        %v1386 = vmul.f32 %v1384, %v1372
        %v1387 = vadd.f32 %v1385, 1e-06
        %v1388 = vadd.f32 %v1386, 1e-06
        %v1389 = vrsqrt.pop %v1387
        %v1390 = vrsqrt.pop %v1388
        %v1391 = vmul.f32 %v1375, %v1389
        %v1392 = vmul.f32 %v1376, %v1390
        %v1394 = vlaneseq
        %v1395 = vshrl.u32 %v1394, 7
        %v1396 = vsub.s32 0, %v1395
        %v1397 = vrot.slane %v1362, %v1396
        %v1399 = vmul.f32 %v1391, %v1397
        %v1400 = vmul.f32 %v1392, %v1397
        %v1402 = vlaneseq
        %v1403 = vshrl.u32 %v1402, 7
        %v1404 = vsub.s32 0, %v1403
        %v1405 = vrot.slane %v1363, %v1404
        %v1407 = vadd.f32 %v1399, %v1405
        %v1408 = vadd.f32 %v1400, %v1405
        %v1409 = vpack.c.bf16 %v1408, %v1407
        %v1410 = vld [vmem:[%s758] sm:$0xff]
        %v1411 = vld [vmem:[%s758 + $0x8] sm:$0xff]
        %v1412 = vld [vmem:[%s758 + $0x10] sm:$0xff]
        %v1413 = vld [vmem:[%s758 + $0x18] sm:$0xff]
        %v1414 = vld [vmem:[%s758 + $0x20] sm:$0xff]
        %v1415 = vld [vmem:[%s758 + $0x28] sm:$0xff]
        %v1416 = vld [vmem:[%s758 + $0x30] sm:$0xff]
        %v1417 = vld [vmem:[%s758 + $0x38] sm:$0xff]
        %v1418 = vld [vmem:[%s762] sm:$0x3]
        %v1420 = vlaneseq
        %v1421 = vshrl.u32 %v1420, 7
        %v1422 = vsub.s32 0, %v1421
        %v1423 = vrot.slane %v1418, %v1422
        %v1424 = vlaneseq
        %v1425 = vshrl.u32 %v1424, 7
        %v1426 = vsub.s32 1, %v1425
        %v1427 = vrot.slane %v1418, %v1426
        %v1438 = vunpack.c.l.b16 %v1410
        %v1439 = vunpack.c.h.b16 %v1410
        %v1440 = vunpack.c.l.b16 %v1411
        %v1441 = vunpack.c.h.b16 %v1411
        %v1442 = vunpack.c.l.b16 %v1412
        %v1443 = vunpack.c.h.b16 %v1412
        %v1444 = vunpack.c.l.b16 %v1413
        %v1445 = vunpack.c.h.b16 %v1413
        %v1446 = vunpack.c.l.b16 %v1414
        %v1447 = vunpack.c.h.b16 %v1414
        %v1448 = vunpack.c.l.b16 %v1415
        %v1449 = vunpack.c.h.b16 %v1415
        %v1450 = vunpack.c.l.b16 %v1416
        %v1451 = vunpack.c.h.b16 %v1416
        %v1452 = vunpack.c.l.b16 %v1417
        %v1453 = vunpack.c.h.b16 %v1417
        %v1454 = vpack.c.b16 %v1440, %v1438
        %v1455 = vpack.c.b16 %v1441, %v1439
        %v1456 = vpack.c.b16 %v1444, %v1442
        %v1457 = vpack.c.b16 %v1445, %v1443
        %v1458 = vpack.c.b16 %v1448, %v1446
        %v1459 = vpack.c.b16 %v1449, %v1447
        %v1460 = vpack.c.b16 %v1452, %v1450
        %v1461 = vpack.c.b16 %v1453, %v1451
        %v1471 = vsel %vm1364, %v1409, 0
        %1473 = vmatprep.subr.bf16.mxu0 %v1455
        %1474 = vmatpush1.bf16.msra.mxu0 %v1454
        %1475 = vmatprep.subr.bf16.mxu0 %v1457
        %1476 = vmatpush1.bf16.msra.mxu0 %v1456
        %1477 = vmatprep.subr.bf16.mxu0 %v1459
        %1478 = vmatpush1.bf16.msra.mxu0 %v1458
        %1479 = vmatprep.subr.bf16.mxu0 %v1461
        %1480 = vmatpush1.bf16.msra.mxu0 %v1460
        %1481 = vmatprep.subr.bf16.mxu0 0
        %1482 = vmatpush1.bf16.msra.mxu0 0
        %1483 = vmatprep.subr.bf16.mxu0 0
        %1484 = vmatpush1.bf16.msra.mxu0 0
        %1485 = vmatprep.subr.bf16.mxu0 0
        %1486 = vmatpush1.bf16.msra.mxu0 0
        %1487 = vmatprep.subr.bf16.mxu0 0
        %1488 = vmatpush1.bf16.msra.mxu0 0
        %1489 = vmatprep.subr.bf16.mxu0 0
        %1490 = vmatpush1.bf16.msra.mxu0 0
        %1491 = vmatprep.subr.bf16.mxu0 0
        %1492 = vmatpush1.bf16.msra.mxu0 0
        %1493 = vmatprep.subr.bf16.mxu0 0
        %1494 = vmatpush1.bf16.msra.mxu0 0
        %1495 = vmatprep.subr.bf16.mxu0 0
        %1496 = vmatpush1.bf16.msra.mxu0 0
        %1497 = vmatprep.subr.bf16.mxu0 0
        %1498 = vmatpush1.bf16.msra.mxu0 0
        %1499 = vmatprep.subr.bf16.mxu0 0
        %1500 = vmatpush1.bf16.msra.mxu0 0
        %1501 = vmatprep.subr.bf16.mxu0 0
        %1502 = vmatpush1.bf16.msra.mxu0 0
        %1503 = vmatprep.subr.bf16.mxu0 0
        %1504 = vmatpush1.bf16.msra.mxu0 0
        %1505 = vmatprep.mubr.bf16.mxu0 0
        %1506 = vmatmul.mubr.bf16.gmra.mrb[0].mxu0 %v1471
        %v1507 = vpop.f32.mrb[0].mxu0
        %v1508 = vadd.f32 %v1423, %v1507
        %v1509 = vpop.f32.mrb[0].mxu0
        %v1510 = vadd.f32 %v1427, %v1509
        %v1511 = vpop.f32.mrb[0].mxu0
        %v1512 = vadd.f32 %v1423, %v1511
        %v1513 = vpop.f32.mrb[0].mxu0
        %v1514 = vadd.f32 %v1427, %v1513
        %1515 = vdwg.mxu0
        %v1516 = vpack.c.bf16 %v1508, %v1508
        %v1517 = vpack.c.bf16 %v1510, %v1510
        %1519 = vrot.lane.b32.xlu0 %v1516, 64
        %v1520 = vpop.permute.xlu0 %1519
        %vm1521 = vcmask 130048
        %v1523 = vsel %vm1521, %v1516, 0
        %v1526 = vsel %vm1521, %v1520, 0
        %1528 = vmatprep.subr.bf16.mxu0 0
        %1529 = vmatpush1.bf16.xpose.msra.mxu0 %v1526
        %1530 = vmatprep.subr.bf16.mxu0 0
        %1531 = vmatpush1.bf16.xpose.msra.mxu0 0
        %1532 = vmatprep.subr.bf16.mxu0 0
        %1533 = vmatpush1.bf16.xpose.msra.mxu0 0
        %1534 = vmatprep.subr.bf16.mxu0 0
        %1535 = vmatpush1.bf16.xpose.msra.mxu0 0
        %1536 = vmatprep.subr.bf16.mxu0 0
        %1537 = vmatpush1.bf16.xpose.msra.mxu0 0
        %1538 = vmatprep.subr.bf16.mxu0 0
        %1539 = vmatpush1.bf16.xpose.msra.mxu0 0
        %1540 = vmatprep.subr.bf16.mxu0 0
        %1541 = vmatpush1.bf16.xpose.msra.mxu0 0
        %1542 = vmatprep.subr.bf16.mxu0 0
        %1543 = vmatpush1.bf16.xpose.msra.mxu0 0
        %1544 = vmatprep.subr.bf16.mxu0 0
        %1545 = vmatpush1.bf16.xpose.msra.mxu0 0
        %1546 = vmatprep.subr.bf16.mxu0 0
        %1547 = vmatpush1.bf16.xpose.msra.mxu0 0
        %1548 = vmatprep.subr.bf16.mxu0 0
        %1549 = vmatpush1.bf16.xpose.msra.mxu0 0
        %1550 = vmatprep.subr.bf16.mxu0 0
        %1551 = vmatpush1.bf16.xpose.msra.mxu0 0
        %1552 = vmatprep.subr.bf16.mxu0 0
        %1553 = vmatpush1.bf16.xpose.msra.mxu0 0
        %1554 = vmatprep.subr.bf16.mxu0 0
        %1555 = vmatpush1.bf16.xpose.msra.mxu0 0
        %1556 = vmatprep.subr.bf16.mxu0 0
        %1557 = vmatpush1.bf16.xpose.msra.mxu0 0
        %1558 = vmatprep.subr.bf16.mxu0 0
        %1559 = vmatpush1.bf16.xpose.msra.mxu0 0
        %1560 = vmatprep.mubr.bf16.mxu0 0
        %1561 = vmatmul.mubr.bf16.gmra.mrb[0].mxu0 %v1523
        %v1562 = vpop.f32.mrb[0].mxu0
        %v1563 = vadd.f32 0.0, %v1562
        %v1564 = vpop.f32.mrb[0].mxu0
        %v1565 = vpop.f32.mrb[0].mxu0
        %v1566 = vpop.f32.mrb[0].mxu0
        %1567 = vdwg.mxu0
        %v1568 = vmul.f32 %v1563, 0.25
        %vm1569 = vcmask 36864
        %v1570 = vsel %vm1569, %v1568, -inf
        %1571 = vmax.xlane.f32.xlu0 %v1570
        %v1572 = vpop.xlane.xlu0 %1571
        %v1573 = vsub.f32 %v1568, %v1572
        %v1574 = vmul.f32 %v1573, 1.442695
        %v1575 = vpow.pop %v1574
        %v1576 = vsel %vm1569, %v1575, 0.0
        %1577 = vadd.xlane.f32.xlu0 %v1576
        %v1578 = vpop.xlane.xlu0 %1577
        %v1579 = vrcp.pop %v1578
        %v1580 = vmul.f32 %v1575, %v1579
        %v1581 = vpack.c.bf16 %v1580, %v1580
        %vm1582 = vcmask 39936
        %v1584 = vsel %vm1582, %v1581, 0
        %vm1586 = vcmask 1041408
        %vm1587 = vcmask 1042432
        %v1588 = vsel %vm1586, 4294967295, 65535
        %v1589 = vsel %vm1587, %v1588, 0
        %v1591 = vand.u32 %v1517, %v1589
        %1593 = vmatprep.subr.bf16.mxu0 0
        %1594 = vmatpush1.bf16.msra.mxu0 %v1591
        %1595 = vmatprep.subr.bf16.mxu0 0
        %1596 = vmatpush1.bf16.msra.mxu0 0
        %1597 = vmatprep.subr.bf16.mxu0 0
        %1598 = vmatpush1.bf16.msra.mxu0 0
        %1599 = vmatprep.subr.bf16.mxu0 0
        %1600 = vmatpush1.bf16.msra.mxu0 0
        %1601 = vmatprep.subr.bf16.mxu0 0
        %1602 = vmatpush1.bf16.msra.mxu0 0
        %1603 = vmatprep.subr.bf16.mxu0 0
        %1604 = vmatpush1.bf16.msra.mxu0 0
        %1605 = vmatprep.subr.bf16.mxu0 0
        %1606 = vmatpush1.bf16.msra.mxu0 0
        %1607 = vmatprep.subr.bf16.mxu0 0
        %1608 = vmatpush1.bf16.msra.mxu0 0
        %1609 = vmatprep.subr.bf16.mxu0 0
        %1610 = vmatpush1.bf16.msra.mxu0 0
        %1611 = vmatprep.subr.bf16.mxu0 0
        %1612 = vmatpush1.bf16.msra.mxu0 0
        %1613 = vmatprep.subr.bf16.mxu0 0
        %1614 = vmatpush1.bf16.msra.mxu0 0
        %1615 = vmatprep.subr.bf16.mxu0 0
        %1616 = vmatpush1.bf16.msra.mxu0 0
        %1617 = vmatprep.subr.bf16.mxu0 0
        %1618 = vmatpush1.bf16.msra.mxu0 0
        %1619 = vmatprep.subr.bf16.mxu0 0
        %1620 = vmatpush1.bf16.msra.mxu0 0
        %1621 = vmatprep.subr.bf16.mxu0 0
        %1622 = vmatpush1.bf16.msra.mxu0 0
        %1623 = vmatprep.subr.bf16.mxu0 0
        %1624 = vmatpush1.bf16.msra.mxu0 0
        %1625 = vmatprep.mubr.bf16.mxu0 0
        %1626 = vmatmul.mubr.bf16.gmra.mrb[0].mxu0 %v1584
        %v1627 = vpop.f32.mrb[0].mxu0
        %v1628 = vadd.f32 0.0, %v1627
        %v1629 = vpop.f32.mrb[0].mxu0
        %v1630 = vpop.f32.mrb[0].mxu0
        %v1631 = vpop.f32.mrb[0].mxu0
        %1632 = vdwg.mxu0
        %1633 = vrot.lane.b32.xlu0 %v1516, 112
        %v1634 = vpop.permute.xlu0 %1633
        %1635 = vrot.lane.b32.xlu0 %v1516, 48
        %v1636 = vpop.permute.xlu0 %1635
        %v1638 = vsel %vm1521, %v1634, 0
        %v1641 = vsel %vm1521, %v1636, 0
        %1643 = vmatprep.subr.bf16.mxu0 0
        %1644 = vmatpush1.bf16.xpose.msra.mxu0 %v1641
        %1645 = vmatprep.subr.bf16.mxu0 0
        %1646 = vmatpush1.bf16.xpose.msra.mxu0 0
        %1647 = vmatprep.subr.bf16.mxu0 0
        %1648 = vmatpush1.bf16.xpose.msra.mxu0 0
        %1649 = vmatprep.subr.bf16.mxu0 0
        %1650 = vmatpush1.bf16.xpose.msra.mxu0 0
        %1651 = vmatprep.subr.bf16.mxu0 0
        %1652 = vmatpush1.bf16.xpose.msra.mxu0 0
        %1653 = vmatprep.subr.bf16.mxu0 0
        %1654 = vmatpush1.bf16.xpose.msra.mxu0 0
        %1655 = vmatprep.subr.bf16.mxu0 0
        %1656 = vmatpush1.bf16.xpose.msra.mxu0 0
        %1657 = vmatprep.subr.bf16.mxu0 0
        %1658 = vmatpush1.bf16.xpose.msra.mxu0 0
        %1659 = vmatprep.subr.bf16.mxu0 0
        %1660 = vmatpush1.bf16.xpose.msra.mxu0 0
        %1661 = vmatprep.subr.bf16.mxu0 0
        %1662 = vmatpush1.bf16.xpose.msra.mxu0 0
        %1663 = vmatprep.subr.bf16.mxu0 0
        %1664 = vmatpush1.bf16.xpose.msra.mxu0 0
        %1665 = vmatprep.subr.bf16.mxu0 0
        %1666 = vmatpush1.bf16.xpose.msra.mxu0 0
        %1667 = vmatprep.subr.bf16.mxu0 0
        %1668 = vmatpush1.bf16.xpose.msra.mxu0 0
        %1669 = vmatprep.subr.bf16.mxu0 0
        %1670 = vmatpush1.bf16.xpose.msra.mxu0 0
        %1671 = vmatprep.subr.bf16.mxu0 0
        %1672 = vmatpush1.bf16.xpose.msra.mxu0 0
        %1673 = vmatprep.subr.bf16.mxu0 0
        %1674 = vmatpush1.bf16.xpose.msra.mxu0 0
        %1675 = vmatprep.mubr.bf16.mxu0 0
        %1676 = vmatmul.mubr.bf16.gmra.mrb[0].mxu0 %v1638
        %v1677 = vpop.f32.mrb[0].mxu0
        %v1678 = vadd.f32 0.0, %v1677
        %v1679 = vpop.f32.mrb[0].mxu0
        %v1680 = vpop.f32.mrb[0].mxu0
        %v1681 = vpop.f32.mrb[0].mxu0
        %1682 = vdwg.mxu0
        %v1683 = vmul.f32 %v1678, 0.25
        %v1684 = vsel %vm1569, %v1683, -inf
        %1685 = vmax.xlane.f32.xlu0 %v1684
        %v1686 = vpop.xlane.xlu0 %1685
        %v1687 = vsub.f32 %v1683, %v1686
        %v1688 = vmul.f32 %v1687, 1.442695
        %v1689 = vpow.pop %v1688
        %v1690 = vsel %vm1569, %v1689, 0.0
        %1691 = vadd.xlane.f32.xlu0 %v1690
        %v1692 = vpop.xlane.xlu0 %1691
        %v1693 = vrcp.pop %v1692
        %v1694 = vmul.f32 %v1689, %v1693
        %v1695 = vpack.c.bf16 %v1694, %v1694
        %1697 = vrot.lane.b32.xlu0 %v1517, 112
        %v1698 = vpop.permute.xlu0 %1697
        %v1700 = vsel %vm1582, %v1695, 0
        %v1703 = vand.u32 %v1698, %v1589
        %1705 = vmatprep.subr.bf16.mxu0 0
        %1706 = vmatpush1.bf16.msra.mxu0 %v1703
        %1707 = vmatprep.subr.bf16.mxu0 0
        %1708 = vmatpush1.bf16.msra.mxu0 0
        %1709 = vmatprep.subr.bf16.mxu0 0
        %1710 = vmatpush1.bf16.msra.mxu0 0
        %1711 = vmatprep.subr.bf16.mxu0 0
        %1712 = vmatpush1.bf16.msra.mxu0 0
        %1713 = vmatprep.subr.bf16.mxu0 0
        %1714 = vmatpush1.bf16.msra.mxu0 0
        %1715 = vmatprep.subr.bf16.mxu0 0
        %1716 = vmatpush1.bf16.msra.mxu0 0
        %1717 = vmatprep.subr.bf16.mxu0 0
        %1718 = vmatpush1.bf16.msra.mxu0 0
        %1719 = vmatprep.subr.bf16.mxu0 0
        %1720 = vmatpush1.bf16.msra.mxu0 0
        %1721 = vmatprep.subr.bf16.mxu0 0
        %1722 = vmatpush1.bf16.msra.mxu0 0
        %1723 = vmatprep.subr.bf16.mxu0 0
        %1724 = vmatpush1.bf16.msra.mxu0 0
        %1725 = vmatprep.subr.bf16.mxu0 0
        %1726 = vmatpush1.bf16.msra.mxu0 0
        %1727 = vmatprep.subr.bf16.mxu0 0
        %1728 = vmatpush1.bf16.msra.mxu0 0
        %1729 = vmatprep.subr.bf16.mxu0 0
        %1730 = vmatpush1.bf16.msra.mxu0 0
        %1731 = vmatprep.subr.bf16.mxu0 0
        %1732 = vmatpush1.bf16.msra.mxu0 0
        %1733 = vmatprep.subr.bf16.mxu0 0
        %1734 = vmatpush1.bf16.msra.mxu0 0
        %1735 = vmatprep.subr.bf16.mxu0 0
        %1736 = vmatpush1.bf16.msra.mxu0 0
        %1737 = vmatprep.mubr.bf16.mxu0 0
        %1738 = vmatmul.mubr.bf16.gmra.mrb[0].mxu0 %v1700
        %v1739 = vpop.f32.mrb[0].mxu0
        %v1740 = vadd.f32 0.0, %v1739
        %v1741 = vpop.f32.mrb[0].mxu0
        %v1742 = vpop.f32.mrb[0].mxu0
        %v1743 = vpop.f32.mrb[0].mxu0
        %1744 = vdwg.mxu0
        %1745 = vrot.lane.b32.xlu0 %v1516, 96
        %v1746 = vpop.permute.xlu0 %1745
        %1747 = vrot.lane.b32.xlu0 %v1516, 32
        %v1748 = vpop.permute.xlu0 %1747
        %v1750 = vsel %vm1521, %v1746, 0
        %v1753 = vsel %vm1521, %v1748, 0
        %1755 = vmatprep.subr.bf16.mxu0 0
        %1756 = vmatpush1.bf16.xpose.msra.mxu0 %v1753
        %1757 = vmatprep.subr.bf16.mxu0 0
        %1758 = vmatpush1.bf16.xpose.msra.mxu0 0
        %1759 = vmatprep.subr.bf16.mxu0 0
        %1760 = vmatpush1.bf16.xpose.msra.mxu0 0
        %1761 = vmatprep.subr.bf16.mxu0 0
        %1762 = vmatpush1.bf16.xpose.msra.mxu0 0
        %1763 = vmatprep.subr.bf16.mxu0 0
        %1764 = vmatpush1.bf16.xpose.msra.mxu0 0
        %1765 = vmatprep.subr.bf16.mxu0 0
        %1766 = vmatpush1.bf16.xpose.msra.mxu0 0
        %1767 = vmatprep.subr.bf16.mxu0 0
        %1768 = vmatpush1.bf16.xpose.msra.mxu0 0
        %1769 = vmatprep.subr.bf16.mxu0 0
        %1770 = vmatpush1.bf16.xpose.msra.mxu0 0
        %1771 = vmatprep.subr.bf16.mxu0 0
        %1772 = vmatpush1.bf16.xpose.msra.mxu0 0
        %1773 = vmatprep.subr.bf16.mxu0 0
        %1774 = vmatpush1.bf16.xpose.msra.mxu0 0
        %1775 = vmatprep.subr.bf16.mxu0 0
        %1776 = vmatpush1.bf16.xpose.msra.mxu0 0
        %1777 = vmatprep.subr.bf16.mxu0 0
        %1778 = vmatpush1.bf16.xpose.msra.mxu0 0
        %1779 = vmatprep.subr.bf16.mxu0 0
        %1780 = vmatpush1.bf16.xpose.msra.mxu0 0
        %1781 = vmatprep.subr.bf16.mxu0 0
        %1782 = vmatpush1.bf16.xpose.msra.mxu0 0
        %1783 = vmatprep.subr.bf16.mxu0 0
        %1784 = vmatpush1.bf16.xpose.msra.mxu0 0
        %1785 = vmatprep.subr.bf16.mxu0 0
        %1786 = vmatpush1.bf16.xpose.msra.mxu0 0
        %1787 = vmatprep.mubr.bf16.mxu0 0
        %1788 = vmatmul.mubr.bf16.gmra.mrb[0].mxu0 %v1750
        %v1789 = vpop.f32.mrb[0].mxu0
        %v1790 = vadd.f32 0.0, %v1789
        %v1791 = vpop.f32.mrb[0].mxu0
        %v1792 = vpop.f32.mrb[0].mxu0
        %v1793 = vpop.f32.mrb[0].mxu0
        %1794 = vdwg.mxu0
        %v1795 = vmul.f32 %v1790, 0.25
        %v1796 = vsel %vm1569, %v1795, -inf
        %1797 = vmax.xlane.f32.xlu0 %v1796
        %v1798 = vpop.xlane.xlu0 %1797
        %v1799 = vsub.f32 %v1795, %v1798
        %v1800 = vmul.f32 %v1799, 1.442695
        %v1801 = vpow.pop %v1800
        %v1802 = vsel %vm1569, %v1801, 0.0
        %1803 = vadd.xlane.f32.xlu0 %v1802
        %v1804 = vpop.xlane.xlu0 %1803
        %v1805 = vrcp.pop %v1804
        %v1806 = vmul.f32 %v1801, %v1805
        %v1807 = vpack.c.bf16 %v1806, %v1806
        %1808 = vrot.lane.b32.xlu0 %v1517, 96
        %v1809 = vpop.permute.xlu0 %1808
        %v1811 = vsel %vm1582, %v1807, 0
        %v1814 = vand.u32 %v1809, %v1589
        %1816 = vmatprep.subr.bf16.mxu0 0
        %1817 = vmatpush1.bf16.msra.mxu0 %v1814
        %1818 = vmatprep.subr.bf16.mxu0 0
        %1819 = vmatpush1.bf16.msra.mxu0 0
        %1820 = vmatprep.subr.bf16.mxu0 0
        %1821 = vmatpush1.bf16.msra.mxu0 0
        %1822 = vmatprep.subr.bf16.mxu0 0
        %1823 = vmatpush1.bf16.msra.mxu0 0
        %1824 = vmatprep.subr.bf16.mxu0 0
        %1825 = vmatpush1.bf16.msra.mxu0 0
        %1826 = vmatprep.subr.bf16.mxu0 0
        %1827 = vmatpush1.bf16.msra.mxu0 0
        %1828 = vmatprep.subr.bf16.mxu0 0
        %1829 = vmatpush1.bf16.msra.mxu0 0
        %1830 = vmatprep.subr.bf16.mxu0 0
        %1831 = vmatpush1.bf16.msra.mxu0 0
        %1832 = vmatprep.subr.bf16.mxu0 0
        %1833 = vmatpush1.bf16.msra.mxu0 0
        %1834 = vmatprep.subr.bf16.mxu0 0
        %1835 = vmatpush1.bf16.msra.mxu0 0
        %1836 = vmatprep.subr.bf16.mxu0 0
        %1837 = vmatpush1.bf16.msra.mxu0 0
        %1838 = vmatprep.subr.bf16.mxu0 0
        %1839 = vmatpush1.bf16.msra.mxu0 0
        %1840 = vmatprep.subr.bf16.mxu0 0
        %1841 = vmatpush1.bf16.msra.mxu0 0
        %1842 = vmatprep.subr.bf16.mxu0 0
        %1843 = vmatpush1.bf16.msra.mxu0 0
        %1844 = vmatprep.subr.bf16.mxu0 0
        %1845 = vmatpush1.bf16.msra.mxu0 0
        %1846 = vmatprep.subr.bf16.mxu0 0
        %1847 = vmatpush1.bf16.msra.mxu0 0
        %1848 = vmatprep.mubr.bf16.mxu0 0
        %1849 = vmatmul.mubr.bf16.gmra.mrb[0].mxu0 %v1811
        %v1850 = vpop.f32.mrb[0].mxu0
        %v1851 = vadd.f32 0.0, %v1850
        %v1852 = vpop.f32.mrb[0].mxu0
        %v1853 = vpop.f32.mrb[0].mxu0
        %v1854 = vpop.f32.mrb[0].mxu0
        %1855 = vdwg.mxu0
        %1856 = vrot.lane.b32.xlu0 %v1516, 80
        %v1857 = vpop.permute.xlu0 %1856
        %1858 = vrot.lane.b32.xlu0 %v1516, 16
        %v1859 = vpop.permute.xlu0 %1858
        %v1861 = vsel %vm1521, %v1857, 0
        %v1864 = vsel %vm1521, %v1859, 0
        %1866 = vmatprep.subr.bf16.mxu0 0
        %1867 = vmatpush1.bf16.xpose.msra.mxu0 %v1864
        %1868 = vmatprep.subr.bf16.mxu0 0
        %1869 = vmatpush1.bf16.xpose.msra.mxu0 0
        %1870 = vmatprep.subr.bf16.mxu0 0
        %1871 = vmatpush1.bf16.xpose.msra.mxu0 0
        %1872 = vmatprep.subr.bf16.mxu0 0
        %1873 = vmatpush1.bf16.xpose.msra.mxu0 0
        %1874 = vmatprep.subr.bf16.mxu0 0
        %1875 = vmatpush1.bf16.xpose.msra.mxu0 0
        %1876 = vmatprep.subr.bf16.mxu0 0
        %1877 = vmatpush1.bf16.xpose.msra.mxu0 0
        %1878 = vmatprep.subr.bf16.mxu0 0
        %1879 = vmatpush1.bf16.xpose.msra.mxu0 0
        %1880 = vmatprep.subr.bf16.mxu0 0
        %1881 = vmatpush1.bf16.xpose.msra.mxu0 0
        %1882 = vmatprep.subr.bf16.mxu0 0
        %1883 = vmatpush1.bf16.xpose.msra.mxu0 0
        %1884 = vmatprep.subr.bf16.mxu0 0
        %1885 = vmatpush1.bf16.xpose.msra.mxu0 0
        %1886 = vmatprep.subr.bf16.mxu0 0
        %1887 = vmatpush1.bf16.xpose.msra.mxu0 0
        %1888 = vmatprep.subr.bf16.mxu0 0
        %1889 = vmatpush1.bf16.xpose.msra.mxu0 0
        %1890 = vmatprep.subr.bf16.mxu0 0
        %1891 = vmatpush1.bf16.xpose.msra.mxu0 0
        %1892 = vmatprep.subr.bf16.mxu0 0
        %1893 = vmatpush1.bf16.xpose.msra.mxu0 0
        %1894 = vmatprep.subr.bf16.mxu0 0
        %1895 = vmatpush1.bf16.xpose.msra.mxu0 0
        %1896 = vmatprep.subr.bf16.mxu0 0
        %1897 = vmatpush1.bf16.xpose.msra.mxu0 0
        %1898 = vmatprep.mubr.bf16.mxu0 0
        %1899 = vmatmul.mubr.bf16.gmra.mrb[0].mxu0 %v1861
        %v1900 = vpop.f32.mrb[0].mxu0
        %v1901 = vadd.f32 0.0, %v1900
        %v1902 = vpop.f32.mrb[0].mxu0
        %v1903 = vpop.f32.mrb[0].mxu0
        %v1904 = vpop.f32.mrb[0].mxu0
        %1905 = vdwg.mxu0
        %v1906 = vmul.f32 %v1901, 0.25
        %v1907 = vsel %vm1569, %v1906, -inf
        %1908 = vmax.xlane.f32.xlu0 %v1907
        %v1909 = vpop.xlane.xlu0 %1908
        %v1910 = vsub.f32 %v1906, %v1909
        %v1911 = vmul.f32 %v1910, 1.442695
        %v1912 = vpow.pop %v1911
        %v1913 = vsel %vm1569, %v1912, 0.0
        %1914 = vadd.xlane.f32.xlu0 %v1913
        %v1915 = vpop.xlane.xlu0 %1914
        %v1916 = vrcp.pop %v1915
        %v1917 = vmul.f32 %v1912, %v1916
        %v1918 = vpack.c.bf16 %v1917, %v1917
        %1919 = vrot.lane.b32.xlu0 %v1517, 80
        %v1920 = vpop.permute.xlu0 %1919
        %v1922 = vsel %vm1582, %v1918, 0
        %v1925 = vand.u32 %v1920, %v1589
        %1927 = vmatprep.subr.bf16.mxu0 0
        %1928 = vmatpush1.bf16.msra.mxu0 %v1925
        %1929 = vmatprep.subr.bf16.mxu0 0
        %1930 = vmatpush1.bf16.msra.mxu0 0
        %1931 = vmatprep.subr.bf16.mxu0 0
        %1932 = vmatpush1.bf16.msra.mxu0 0
        %1933 = vmatprep.subr.bf16.mxu0 0
        %1934 = vmatpush1.bf16.msra.mxu0 0
        %1935 = vmatprep.subr.bf16.mxu0 0
        %1936 = vmatpush1.bf16.msra.mxu0 0
        %1937 = vmatprep.subr.bf16.mxu0 0
        %1938 = vmatpush1.bf16.msra.mxu0 0
        %1939 = vmatprep.subr.bf16.mxu0 0
        %1940 = vmatpush1.bf16.msra.mxu0 0
        %1941 = vmatprep.subr.bf16.mxu0 0
        %1942 = vmatpush1.bf16.msra.mxu0 0
        %1943 = vmatprep.subr.bf16.mxu0 0
        %1944 = vmatpush1.bf16.msra.mxu0 0
        %1945 = vmatprep.subr.bf16.mxu0 0
        %1946 = vmatpush1.bf16.msra.mxu0 0
        %1947 = vmatprep.subr.bf16.mxu0 0
        %1948 = vmatpush1.bf16.msra.mxu0 0
        %1949 = vmatprep.subr.bf16.mxu0 0
        %1950 = vmatpush1.bf16.msra.mxu0 0
        %1951 = vmatprep.subr.bf16.mxu0 0
        %1952 = vmatpush1.bf16.msra.mxu0 0
        %1953 = vmatprep.subr.bf16.mxu0 0
        %1954 = vmatpush1.bf16.msra.mxu0 0
        %1955 = vmatprep.subr.bf16.mxu0 0
        %1956 = vmatpush1.bf16.msra.mxu0 0
        %1957 = vmatprep.subr.bf16.mxu0 0
        %1958 = vmatpush1.bf16.msra.mxu0 0
        %1959 = vmatprep.mubr.bf16.mxu0 0
        %1960 = vmatmul.mubr.bf16.gmra.mrb[0].mxu0 %v1922
        %v1961 = vpop.f32.mrb[0].mxu0
        %v1962 = vadd.f32 0.0, %v1961
        %v1963 = vpop.f32.mrb[0].mxu0
        %v1964 = vpop.f32.mrb[0].mxu0
        %v1965 = vpop.f32.mrb[0].mxu0
        %1966 = vdwg.mxu0
        %1968 = vrot.lane.b32.xlu0 %v1740, 16
        %v1969 = vpop.permute.xlu0 %1968
        %1972 = vrot.lane.b32.xlu0 %v1851, 32
        %v1973 = vpop.permute.xlu0 %1972
        %1976 = vrot.lane.b32.xlu0 %v1962, 48
        %v1977 = vpop.permute.xlu0 %1976
        %v1979 = vsel %vm1521, %v1628, %v1969
        %vm1980 = vcmask 261120
        %v1981 = vsel %vm1980, %v1979, %v1973
        %vm1982 = vcmask 392192
        %v1983 = vsel %vm1982, %v1981, %v1977
        %v1984 = vpack.c.bf16 %v1512, %v1508
        %v1985 = vpack.c.bf16 %v1514, %v1510
        %v1987 = vshrl.u32 %v1984, 16
        %v1989 = vrot.slane %v1987, 2
        %v1990 = vshll.u32 %v1984, 16
        %v1992 = vrot.slane %v1990, 3
        %v1993 = vor.u32 %v1989, %v1992
        %1994 = vrot.lane.b32.xlu0 %v1993, 64
        %v1995 = vpop.permute.xlu0 %1994
        %v1997 = vsel %vm1521, %v1993, 0
        %v2000 = vsel %vm1521, %v1995, 0
        %2002 = vmatprep.subr.bf16.mxu0 0
        %2003 = vmatpush1.bf16.xpose.msra.mxu0 %v2000
        %2004 = vmatprep.subr.bf16.mxu0 0
        %2005 = vmatpush1.bf16.xpose.msra.mxu0 0
        %2006 = vmatprep.subr.bf16.mxu0 0
        %2007 = vmatpush1.bf16.xpose.msra.mxu0 0
        %2008 = vmatprep.subr.bf16.mxu0 0
        %2009 = vmatpush1.bf16.xpose.msra.mxu0 0
        %2010 = vmatprep.subr.bf16.mxu0 0
        %2011 = vmatpush1.bf16.xpose.msra.mxu0 0
        %2012 = vmatprep.subr.bf16.mxu0 0
        %2013 = vmatpush1.bf16.xpose.msra.mxu0 0
        %2014 = vmatprep.subr.bf16.mxu0 0
        %2015 = vmatpush1.bf16.xpose.msra.mxu0 0
        %2016 = vmatprep.subr.bf16.mxu0 0
        %2017 = vmatpush1.bf16.xpose.msra.mxu0 0
        %2018 = vmatprep.subr.bf16.mxu0 0
        %2019 = vmatpush1.bf16.xpose.msra.mxu0 0
        %2020 = vmatprep.subr.bf16.mxu0 0
        %2021 = vmatpush1.bf16.xpose.msra.mxu0 0
        %2022 = vmatprep.subr.bf16.mxu0 0
        %2023 = vmatpush1.bf16.xpose.msra.mxu0 0
        %2024 = vmatprep.subr.bf16.mxu0 0
        %2025 = vmatpush1.bf16.xpose.msra.mxu0 0
        %2026 = vmatprep.subr.bf16.mxu0 0
        %2027 = vmatpush1.bf16.xpose.msra.mxu0 0
        %2028 = vmatprep.subr.bf16.mxu0 0
        %2029 = vmatpush1.bf16.xpose.msra.mxu0 0
        %2030 = vmatprep.subr.bf16.mxu0 0
        %2031 = vmatpush1.bf16.xpose.msra.mxu0 0
        %2032 = vmatprep.subr.bf16.mxu0 0
        %2033 = vmatpush1.bf16.xpose.msra.mxu0 0
        %2034 = vmatprep.mubr.bf16.mxu0 0
        %2035 = vmatmul.mubr.bf16.gmra.mrb[0].mxu0 %v1997
        %v2036 = vpop.f32.mrb[0].mxu0
        %v2037 = vadd.f32 0.0, %v2036
        %v2038 = vpop.f32.mrb[0].mxu0
        %v2039 = vpop.f32.mrb[0].mxu0
        %v2040 = vpop.f32.mrb[0].mxu0
        %2041 = vdwg.mxu0
        %v2042 = vmul.f32 %v2037, 0.25
        %v2043 = vsel %vm1569, %v2042, -inf
        %2044 = vmax.xlane.f32.xlu0 %v2043
        %v2045 = vpop.xlane.xlu0 %2044
        %v2046 = vsub.f32 %v2042, %v2045
        %v2047 = vmul.f32 %v2046, 1.442695
        %v2048 = vpow.pop %v2047
        %v2049 = vsel %vm1569, %v2048, 0.0
        %2050 = vadd.xlane.f32.xlu0 %v2049
        %v2051 = vpop.xlane.xlu0 %2050
        %v2052 = vrcp.pop %v2051
        %v2053 = vmul.f32 %v2048, %v2052
        %v2054 = vpack.c.bf16 %v2053, %v2053
        %v2056 = vshrl.u32 %v1985, 16
        %v2058 = vrot.slane %v2056, 2
        %v2059 = vshll.u32 %v1985, 16
        %v2061 = vrot.slane %v2059, 3
        %v2062 = vor.u32 %v2058, %v2061
        %v2064 = vsel %vm1582, %v2054, 0
        %v2067 = vand.u32 %v2062, %v1589
        %2069 = vmatprep.subr.bf16.mxu0 0
        %2070 = vmatpush1.bf16.msra.mxu0 %v2067
        %2071 = vmatprep.subr.bf16.mxu0 0
        %2072 = vmatpush1.bf16.msra.mxu0 0
        %2073 = vmatprep.subr.bf16.mxu0 0
        %2074 = vmatpush1.bf16.msra.mxu0 0
        %2075 = vmatprep.subr.bf16.mxu0 0
        %2076 = vmatpush1.bf16.msra.mxu0 0
        %2077 = vmatprep.subr.bf16.mxu0 0
        %2078 = vmatpush1.bf16.msra.mxu0 0
        %2079 = vmatprep.subr.bf16.mxu0 0
        %2080 = vmatpush1.bf16.msra.mxu0 0
        %2081 = vmatprep.subr.bf16.mxu0 0
        %2082 = vmatpush1.bf16.msra.mxu0 0
        %2083 = vmatprep.subr.bf16.mxu0 0
        %2084 = vmatpush1.bf16.msra.mxu0 0
        %2085 = vmatprep.subr.bf16.mxu0 0
        %2086 = vmatpush1.bf16.msra.mxu0 0
        %2087 = vmatprep.subr.bf16.mxu0 0
        %2088 = vmatpush1.bf16.msra.mxu0 0
        %2089 = vmatprep.subr.bf16.mxu0 0
        %2090 = vmatpush1.bf16.msra.mxu0 0
        %2091 = vmatprep.subr.bf16.mxu0 0
        %2092 = vmatpush1.bf16.msra.mxu0 0
        %2093 = vmatprep.subr.bf16.mxu0 0
        %2094 = vmatpush1.bf16.msra.mxu0 0
        %2095 = vmatprep.subr.bf16.mxu0 0
        %2096 = vmatpush1.bf16.msra.mxu0 0
        %2097 = vmatprep.subr.bf16.mxu0 0
        %2098 = vmatpush1.bf16.msra.mxu0 0
        %2099 = vmatprep.subr.bf16.mxu0 0
        %2100 = vmatpush1.bf16.msra.mxu0 0
        %2101 = vmatprep.mubr.bf16.mxu0 0
        %2102 = vmatmul.mubr.bf16.gmra.mrb[0].mxu0 %v2064
        %v2103 = vpop.f32.mrb[0].mxu0
        %v2104 = vadd.f32 0.0, %v2103
        %v2105 = vpop.f32.mrb[0].mxu0
        %v2106 = vpop.f32.mrb[0].mxu0
        %v2107 = vpop.f32.mrb[0].mxu0
        %2108 = vdwg.mxu0
        %2109 = vrot.lane.b32.xlu0 %v1993, 112
        %v2110 = vpop.permute.xlu0 %2109
        %2111 = vrot.lane.b32.xlu0 %v1993, 48
        %v2112 = vpop.permute.xlu0 %2111
        %v2114 = vsel %vm1521, %v2110, 0
        %v2117 = vsel %vm1521, %v2112, 0
        %2119 = vmatprep.subr.bf16.mxu0 0
        %2120 = vmatpush1.bf16.xpose.msra.mxu0 %v2117
        %2121 = vmatprep.subr.bf16.mxu0 0
        %2122 = vmatpush1.bf16.xpose.msra.mxu0 0
        %2123 = vmatprep.subr.bf16.mxu0 0
        %2124 = vmatpush1.bf16.xpose.msra.mxu0 0
        %2125 = vmatprep.subr.bf16.mxu0 0
        %2126 = vmatpush1.bf16.xpose.msra.mxu0 0
        %2127 = vmatprep.subr.bf16.mxu0 0
        %2128 = vmatpush1.bf16.xpose.msra.mxu0 0
        %2129 = vmatprep.subr.bf16.mxu0 0
        %2130 = vmatpush1.bf16.xpose.msra.mxu0 0
        %2131 = vmatprep.subr.bf16.mxu0 0
        %2132 = vmatpush1.bf16.xpose.msra.mxu0 0
        %2133 = vmatprep.subr.bf16.mxu0 0
        %2134 = vmatpush1.bf16.xpose.msra.mxu0 0
        %2135 = vmatprep.subr.bf16.mxu0 0
        %2136 = vmatpush1.bf16.xpose.msra.mxu0 0
        %2137 = vmatprep.subr.bf16.mxu0 0
        %2138 = vmatpush1.bf16.xpose.msra.mxu0 0
        %2139 = vmatprep.subr.bf16.mxu0 0
        %2140 = vmatpush1.bf16.xpose.msra.mxu0 0
        %2141 = vmatprep.subr.bf16.mxu0 0
        %2142 = vmatpush1.bf16.xpose.msra.mxu0 0
        %2143 = vmatprep.subr.bf16.mxu0 0
        %2144 = vmatpush1.bf16.xpose.msra.mxu0 0
        %2145 = vmatprep.subr.bf16.mxu0 0
        %2146 = vmatpush1.bf16.xpose.msra.mxu0 0
        %2147 = vmatprep.subr.bf16.mxu0 0
        %2148 = vmatpush1.bf16.xpose.msra.mxu0 0
        %2149 = vmatprep.subr.bf16.mxu0 0
        %2150 = vmatpush1.bf16.xpose.msra.mxu0 0
        %2151 = vmatprep.mubr.bf16.mxu0 0
        %2152 = vmatmul.mubr.bf16.gmra.mrb[0].mxu0 %v2114
        %v2153 = vpop.f32.mrb[0].mxu0
        %v2154 = vadd.f32 0.0, %v2153
        %v2155 = vpop.f32.mrb[0].mxu0
        %v2156 = vpop.f32.mrb[0].mxu0
        %v2157 = vpop.f32.mrb[0].mxu0
        %2158 = vdwg.mxu0
        %v2159 = vmul.f32 %v2154, 0.25
        %v2160 = vsel %vm1569, %v2159, -inf
        %2161 = vmax.xlane.f32.xlu0 %v2160
        %v2162 = vpop.xlane.xlu0 %2161
        %v2163 = vsub.f32 %v2159, %v2162
        %v2164 = vmul.f32 %v2163, 1.442695
        %v2165 = vpow.pop %v2164
        %v2166 = vsel %vm1569, %v2165, 0.0
        %2167 = vadd.xlane.f32.xlu0 %v2166
        %v2168 = vpop.xlane.xlu0 %2167
        %v2169 = vrcp.pop %v2168
        %v2170 = vmul.f32 %v2165, %v2169
        %v2171 = vpack.c.bf16 %v2170, %v2170
        %2172 = vrot.lane.b32.xlu0 %v2062, 112
        %v2173 = vpop.permute.xlu0 %2172
        %v2175 = vsel %vm1582, %v2171, 0
        %v2178 = vand.u32 %v2173, %v1589
        %2180 = vmatprep.subr.bf16.mxu0 0
        %2181 = vmatpush1.bf16.msra.mxu0 %v2178
        %2182 = vmatprep.subr.bf16.mxu0 0
        %2183 = vmatpush1.bf16.msra.mxu0 0
        %2184 = vmatprep.subr.bf16.mxu0 0
        %2185 = vmatpush1.bf16.msra.mxu0 0
        %2186 = vmatprep.subr.bf16.mxu0 0
        %2187 = vmatpush1.bf16.msra.mxu0 0
        %2188 = vmatprep.subr.bf16.mxu0 0
        %2189 = vmatpush1.bf16.msra.mxu0 0
        %2190 = vmatprep.subr.bf16.mxu0 0
        %2191 = vmatpush1.bf16.msra.mxu0 0
        %2192 = vmatprep.subr.bf16.mxu0 0
        %2193 = vmatpush1.bf16.msra.mxu0 0
        %2194 = vmatprep.subr.bf16.mxu0 0
        %2195 = vmatpush1.bf16.msra.mxu0 0
        %2196 = vmatprep.subr.bf16.mxu0 0
        %2197 = vmatpush1.bf16.msra.mxu0 0
        %2198 = vmatprep.subr.bf16.mxu0 0
        %2199 = vmatpush1.bf16.msra.mxu0 0
        %2200 = vmatprep.subr.bf16.mxu0 0
        %2201 = vmatpush1.bf16.msra.mxu0 0
        %2202 = vmatprep.subr.bf16.mxu0 0
        %2203 = vmatpush1.bf16.msra.mxu0 0
        %2204 = vmatprep.subr.bf16.mxu0 0
        %2205 = vmatpush1.bf16.msra.mxu0 0
        %2206 = vmatprep.subr.bf16.mxu0 0
        %2207 = vmatpush1.bf16.msra.mxu0 0
        %2208 = vmatprep.subr.bf16.mxu0 0
        %2209 = vmatpush1.bf16.msra.mxu0 0
        %2210 = vmatprep.subr.bf16.mxu0 0
        %2211 = vmatpush1.bf16.msra.mxu0 0
        %2212 = vmatprep.mubr.bf16.mxu0 0
        %2213 = vmatmul.mubr.bf16.gmra.mrb[0].mxu0 %v2175
        %v2214 = vpop.f32.mrb[0].mxu0
        %v2215 = vadd.f32 0.0, %v2214
        %v2216 = vpop.f32.mrb[0].mxu0
        %v2217 = vpop.f32.mrb[0].mxu0
        %v2218 = vpop.f32.mrb[0].mxu0
        %2219 = vdwg.mxu0
        %2220 = vrot.lane.b32.xlu0 %v1993, 96
        %v2221 = vpop.permute.xlu0 %2220
        %2222 = vrot.lane.b32.xlu0 %v1993, 32
        %v2223 = vpop.permute.xlu0 %2222
        %v2225 = vsel %vm1521, %v2221, 0
        %v2228 = vsel %vm1521, %v2223, 0
        %2230 = vmatprep.subr.bf16.mxu0 0
        %2231 = vmatpush1.bf16.xpose.msra.mxu0 %v2228
        %2232 = vmatprep.subr.bf16.mxu0 0
        %2233 = vmatpush1.bf16.xpose.msra.mxu0 0
        %2234 = vmatprep.subr.bf16.mxu0 0
        %2235 = vmatpush1.bf16.xpose.msra.mxu0 0
        %2236 = vmatprep.subr.bf16.mxu0 0
        %2237 = vmatpush1.bf16.xpose.msra.mxu0 0
        %2238 = vmatprep.subr.bf16.mxu0 0
        %2239 = vmatpush1.bf16.xpose.msra.mxu0 0
        %2240 = vmatprep.subr.bf16.mxu0 0
        %2241 = vmatpush1.bf16.xpose.msra.mxu0 0
        %2242 = vmatprep.subr.bf16.mxu0 0
        %2243 = vmatpush1.bf16.xpose.msra.mxu0 0
        %2244 = vmatprep.subr.bf16.mxu0 0
        %2245 = vmatpush1.bf16.xpose.msra.mxu0 0
        %2246 = vmatprep.subr.bf16.mxu0 0
        %2247 = vmatpush1.bf16.xpose.msra.mxu0 0
        %2248 = vmatprep.subr.bf16.mxu0 0
        %2249 = vmatpush1.bf16.xpose.msra.mxu0 0
        %2250 = vmatprep.subr.bf16.mxu0 0
        %2251 = vmatpush1.bf16.xpose.msra.mxu0 0
        %2252 = vmatprep.subr.bf16.mxu0 0
        %2253 = vmatpush1.bf16.xpose.msra.mxu0 0
        %2254 = vmatprep.subr.bf16.mxu0 0
        %2255 = vmatpush1.bf16.xpose.msra.mxu0 0
        %2256 = vmatprep.subr.bf16.mxu0 0
        %2257 = vmatpush1.bf16.xpose.msra.mxu0 0
        %2258 = vmatprep.subr.bf16.mxu0 0
        %2259 = vmatpush1.bf16.xpose.msra.mxu0 0
        %2260 = vmatprep.subr.bf16.mxu0 0
        %2261 = vmatpush1.bf16.xpose.msra.mxu0 0
        %2262 = vmatprep.mubr.bf16.mxu0 0
        %2263 = vmatmul.mubr.bf16.gmra.mrb[0].mxu0 %v2225
        %v2264 = vpop.f32.mrb[0].mxu0
        %v2265 = vadd.f32 0.0, %v2264
        %v2266 = vpop.f32.mrb[0].mxu0
        %v2267 = vpop.f32.mrb[0].mxu0
        %v2268 = vpop.f32.mrb[0].mxu0
        %2269 = vdwg.mxu0
        %v2270 = vmul.f32 %v2265, 0.25
        %v2271 = vsel %vm1569, %v2270, -inf
        %2272 = vmax.xlane.f32.xlu0 %v2271
        %v2273 = vpop.xlane.xlu0 %2272
        %v2274 = vsub.f32 %v2270, %v2273
        %v2275 = vmul.f32 %v2274, 1.442695
        %v2276 = vpow.pop %v2275
        %v2277 = vsel %vm1569, %v2276, 0.0
        %2278 = vadd.xlane.f32.xlu0 %v2277
        %v2279 = vpop.xlane.xlu0 %2278
        %v2280 = vrcp.pop %v2279
        %v2281 = vmul.f32 %v2276, %v2280
        %v2282 = vpack.c.bf16 %v2281, %v2281
        %2283 = vrot.lane.b32.xlu0 %v2062, 96
        %v2284 = vpop.permute.xlu0 %2283
        %v2286 = vsel %vm1582, %v2282, 0
        %v2289 = vand.u32 %v2284, %v1589
        %2291 = vmatprep.subr.bf16.mxu0 0
        %2292 = vmatpush1.bf16.msra.mxu0 %v2289
        %2293 = vmatprep.subr.bf16.mxu0 0
        %2294 = vmatpush1.bf16.msra.mxu0 0
        %2295 = vmatprep.subr.bf16.mxu0 0
        %2296 = vmatpush1.bf16.msra.mxu0 0
        %2297 = vmatprep.subr.bf16.mxu0 0
        %2298 = vmatpush1.bf16.msra.mxu0 0
        %2299 = vmatprep.subr.bf16.mxu0 0
        %2300 = vmatpush1.bf16.msra.mxu0 0
        %2301 = vmatprep.subr.bf16.mxu0 0
        %2302 = vmatpush1.bf16.msra.mxu0 0
        %2303 = vmatprep.subr.bf16.mxu0 0
        %2304 = vmatpush1.bf16.msra.mxu0 0
        %2305 = vmatprep.subr.bf16.mxu0 0
        %2306 = vmatpush1.bf16.msra.mxu0 0
        %2307 = vmatprep.subr.bf16.mxu0 0
        %2308 = vmatpush1.bf16.msra.mxu0 0
        %2309 = vmatprep.subr.bf16.mxu0 0
        %2310 = vmatpush1.bf16.msra.mxu0 0
        %2311 = vmatprep.subr.bf16.mxu0 0
        %2312 = vmatpush1.bf16.msra.mxu0 0
        %2313 = vmatprep.subr.bf16.mxu0 0
        %2314 = vmatpush1.bf16.msra.mxu0 0
        %2315 = vmatprep.subr.bf16.mxu0 0
        %2316 = vmatpush1.bf16.msra.mxu0 0
        %2317 = vmatprep.subr.bf16.mxu0 0
        %2318 = vmatpush1.bf16.msra.mxu0 0
        %2319 = vmatprep.subr.bf16.mxu0 0
        %2320 = vmatpush1.bf16.msra.mxu0 0
        %2321 = vmatprep.subr.bf16.mxu0 0
        %2322 = vmatpush1.bf16.msra.mxu0 0
        %2323 = vmatprep.mubr.bf16.mxu0 0
        %2324 = vmatmul.mubr.bf16.gmra.mrb[0].mxu0 %v2286
        %v2325 = vpop.f32.mrb[0].mxu0
        %v2326 = vadd.f32 0.0, %v2325
        %v2327 = vpop.f32.mrb[0].mxu0
        %v2328 = vpop.f32.mrb[0].mxu0
        %v2329 = vpop.f32.mrb[0].mxu0
        %2330 = vdwg.mxu0
        %2331 = vrot.lane.b32.xlu0 %v1993, 80
        %v2332 = vpop.permute.xlu0 %2331
        %2333 = vrot.lane.b32.xlu0 %v1993, 16
        %v2334 = vpop.permute.xlu0 %2333
        %v2336 = vsel %vm1521, %v2332, 0
        %v2339 = vsel %vm1521, %v2334, 0
        %2341 = vmatprep.subr.bf16.mxu0 0
        %2342 = vmatpush1.bf16.xpose.msra.mxu0 %v2339
        %2343 = vmatprep.subr.bf16.mxu0 0
        %2344 = vmatpush1.bf16.xpose.msra.mxu0 0
        %2345 = vmatprep.subr.bf16.mxu0 0
        %2346 = vmatpush1.bf16.xpose.msra.mxu0 0
        %2347 = vmatprep.subr.bf16.mxu0 0
        %2348 = vmatpush1.bf16.xpose.msra.mxu0 0
        %2349 = vmatprep.subr.bf16.mxu0 0
        %2350 = vmatpush1.bf16.xpose.msra.mxu0 0
        %2351 = vmatprep.subr.bf16.mxu0 0
        %2352 = vmatpush1.bf16.xpose.msra.mxu0 0
        %2353 = vmatprep.subr.bf16.mxu0 0
        %2354 = vmatpush1.bf16.xpose.msra.mxu0 0
        %2355 = vmatprep.subr.bf16.mxu0 0
        %2356 = vmatpush1.bf16.xpose.msra.mxu0 0
        %2357 = vmatprep.subr.bf16.mxu0 0
        %2358 = vmatpush1.bf16.xpose.msra.mxu0 0
        %2359 = vmatprep.subr.bf16.mxu0 0
        %2360 = vmatpush1.bf16.xpose.msra.mxu0 0
        %2361 = vmatprep.subr.bf16.mxu0 0
        %2362 = vmatpush1.bf16.xpose.msra.mxu0 0
        %2363 = vmatprep.subr.bf16.mxu0 0
        %2364 = vmatpush1.bf16.xpose.msra.mxu0 0
        %2365 = vmatprep.subr.bf16.mxu0 0
        %2366 = vmatpush1.bf16.xpose.msra.mxu0 0
        %2367 = vmatprep.subr.bf16.mxu0 0
        %2368 = vmatpush1.bf16.xpose.msra.mxu0 0
        %2369 = vmatprep.subr.bf16.mxu0 0
        %2370 = vmatpush1.bf16.xpose.msra.mxu0 0
        %2371 = vmatprep.subr.bf16.mxu0 0
        %2372 = vmatpush1.bf16.xpose.msra.mxu0 0
        %2373 = vmatprep.mubr.bf16.mxu0 0
        %2374 = vmatmul.mubr.bf16.gmra.mrb[0].mxu0 %v2336
        %v2375 = vpop.f32.mrb[0].mxu0
        %v2376 = vadd.f32 0.0, %v2375
        %v2377 = vpop.f32.mrb[0].mxu0
        %v2378 = vpop.f32.mrb[0].mxu0
        %v2379 = vpop.f32.mrb[0].mxu0
        %2380 = vdwg.mxu0
        %v2381 = vmul.f32 %v2376, 0.25
        %v2382 = vsel %vm1569, %v2381, -inf
        %2383 = vmax.xlane.f32.xlu0 %v2382
        %v2384 = vpop.xlane.xlu0 %2383
        %v2385 = vsub.f32 %v2381, %v2384
        %v2386 = vmul.f32 %v2385, 1.442695
        %v2387 = vpow.pop %v2386
        %v2388 = vsel %vm1569, %v2387, 0.0
        %2389 = vadd.xlane.f32.xlu0 %v2388
        %v2390 = vpop.xlane.xlu0 %2389
        %v2391 = vrcp.pop %v2390
        %v2392 = vmul.f32 %v2387, %v2391
        %v2393 = vpack.c.bf16 %v2392, %v2392
        %2394 = vrot.lane.b32.xlu0 %v2062, 80
        %v2395 = vpop.permute.xlu0 %2394
        %v2397 = vsel %vm1582, %v2393, 0
        %v2400 = vand.u32 %v2395, %v1589
        %2402 = vmatprep.subr.bf16.mxu0 0
        %2403 = vmatpush1.bf16.msra.mxu0 %v2400
        %2404 = vmatprep.subr.bf16.mxu0 0
        %2405 = vmatpush1.bf16.msra.mxu0 0
        %2406 = vmatprep.subr.bf16.mxu0 0
        %2407 = vmatpush1.bf16.msra.mxu0 0
        %2408 = vmatprep.subr.bf16.mxu0 0
        %2409 = vmatpush1.bf16.msra.mxu0 0
        %2410 = vmatprep.subr.bf16.mxu0 0
        %2411 = vmatpush1.bf16.msra.mxu0 0
        %2412 = vmatprep.subr.bf16.mxu0 0
        %2413 = vmatpush1.bf16.msra.mxu0 0
        %2414 = vmatprep.subr.bf16.mxu0 0
        %2415 = vmatpush1.bf16.msra.mxu0 0
        %2416 = vmatprep.subr.bf16.mxu0 0
        %2417 = vmatpush1.bf16.msra.mxu0 0
        %2418 = vmatprep.subr.bf16.mxu0 0
        %2419 = vmatpush1.bf16.msra.mxu0 0
        %2420 = vmatprep.subr.bf16.mxu0 0
        %2421 = vmatpush1.bf16.msra.mxu0 0
        %2422 = vmatprep.subr.bf16.mxu0 0
        %2423 = vmatpush1.bf16.msra.mxu0 0
        %2424 = vmatprep.subr.bf16.mxu0 0
        %2425 = vmatpush1.bf16.msra.mxu0 0
        %2426 = vmatprep.subr.bf16.mxu0 0
        %2427 = vmatpush1.bf16.msra.mxu0 0
        %2428 = vmatprep.subr.bf16.mxu0 0
        %2429 = vmatpush1.bf16.msra.mxu0 0
        %2430 = vmatprep.subr.bf16.mxu0 0
        %2431 = vmatpush1.bf16.msra.mxu0 0
        %2432 = vmatprep.subr.bf16.mxu0 0
        %2433 = vmatpush1.bf16.msra.mxu0 0
        %2434 = vmatprep.mubr.bf16.mxu0 0
        %2435 = vmatmul.mubr.bf16.gmra.mrb[0].mxu0 %v2397
        %v2436 = vpop.f32.mrb[0].mxu0
        %v2437 = vadd.f32 0.0, %v2436
        %v2438 = vpop.f32.mrb[0].mxu0
        %v2439 = vpop.f32.mrb[0].mxu0
        %v2440 = vpop.f32.mrb[0].mxu0
        %2441 = vdwg.mxu0
        %2443 = vrot.lane.b32.xlu0 %v2215, 16
        %v2444 = vpop.permute.xlu0 %2443
        %2447 = vrot.lane.b32.xlu0 %v2326, 32
        %v2448 = vpop.permute.xlu0 %2447
        %2451 = vrot.lane.b32.xlu0 %v2437, 48
        %v2452 = vpop.permute.xlu0 %2451
        %v2454 = vsel %vm1521, %v2104, %v2444
        %v2455 = vsel %vm1980, %v2454, %v2448
        %v2456 = vsel %vm1982, %v2455, %v2452
        %v2458 = vrot.slane %v2456, 3
        %vm2460 = vcmask 1044480
        %v2461 = vsel %vm2460, %v1983, %v2458
        %v2462 = vpack.c.bf16 %v2458, %v2461
        %v2463 = vld [vmem:[%s767] sm:$0xf]
        %v2464 = vld [vmem:[%s767 + $0x4] sm:$0xf]
        %v2465 = vld [vmem:[%s767 + $0x8] sm:$0xf]
        %v2466 = vld [vmem:[%s767 + $0xc] sm:$0xf]
        %v2467 = vld [vmem:[%s767 + $0x10] sm:$0xf]
        %v2468 = vld [vmem:[%s767 + $0x14] sm:$0xf]
        %v2469 = vld [vmem:[%s767 + $0x18] sm:$0xf]
        %v2470 = vld [vmem:[%s767 + $0x1c] sm:$0xf]
        %v2479 = vunpack.c.l.b16 %v2463
        %v2480 = vunpack.c.l.b16 %v2464
        %v2481 = vunpack.c.l.b16 %v2465
        %v2482 = vunpack.c.l.b16 %v2466
        %v2483 = vunpack.c.l.b16 %v2467
        %v2484 = vunpack.c.l.b16 %v2468
        %v2485 = vunpack.c.l.b16 %v2469
        %v2486 = vunpack.c.l.b16 %v2470
        %v2487 = vpack.c.b16 %v2480, %v2479
        %v2488 = vpack.c.b16 %v2482, %v2481
        %v2489 = vpack.c.b16 %v2484, %v2483
        %v2490 = vpack.c.b16 %v2486, %v2485
        %v2496 = vsel %vm1364, %v2462, 0
        %2498 = vmatprep.subr.bf16.mxu0 0
        %2499 = vmatpush1.bf16.msra.mxu0 %v2487
        %2500 = vmatprep.subr.bf16.mxu0 0
        %2501 = vmatpush1.bf16.msra.mxu0 %v2488
        %2502 = vmatprep.subr.bf16.mxu0 0
        %2503 = vmatpush1.bf16.msra.mxu0 %v2489
        %2504 = vmatprep.subr.bf16.mxu0 0
        %2505 = vmatpush1.bf16.msra.mxu0 %v2490
        %2506 = vmatprep.subr.bf16.mxu0 0
        %2507 = vmatpush1.bf16.msra.mxu0 0
        %2508 = vmatprep.subr.bf16.mxu0 0
        %2509 = vmatpush1.bf16.msra.mxu0 0
        %2510 = vmatprep.subr.bf16.mxu0 0
        %2511 = vmatpush1.bf16.msra.mxu0 0
        %2512 = vmatprep.subr.bf16.mxu0 0
        %2513 = vmatpush1.bf16.msra.mxu0 0
        %2514 = vmatprep.subr.bf16.mxu0 0
        %2515 = vmatpush1.bf16.msra.mxu0 0
        %2516 = vmatprep.subr.bf16.mxu0 0
        %2517 = vmatpush1.bf16.msra.mxu0 0
        %2518 = vmatprep.subr.bf16.mxu0 0
        %2519 = vmatpush1.bf16.msra.mxu0 0
        %2520 = vmatprep.subr.bf16.mxu0 0
        %2521 = vmatpush1.bf16.msra.mxu0 0
        %2522 = vmatprep.subr.bf16.mxu0 0
        %2523 = vmatpush1.bf16.msra.mxu0 0
        %2524 = vmatprep.subr.bf16.mxu0 0
        %2525 = vmatpush1.bf16.msra.mxu0 0
        %2526 = vmatprep.subr.bf16.mxu0 0
        %2527 = vmatpush1.bf16.msra.mxu0 0
        %2528 = vmatprep.subr.bf16.mxu0 0
        %2529 = vmatpush1.bf16.msra.mxu0 0
        %2530 = vmatprep.mubr.bf16.mxu0 0
        %2531 = vmatmul.mubr.bf16.gmra.mrb[0].mxu0 %v2496
        %v2532 = vpop.f32.mrb[0].mxu0
        %v2533 = vadd.f32 0.0, %v2532
        %v2534 = vpop.f32.mrb[0].mxu0
        %v2535 = vpop.f32.mrb[0].mxu0
        %v2536 = vadd.f32 0.0, %v2535
        %v2537 = vpop.f32.mrb[0].mxu0
        %2538 = vdwg.mxu0
        %v2539 = vadd.f32 %v1360, %v2533
        %v2540 = vadd.f32 %v1361, %v2536
        %v2541 = vld [vmem:[%s770] sm:$0x1]
        %v2543 = vlaneseq
        %v2544 = vshrl.u32 %v2543, 7
        %v2545 = vsub.s32 0, %v2544
        %v2546 = vrot.slane %v2541, %v2545
        %v2548 = vadd.f32 %v2539, %v2546
        %v2549 = vadd.f32 %v2540, %v2546
        %v2550 = vld [vmem:[%s773] sm:$0x1]
        %v2551 = vld [vmem:[%s776] sm:$0x1]
        %v2552 = vsel %vm1364, %v2548, 0.0
        %2553 = vadd.xlane.f32.xlu0 %v2552
        %v2554 = vpop.xlane.xlu0 %2553
        %v2555 = vsel %vm1368, %v2549, 0.0
        %2556 = vadd.xlane.f32.xlu0 %v2555
        %v2557 = vpop.xlane.xlu0 %2556
        %v2558 = vmul.f32 %v2554, %v1372
        %v2559 = vmul.f32 %v2557, %v1372
        %v2560 = vsub.f32 %v2548, %v2558
        %v2561 = vsub.f32 %v2549, %v2559
        %v2562 = vmul.f32 %v2560, %v2560
        %v2563 = vmul.f32 %v2561, %v2561
        %v2564 = vsel %vm1364, %v2562, 0.0
        %2565 = vadd.xlane.f32.xlu0 %v2564
        %v2566 = vpop.xlane.xlu0 %2565
        %v2567 = vsel %vm1368, %v2563, 0.0
        %2568 = vadd.xlane.f32.xlu0 %v2567
        %v2569 = vpop.xlane.xlu0 %2568
        %v2570 = vmul.f32 %v2566, %v1372
        %v2571 = vmul.f32 %v2569, %v1372
        %v2572 = vadd.f32 %v2570, 1e-06
        %v2573 = vadd.f32 %v2571, 1e-06
        %v2574 = vrsqrt.pop %v2572
        %v2575 = vrsqrt.pop %v2573
        %v2576 = vmul.f32 %v2560, %v2574
        %v2577 = vmul.f32 %v2561, %v2575
        %v2579 = vlaneseq
        %v2580 = vshrl.u32 %v2579, 7
        %v2581 = vsub.s32 0, %v2580
        %v2582 = vrot.slane %v2550, %v2581
        %v2584 = vmul.f32 %v2576, %v2582
        %v2585 = vmul.f32 %v2577, %v2582
        %v2587 = vlaneseq
        %v2588 = vshrl.u32 %v2587, 7
        %v2589 = vsub.s32 0, %v2588
        %v2590 = vrot.slane %v2551, %v2589
        %v2592 = vadd.f32 %v2584, %v2590
        %v2593 = vadd.f32 %v2585, %v2590
        %v2594 = vpack.c.bf16 %v2593, %v2592
        %v2595 = vld [vmem:[%s781] sm:$0xff]
        %v2596 = vld [vmem:[%s781 + $0x8] sm:$0xff]
        %v2597 = vld [vmem:[%s781 + $0x10] sm:$0xff]
        %v2598 = vld [vmem:[%s781 + $0x18] sm:$0xff]
        %v2599 = vld [vmem:[%s781 + $0x20] sm:$0xff]
        %v2600 = vld [vmem:[%s781 + $0x28] sm:$0xff]
        %v2601 = vld [vmem:[%s781 + $0x30] sm:$0xff]
        %v2602 = vld [vmem:[%s781 + $0x38] sm:$0xff]
        %v2603 = vld [vmem:[%s785] sm:$0x3]
        %v2605 = vlaneseq
        %v2606 = vshrl.u32 %v2605, 7
        %v2607 = vsub.s32 0, %v2606
        %v2608 = vrot.slane %v2603, %v2607
        %v2609 = vlaneseq
        %v2610 = vshrl.u32 %v2609, 7
        %v2611 = vsub.s32 1, %v2610
        %v2612 = vrot.slane %v2603, %v2611
        %v2623 = vunpack.c.l.b16 %v2595
        %v2624 = vunpack.c.h.b16 %v2595
        %v2625 = vunpack.c.l.b16 %v2596
        %v2626 = vunpack.c.h.b16 %v2596
        %v2627 = vunpack.c.l.b16 %v2597
        %v2628 = vunpack.c.h.b16 %v2597
        %v2629 = vunpack.c.l.b16 %v2598
        %v2630 = vunpack.c.h.b16 %v2598
        %v2631 = vunpack.c.l.b16 %v2599
        %v2632 = vunpack.c.h.b16 %v2599
        %v2633 = vunpack.c.l.b16 %v2600
        %v2634 = vunpack.c.h.b16 %v2600
        %v2635 = vunpack.c.l.b16 %v2601
        %v2636 = vunpack.c.h.b16 %v2601
        %v2637 = vunpack.c.l.b16 %v2602
        %v2638 = vunpack.c.h.b16 %v2602
        %v2639 = vpack.c.b16 %v2625, %v2623
        %v2640 = vpack.c.b16 %v2626, %v2624
        %v2641 = vpack.c.b16 %v2629, %v2627
        %v2642 = vpack.c.b16 %v2630, %v2628
        %v2643 = vpack.c.b16 %v2633, %v2631
        %v2644 = vpack.c.b16 %v2634, %v2632
        %v2645 = vpack.c.b16 %v2637, %v2635
        %v2646 = vpack.c.b16 %v2638, %v2636
        %v2656 = vsel %vm1364, %v2594, 0
        %2658 = vmatprep.subr.bf16.mxu0 %v2640
        %2659 = vmatpush1.bf16.msra.mxu0 %v2639
        %2660 = vmatprep.subr.bf16.mxu0 %v2642
        %2661 = vmatpush1.bf16.msra.mxu0 %v2641
        %2662 = vmatprep.subr.bf16.mxu0 %v2644
        %2663 = vmatpush1.bf16.msra.mxu0 %v2643
        %2664 = vmatprep.subr.bf16.mxu0 %v2646
        %2665 = vmatpush1.bf16.msra.mxu0 %v2645
        %2666 = vmatprep.subr.bf16.mxu0 0
        %2667 = vmatpush1.bf16.msra.mxu0 0
        %2668 = vmatprep.subr.bf16.mxu0 0
        %2669 = vmatpush1.bf16.msra.mxu0 0
        %2670 = vmatprep.subr.bf16.mxu0 0
        %2671 = vmatpush1.bf16.msra.mxu0 0
        %2672 = vmatprep.subr.bf16.mxu0 0
        %2673 = vmatpush1.bf16.msra.mxu0 0
        %2674 = vmatprep.subr.bf16.mxu0 0
        %2675 = vmatpush1.bf16.msra.mxu0 0
        %2676 = vmatprep.subr.bf16.mxu0 0
        %2677 = vmatpush1.bf16.msra.mxu0 0
        %2678 = vmatprep.subr.bf16.mxu0 0
        %2679 = vmatpush1.bf16.msra.mxu0 0
        %2680 = vmatprep.subr.bf16.mxu0 0
        %2681 = vmatpush1.bf16.msra.mxu0 0
        %2682 = vmatprep.subr.bf16.mxu0 0
        %2683 = vmatpush1.bf16.msra.mxu0 0
        %2684 = vmatprep.subr.bf16.mxu0 0
        %2685 = vmatpush1.bf16.msra.mxu0 0
        %2686 = vmatprep.subr.bf16.mxu0 0
        %2687 = vmatpush1.bf16.msra.mxu0 0
        %2688 = vmatprep.subr.bf16.mxu0 0
        %2689 = vmatpush1.bf16.msra.mxu0 0
        %2690 = vmatprep.mubr.bf16.mxu0 0
        %2691 = vmatmul.mubr.bf16.gmra.mrb[0].mxu0 %v2656
        %v2692 = vpop.f32.mrb[0].mxu0
        %v2693 = vadd.f32 %v2608, %v2692
        %v2694 = vpop.f32.mrb[0].mxu0
        %v2695 = vadd.f32 %v2612, %v2694
        %v2696 = vpop.f32.mrb[0].mxu0
        %v2697 = vadd.f32 %v2608, %v2696
        %v2698 = vpop.f32.mrb[0].mxu0
        %v2699 = vadd.f32 %v2612, %v2698
        %2700 = vdwg.mxu0
        %v2701 = vmul.f32 %v2693, 0.5
        %v2702 = vmul.f32 %v2695, 0.5
        %v2703 = vmul.f32 %v2697, 0.5
        %v2704 = vmul.f32 %v2699, 0.5
        %v2705 = vmul.f32 %v2693, 0.70710677
        %v2706 = vmul.f32 %v2695, 0.70710677
        %v2707 = vmul.f32 %v2697, 0.70710677
        %v2708 = vmul.f32 %v2699, 0.70710677
        %v2709 = verf.f32.pop %v2705
        %v2710 = verf.f32.pop %v2706
        %v2711 = verf.f32.pop %v2707
        %v2712 = verf.f32.pop %v2708
        %v2713 = vadd.f32 %v2709, 1.0
        %v2714 = vadd.f32 %v2710, 1.0
        %v2715 = vadd.f32 %v2711, 1.0
        %v2716 = vadd.f32 %v2712, 1.0
        %v2717 = vmul.f32 %v2701, %v2713
        %v2718 = vmul.f32 %v2702, %v2714
        %v2719 = vmul.f32 %v2703, %v2715
        %v2720 = vmul.f32 %v2704, %v2716
        %v2721 = vpack.c.bf16 %v2719, %v2717
        %v2722 = vpack.c.bf16 %v2720, %v2718
        %v2723 = vld [vmem:[%s790] sm:$0xf]
        %v2724 = vld [vmem:[%s790 + $0x4] sm:$0xf]
        %v2725 = vld [vmem:[%s790 + $0x8] sm:$0xf]
        %v2726 = vld [vmem:[%s790 + $0xc] sm:$0xf]
        %v2727 = vld [vmem:[%s790 + $0x10] sm:$0xf]
        %v2728 = vld [vmem:[%s790 + $0x14] sm:$0xf]
        %v2729 = vld [vmem:[%s790 + $0x18] sm:$0xf]
        %v2730 = vld [vmem:[%s790 + $0x1c] sm:$0xf]
        %v2731 = vld [vmem:[%s790 + $0x20] sm:$0xf]
        %v2732 = vld [vmem:[%s790 + $0x24] sm:$0xf]
        %v2733 = vld [vmem:[%s790 + $0x28] sm:$0xf]
        %v2734 = vld [vmem:[%s790 + $0x2c] sm:$0xf]
        %v2735 = vld [vmem:[%s790 + $0x30] sm:$0xf]
        %v2736 = vld [vmem:[%s790 + $0x34] sm:$0xf]
        %v2737 = vld [vmem:[%s790 + $0x38] sm:$0xf]
        %v2738 = vld [vmem:[%s790 + $0x3c] sm:$0xf]
        %v2739 = vld [vmem:[%s790 + $0x40] sm:$0xf]
        %v2740 = vld [vmem:[%s790 + $0x44] sm:$0xf]
        %v2741 = vld [vmem:[%s790 + $0x48] sm:$0xf]
        %v2742 = vld [vmem:[%s790 + $0x4c] sm:$0xf]
        %v2743 = vld [vmem:[%s790 + $0x50] sm:$0xf]
        %v2744 = vld [vmem:[%s790 + $0x54] sm:$0xf]
        %v2745 = vld [vmem:[%s790 + $0x58] sm:$0xf]
        %v2746 = vld [vmem:[%s790 + $0x5c] sm:$0xf]
        %v2747 = vld [vmem:[%s790 + $0x60] sm:$0xf]
        %v2748 = vld [vmem:[%s790 + $0x64] sm:$0xf]
        %v2749 = vld [vmem:[%s790 + $0x68] sm:$0xf]
        %v2750 = vld [vmem:[%s790 + $0x6c] sm:$0xf]
        %v2751 = vld [vmem:[%s790 + $0x70] sm:$0xf]
        %v2752 = vld [vmem:[%s790 + $0x74] sm:$0xf]
        %v2753 = vld [vmem:[%s790 + $0x78] sm:$0xf]
        %v2754 = vld [vmem:[%s790 + $0x7c] sm:$0xf]
        %v2787 = vunpack.c.l.b16 %v2723
        %v2788 = vunpack.c.l.b16 %v2724
        %v2789 = vunpack.c.l.b16 %v2725
        %v2790 = vunpack.c.l.b16 %v2726
        %v2791 = vunpack.c.l.b16 %v2727
        %v2792 = vunpack.c.l.b16 %v2728
        %v2793 = vunpack.c.l.b16 %v2729
        %v2794 = vunpack.c.l.b16 %v2730
        %v2795 = vunpack.c.l.b16 %v2731
        %v2796 = vunpack.c.l.b16 %v2732
        %v2797 = vunpack.c.l.b16 %v2733
        %v2798 = vunpack.c.l.b16 %v2734
        %v2799 = vunpack.c.l.b16 %v2735
        %v2800 = vunpack.c.l.b16 %v2736
        %v2801 = vunpack.c.l.b16 %v2737
        %v2802 = vunpack.c.l.b16 %v2738
        %v2803 = vunpack.c.l.b16 %v2739
        %v2804 = vunpack.c.l.b16 %v2740
        %v2805 = vunpack.c.l.b16 %v2741
        %v2806 = vunpack.c.l.b16 %v2742
        %v2807 = vunpack.c.l.b16 %v2743
        %v2808 = vunpack.c.l.b16 %v2744
        %v2809 = vunpack.c.l.b16 %v2745
        %v2810 = vunpack.c.l.b16 %v2746
        %v2811 = vunpack.c.l.b16 %v2747
        %v2812 = vunpack.c.l.b16 %v2748
        %v2813 = vunpack.c.l.b16 %v2749
        %v2814 = vunpack.c.l.b16 %v2750
        %v2815 = vunpack.c.l.b16 %v2751
        %v2816 = vunpack.c.l.b16 %v2752
        %v2817 = vunpack.c.l.b16 %v2753
        %v2818 = vunpack.c.l.b16 %v2754
        %v2819 = vpack.c.b16 %v2788, %v2787
        %v2820 = vpack.c.b16 %v2790, %v2789
        %v2821 = vpack.c.b16 %v2792, %v2791
        %v2822 = vpack.c.b16 %v2794, %v2793
        %v2823 = vpack.c.b16 %v2796, %v2795
        %v2824 = vpack.c.b16 %v2798, %v2797
        %v2825 = vpack.c.b16 %v2800, %v2799
        %v2826 = vpack.c.b16 %v2802, %v2801
        %v2827 = vpack.c.b16 %v2804, %v2803
        %v2828 = vpack.c.b16 %v2806, %v2805
        %v2829 = vpack.c.b16 %v2808, %v2807
        %v2830 = vpack.c.b16 %v2810, %v2809
        %v2831 = vpack.c.b16 %v2812, %v2811
        %v2832 = vpack.c.b16 %v2814, %v2813
        %v2833 = vpack.c.b16 %v2816, %v2815
        %v2834 = vpack.c.b16 %v2818, %v2817
        %2851 = vmatprep.subr.bf16.mxu0 0
        %2852 = vmatpush1.bf16.msra.mxu0 %v2819
        %2853 = vmatprep.subr.bf16.mxu0 0
        %2854 = vmatpush1.bf16.msra.mxu0 %v2820
        %2855 = vmatprep.subr.bf16.mxu0 0
        %2856 = vmatpush1.bf16.msra.mxu0 %v2821
        %2857 = vmatprep.subr.bf16.mxu0 0
        %2858 = vmatpush1.bf16.msra.mxu0 %v2822
        %2859 = vmatprep.subr.bf16.mxu0 0
        %2860 = vmatpush1.bf16.msra.mxu0 %v2823
        %2861 = vmatprep.subr.bf16.mxu0 0
        %2862 = vmatpush1.bf16.msra.mxu0 %v2824
        %2863 = vmatprep.subr.bf16.mxu0 0
        %2864 = vmatpush1.bf16.msra.mxu0 %v2825
        %2865 = vmatprep.subr.bf16.mxu0 0
        %2866 = vmatpush1.bf16.msra.mxu0 %v2826
        %2867 = vmatprep.subr.bf16.mxu0 0
        %2868 = vmatpush1.bf16.msra.mxu0 %v2827
        %2869 = vmatprep.subr.bf16.mxu0 0
        %2870 = vmatpush1.bf16.msra.mxu0 %v2828
        %2871 = vmatprep.subr.bf16.mxu0 0
        %2872 = vmatpush1.bf16.msra.mxu0 %v2829
        %2873 = vmatprep.subr.bf16.mxu0 0
        %2874 = vmatpush1.bf16.msra.mxu0 %v2830
        %2875 = vmatprep.subr.bf16.mxu0 0
        %2876 = vmatpush1.bf16.msra.mxu0 %v2831
        %2877 = vmatprep.subr.bf16.mxu0 0
        %2878 = vmatpush1.bf16.msra.mxu0 %v2832
        %2879 = vmatprep.subr.bf16.mxu0 0
        %2880 = vmatpush1.bf16.msra.mxu0 %v2833
        %2881 = vmatprep.subr.bf16.mxu0 0
        %2882 = vmatpush1.bf16.msra.mxu0 %v2834
        %2883 = vmatprep.mubr.bf16.mxu0 %v2722
        %2884 = vmatmul.mubr.bf16.gmra.mrb[0].mxu0 %v2721
        %v2885 = vpop.f32.mrb[0].mxu0
        %v2886 = vadd.f32 0.0, %v2885
        %v2887 = vpop.f32.mrb[0].mxu0
        %v2888 = vpop.f32.mrb[0].mxu0
        %v2889 = vadd.f32 0.0, %v2888
        %v2890 = vpop.f32.mrb[0].mxu0
        %2891 = vdwg.mxu0
        %v2892 = vadd.f32 %v2548, %v2886
        %v2893 = vadd.f32 %v2549, %v2889
        %v2894 = vld [vmem:[%s793] sm:$0x1]
        %v2896 = vlaneseq
        %v2897 = vshrl.u32 %v2896, 7
        %v2898 = vsub.s32 0, %v2897
        %v2899 = vrot.slane %v2894, %v2898
        %v2901 = vadd.f32 %v2892, %v2899
        %v2902 = vadd.f32 %v2893, %v2899
        %2903 = vst.msk [vmem:[#allocation2] sm:$0xff] %vm1364, %v2901
        %2904 = vst.msk [vmem:[#allocation2 + $0x8] sm:$0x3] %vm1368, %v2902
        %p2905 = scmp.eq.s32.totalorder %s32, 1
        // Predicated region
        $region105: #{vit_forward.1} parent=99 // pred_check
          %p2906 = pneg %p2905
        $region106: #{vit_forward.1} parent=99 // pred_check_branch
          %2908 = sbr.rel (%p2906) target = $region108
        $region107: #{vit_forward.1} parent=99 // pred_region
          %v2910 = vrot.slane %v2901, 4
          %vm2912 = vcmask 1040384
          %v2913 = vsel %vm2912, %v2901, %v2910
          %v2914 = vld [vmem:[%s16] sm:$0x1]
          %v2915 = vld [vmem:[%s17] sm:$0x1]
          %v2916 = vsel %vm1368, %v2913, 0.0
          %2917 = vadd.xlane.f32.xlu0 %v2916
          %v2918 = vpop.xlane.xlu0 %2917
          %v2919 = vmul.f32 %v2918, %v1372
          %v2920 = vsub.f32 %v2913, %v2919
          %v2921 = vmul.f32 %v2920, %v2920
          %v2922 = vsel %vm1368, %v2921, 0.0
          %2923 = vadd.xlane.f32.xlu0 %v2922
          %v2924 = vpop.xlane.xlu0 %2923
          %v2925 = vmul.f32 %v2924, %v1372
          %v2926 = vadd.f32 %v2925, 1e-06
          %v2927 = vrsqrt.pop %v2926
          %v2928 = vmul.f32 %v2920, %v2927
          %v2930 = vlaneseq
          %v2931 = vshrl.u32 %v2930, 7
          %v2932 = vsub.s32 0, %v2931
          %v2933 = vrot.slane %v2914, %v2932
          %v2935 = vmul.f32 %v2928, %v2933
          %v2937 = vlaneseq
          %v2938 = vshrl.u32 %v2937, 7
          %v2939 = vsub.s32 0, %v2938
          %v2940 = vrot.slane %v2915, %v2939
          %v2942 = vadd.f32 %v2935, %v2940
          %v2943 = vpack.c.bf16 %v2942, %v2942
          %v2944 = vld [vmem:[%s18] sm:$0xf]
          %v2945 = vld [vmem:[%s18 + $0x4] sm:$0xf]
          %v2946 = vld [vmem:[%s18 + $0x8] sm:$0xf]
          %v2947 = vld [vmem:[%s18 + $0xc] sm:$0xf]
          %v2948 = vld [vmem:[%s18 + $0x10] sm:$0xf]
          %v2949 = vld [vmem:[%s18 + $0x14] sm:$0xf]
          %v2950 = vld [vmem:[%s18 + $0x18] sm:$0xf]
          %v2951 = vld [vmem:[%s18 + $0x1c] sm:$0xf]
          %v2952 = vld [vmem:[%s19] sm:$0x1]
          %v2954 = vlaneseq
          %v2955 = vshrl.u32 %v2954, 7
          %v2956 = vsub.s32 0, %v2955
          %v2957 = vrot.slane %v2952, %v2956
          %v2967 = vunpack.c.l.b16 %v2944
          %v2968 = vunpack.c.l.b16 %v2945
          %v2969 = vunpack.c.l.b16 %v2946
          %v2970 = vunpack.c.l.b16 %v2947
          %v2971 = vunpack.c.l.b16 %v2948
          %v2972 = vunpack.c.l.b16 %v2949
          %v2973 = vunpack.c.l.b16 %v2950
          %v2974 = vunpack.c.l.b16 %v2951
          %v2975 = vpack.c.b16 %v2968, %v2967
          %v2976 = vpack.c.b16 %v2970, %v2969
          %v2977 = vpack.c.b16 %v2972, %v2971
          %v2978 = vpack.c.b16 %v2974, %v2973
          %v2984 = vsel %vm1364, %v2943, 0
          %2986 = vmatprep.subr.bf16.mxu0 0
          %2987 = vmatpush1.bf16.msra.mxu0 %v2975
          %2988 = vmatprep.subr.bf16.mxu0 0
          %2989 = vmatpush1.bf16.msra.mxu0 %v2976
          %2990 = vmatprep.subr.bf16.mxu0 0
          %2991 = vmatpush1.bf16.msra.mxu0 %v2977
          %2992 = vmatprep.subr.bf16.mxu0 0
          %2993 = vmatpush1.bf16.msra.mxu0 %v2978
          %2994 = vmatprep.subr.bf16.mxu0 0
          %2995 = vmatpush1.bf16.msra.mxu0 0
          %2996 = vmatprep.subr.bf16.mxu0 0
          %2997 = vmatpush1.bf16.msra.mxu0 0
          %2998 = vmatprep.subr.bf16.mxu0 0
          %2999 = vmatpush1.bf16.msra.mxu0 0
          %3000 = vmatprep.subr.bf16.mxu0 0
          %3001 = vmatpush1.bf16.msra.mxu0 0
          %3002 = vmatprep.subr.bf16.mxu0 0
          %3003 = vmatpush1.bf16.msra.mxu0 0
          %3004 = vmatprep.subr.bf16.mxu0 0
          %3005 = vmatpush1.bf16.msra.mxu0 0
          %3006 = vmatprep.subr.bf16.mxu0 0
          %3007 = vmatpush1.bf16.msra.mxu0 0
          %3008 = vmatprep.subr.bf16.mxu0 0
          %3009 = vmatpush1.bf16.msra.mxu0 0
          %3010 = vmatprep.subr.bf16.mxu0 0
          %3011 = vmatpush1.bf16.msra.mxu0 0
          %3012 = vmatprep.subr.bf16.mxu0 0
          %3013 = vmatpush1.bf16.msra.mxu0 0
          %3014 = vmatprep.subr.bf16.mxu0 0
          %3015 = vmatpush1.bf16.msra.mxu0 0
          %3016 = vmatprep.subr.bf16.mxu0 0
          %3017 = vmatpush1.bf16.msra.mxu0 0
          %3018 = vmatprep.mubr.bf16.mxu0 0
          %3019 = vmatmul.mubr.bf16.gmra.mrb[0].mxu0 %v2984
          %v3020 = vpop.f32.mrb[0].mxu0
          %v3021 = vadd.f32 %v2957, %v3020
          %v3022 = vpop.f32.mrb[0].mxu0
          %v3023 = vpop.f32.mrb[0].mxu0
          %v3024 = vpop.f32.mrb[0].mxu0
          %3025 = vdwg.mxu0
          %3026 = vst [vmem:[#allocation3] sm:$0x3] %v3021
        $region108: #{vit_forward.1} parent=99 // pred_fallthru
          _
        // Predicated region
        $region109: #{vit_forward.1} parent=99 // pred_check
          %p3027 = pneg %p525
        $region110: #{vit_forward.1} parent=99 // pred_check_branch
          %3029 = sbr.rel (%p3027) target = $region112
        $region111: #{vit_forward.1} parent=99 // pred_region
          %s3031 = ssub.s32 32, 32
          %3032 = vsyncadd [#allocation4], %s3031
          %s3034 = sshll.u32 [#allocation3], 4
          %s3035 = int_to_ptr.vmem [resolvable:$true] %s3034
          %3037 = dma.vmem_to_hbm [thread:$0]  %s3035, 32, %s20, [#allocation4]
        $region112: #{vit_forward.1} parent=99 // pred_fallthru
          _
        // Predicated region
        $region113: #{vit_forward.1} parent=99 // pred_check
          %p3038 = pneg %p525
        $region114: #{vit_forward.1} parent=99 // pred_check_branch
          %3040 = sbr.rel (%p3038) target = $region116
        $region115: #{vit_forward.1} parent=99 // pred_region
          %3041 = dma.done [#allocation4], 32
        $region116: #{vit_forward.1} parent=99 // pred_fallthru
          _
      $region100: #{vit_forward.1} parent=5 // pred_fallthru
        _
      %p3042 = scmp.le.s32.totalorder 2, %s27
      // Predicated region
      $region117: #{vit_forward.1} parent=5 // pred_check
        %p3043 = pneg %p3042
      $region118: #{vit_forward.1} parent=5 // pred_check_branch
        %3045 = sbr.rel (%p3043) target = $region120
      $region119: #{vit_forward.1} parent=5 // pred_region
        %s3046 = ssub.s32 %s27, 2
      $region120: #{vit_forward.1} parent=5 // pred_fallthru
        _
    $region6: #{vit_forward.1} parent=1 // loop_footer
      %s31 = sadd.s32 1, %s27
    $region7: #{vit_forward.1} parent=1 // loop_footer_branch
      %26 = sbr.rel target = $region3
    $region8: #{vit_forward.1} parent=1 // loop_exit
      _
    %3047 = vsyncpa [#allocation4], 1
    %s3048 = scalar_lea.sflag [#allocation4], 1
    %3049 = vsyncpa %s3048, 1

</llo_original>
